<compile_context>
chip_gen: v5e
topology: v5e:2x2
jax: 0.10.0
libtpu: 0.0.40
codegen_flags: <defaults>
</compile_context>

<pallas_src>
import jax
import jax.numpy as jnp
from jax.experimental import pallas as pl
from jax.experimental.pallas import tpu as pltpu

_LANE = 128
_SUBLANE = 8
_HAS_BUFFERED = hasattr(pl, "Buffered")


def _round_up(x, m):
    return ((x + m - 1) // m) * m


def _cdiv(a, b):
    return (a + b - 1) // b


# ----------------------------------------------------------------------------
# Generic fused (Linear -> ReLU) x N kernel on a (tm, *) row block.
# Weights are lane-padded (padded cols zero -> stay zero through bias+ReLU).
# MXU matmuls accumulate in f32; bias-add / ReLU run in f32 on the VPU.
# ----------------------------------------------------------------------------
def _make_mlp_kernel(num_layers, mxu_precision):
    def kernel(*refs):
        x_ref = refs[0]
        o_ref = refs[-1]
        h = x_ref[...]
        for layer in range(num_layers):
            w_ref = refs[1 + 2 * layer]
            b_ref = refs[2 + 2 * layer]
            h = jnp.dot(h.astype(w_ref.dtype), w_ref[...],
                        preferred_element_type=jnp.float32,
                        precision=mxu_precision)
            h = jnp.maximum(h + b_ref[...], 0.0)   # f32 bias + ReLU (v5e safe)
        o_ref[...] = h.astype(o_ref.dtype)
    return kernel


def _resident_spec(shape, single_buffer):
    """BlockSpec for a weight/bias: constant index_map -> DMA'd once; a single
    buffer (pl.Buffered(1)) avoids wasting VMEM on a second copy."""
    idx = lambda *_: (0,) * len(shape)
    if single_buffer:
        return pl.BlockSpec(shape, idx, pipeline_mode=pl.Buffered(1))
    return pl.BlockSpec(shape, idx)


def _fused_mlp(x2, layers, *, tm, out_dtype):
    """x2: (Mp, K) with Mp % tm == 0. layers: ((w, b), ...) lane-padded.
    Returns the (Mp, d_out_last) lane-dense output in out_dtype."""
    Mp, K = x2.shape
    assert Mp % tm == 0
    Fp = layers[-1][0].shape[1]
    n_blocks = Mp // tm

    flat_params = []
    flops = 0
    weight_bytes = 0
    d_in = K
    for w, b in layers:
        d_out = w.shape[1]
        flat_params += [w, b]
        flops += 2 * Mp * d_in * d_out
        weight_bytes += w.size * w.dtype.itemsize + b.size * b.dtype.itemsize
        d_in = d_out

    out_itemsize = jnp.dtype(out_dtype).itemsize
    io_bytes = Mp * K * x2.dtype.itemsize + Mp * Fp * out_itemsize + weight_bytes

    # VMEM need: double-buffered x / out row blocks + resident weights.
    w_bufs = 1 if _HAS_BUFFERED else 2
    vmem_need = (2 * tm * K * x2.dtype.itemsize
                 + 2 * tm * Fp * out_itemsize
                 + w_bufs * weight_bytes)
    # 2x headroom, >= default scoped limit, < v7x's 64 MiB physical VMEM.
    vmem_limit = int(min(48 << 20, max(32 << 20, 2 * vmem_need + (4 << 20))))

    mxu_precision = (jax.lax.Precision.HIGHEST
                     if x2.dtype == jnp.float32 else None)

    def _build_and_call(single_buffer_weights):
        in_specs = [pl.BlockSpec((tm, K), lambda i: (i, 0))]
        for w, b in layers:
            in_specs.append(_resident_spec(w.shape, single_buffer_weights))
            in_specs.append(_resident_spec(b.shape, single_buffer_weights))
        return pl.pallas_call(
            _make_mlp_kernel(len(layers), mxu_precision),
            out_shape=jax.ShapeDtypeStruct((Mp, Fp), out_dtype),
            grid=(n_blocks,),
            in_specs=in_specs,
            out_specs=pl.BlockSpec((tm, Fp), lambda i: (i, 0)),
            compiler_params=pltpu.CompilerParams(
                dimension_semantics=("parallel",),
                vmem_limit_bytes=vmem_limit),
            cost_estimate=pl.CostEstimate(
                flops=int(flops), transcendentals=0,
                bytes_accessed=int(io_bytes)),
        )(x2, *flat_params)

    if _HAS_BUFFERED:
        try:
            return _build_and_call(True)
        except Exception:   # pragma: no cover - older JAX: fall back cleanly
            pass
    return _build_and_call(False)


# ----------------------------------------------------------------------------
# Row tiling: multiple of 8, padding < one tile, and an even (>= 2) number of
# grid blocks so the "parallel" axis can shard across v7x's two TensorCores.
# ----------------------------------------------------------------------------
def _choose_row_tiling(rows, tm_max):
    n_blocks = max(2, _cdiv(rows, tm_max))
    if n_blocks % 2:
        n_blocks += 1
    tm = _round_up(_cdiv(rows, n_blocks), _SUBLANE)
    return tm, n_blocks * tm


def _pad_rows(a, rows, tm_max):
    tm, padded_rows = _choose_row_tiling(rows, tm_max)
    if padded_rows != rows:
        a = jnp.pad(a, ((0, padded_rows - rows), (0, 0)))
    return a, tm


# ----------------------------------------------------------------------------
# Parameters.
# ----------------------------------------------------------------------------
def init_params(key, input_shape, hand_embedding_features, out_features,
                dtype=jnp.float32):
    """Logical parameters matching the PyTorch module (weights stored as
    (in_features, out_features), i.e. transpose of torch.nn.Linear.weight)."""
    P, H, W, C = input_shape
    hwc = C * H * W
    E = hand_embedding_features
    F = out_features
    ks = jax.random.split(key, 8)

    def lin(kw, kb, fan_in, fan_out):
        bound = 1.0 / jnp.sqrt(jnp.asarray(fan_in, jnp.float32))
        w = jax.random.uniform(kw, (fan_in, fan_out), dtype, -bound, bound)
        b = jax.random.uniform(kb, (1, fan_out), dtype, -bound, bound)
        return w, b

    w1, b1 = lin(ks[0], ks[1], hwc, E)          # hand_encoder[0]
    w2, b2 = lin(ks[2], ks[3], E, E)            # hand_encoder[2]
    w3, b3 = lin(ks[4], ks[5], P * E, F)        # transform_encoded_hands[0]
    w4, b4 = lin(ks[6], ks[7], F, F)            # transform_encoded_hands[2]
    return dict(w1=w1, b1=b1, w2=w2, b2=b2, w3=w3, b3=b3, w4=w4, b4=b4)


def pack_params(params, input_shape, hand_embedding_features, out_features, *,
                compute_dtype=jnp.bfloat16, out_dtype=jnp.float32,
                block_diag_max_pe=512):
    """Build kernel-ready weights (done once, outside the kernel).

    mode="fused": block-diagonal hand-encoder weights -> the whole module is
    one 4-layer MLP.  mode="split" (when padded P*E exceeds block_diag_max_pe):
    per-player 2-layer MLP + dense 2-layer transform, avoiding the O(P^2)
    wasted MXU FLOPs of the dense block-diagonal matmuls.
    Weights are cast to compute_dtype (bf16 by default, MXU input); biases stay
    f32 (bias-add/ReLU run in f32).  All feature dims are padded to 128 lanes.
    """
    P, H, W, C = input_shape
    hwc = H * W * C
    E = hand_embedding_features
    F = out_features
    PE = P * E
    PEp = _round_up(PE, _LANE)
    Ep = _round_up(E, _LANE)
    Fp = _round_up(F, _LANE)
    cdt = compute_dtype

    w1, b1 = params["w1"], params["b1"]
    w2, b2 = params["w2"], params["b2"]
    w3, b3 = params["w3"], params["b3"]
    w4, b4 = params["w4"], params["b4"]

    if PEp <= block_diag_max_pe:
        w1_bd = jnp.zeros((P * hwc, PEp), cdt)
        w2_bd = jnp.zeros((PEp, PEp), cdt)
        for p in range(P):
            w1_bd = w1_bd.at[p*hwc:(p+1)*hwc, p*E:(p+1)*E].set(w1.astype(cdt))
            w2_bd = w2_bd.at[p*E:(p+1)*E, p*E:(p+1)*E].set(w2.astype(cdt))
        b1_bd = jnp.zeros((1, PEp), jnp.float32).at[:, :PE].set(
            jnp.tile(b1, (1, P)).astype(jnp.float32))
        b2_bd = jnp.zeros((1, PEp), jnp.float32).at[:, :PE].set(
            jnp.tile(b2, (1, P)).astype(jnp.float32))
        w3_p = jnp.zeros((PEp, Fp), cdt).at[:PE, :F].set(w3.astype(cdt))
        b3_p = jnp.zeros((1, Fp), jnp.float32).at[:, :F].set(b3.astype(jnp.float32))
        w4_p = jnp.zeros((Fp, Fp), cdt).at[:F, :F].set(w4.astype(cdt))
        b4_p = jnp.zeros((1, Fp), jnp.float32).at[:, :F].set(b4.astype(jnp.float32))
        return dict(mode="fused", compute_dtype=cdt, out_dtype=out_dtype,
                    layers=((w1_bd, b1_bd), (w2_bd, b2_bd),
                            (w3_p, b3_p), (w4_p, b4_p)))

    # Split (scalable) mode: shared hand encoder applied to (B*P) rows, then
    # the transform.  Hand outputs are lane-padded per player, so w3 rows for
    # player p / feature e land at row p*Ep + e (padded rows are zero anyway).
    w1_p = jnp.zeros((hwc, Ep), cdt).at[:, :E].set(w1.astype(cdt))
    b1_p = jnp.zeros((1, Ep), jnp.float32).at[:, :E].set(b1.astype(jnp.float32))
    w2_p = jnp.zeros((Ep, Ep), cdt).at[:E, :E].set(w2.astype(cdt))
    b2_p = jnp.zeros((1, Ep), jnp.float32).at[:, :E].set(b2.astype(jnp.float32))
    w3_p = jnp.zeros((P * Ep, Fp), cdt)
    for p in range(P):
        w3_p = w3_p.at[p*Ep:p*Ep + E, :F].set(w3[p*E:(p+1)*E, :].astype(cdt))
    b3_p = jnp.zeros((1, Fp), jnp.float32).at[:, :F].set(b3.astype(jnp.float32))
    w4_p = jnp.zeros((Fp, Fp), cdt).at[:F, :F].set(w4.astype(cdt))
    b4_p = jnp.zeros((1, Fp), jnp.float32).at[:, :F].set(b4.astype(jnp.float32))
    return dict(mode="split", compute_dtype=cdt, out_dtype=out_dtype, Ep=Ep,
                hand_layers=((w1_p, b1_p), (w2_p, b2_p)),
                top_layers=((w3_p, b3_p), (w4_p, b4_p)))


# ----------------------------------------------------------------------------
# Forward pass.
# ----------------------------------------------------------------------------
def spatia1d_input_head(x, packed, input_shape, hand_embedding_features,
                        out_features, *, tm=1024):
    """x: (B, P, H, W, C) -> (B, out_features). `packed` from pack_params."""
    P, H, W, C = input_shape
    B = x.shape[0]
    assert x.shape[1:] == (P, H, W, C), \
        f"expected (B,{P},{H},{W},{C}), got {x.shape}"
    F = out_features
    cdt = packed["compute_dtype"]
    odt = packed["out_dtype"]

    if packed["mode"] == "fused":
        # 'b p h w c -> b (p h w c)' -- the per-player flatten and the later
        # '(b p) f -> b (p f)' concat are absorbed into block-diagonal weights.
        x2 = x.reshape(B, P * H * W * C).astype(cdt)
        x2, tm_eff = _pad_rows(x2, B, tm)
        out = _fused_mlp(x2, packed["layers"], tm=tm_eff, out_dtype=odt)
    else:
        # 'b p h w c -> (b p) (h w c)', shared hand encoder per player row.
        xh = x.reshape(B * P, H * W * C).astype(cdt)
        xh, tm_h = _pad_rows(xh, B * P, tm)
        enc = _fused_mlp(xh, packed["hand_layers"], tm=tm_h, out_dtype=cdt)
        # '(b p) f -> b (p f)' on the lane-padded embedding width.
        enc = enc[:B * P].reshape(B, P * packed["Ep"])
        enc, tm_eff = _pad_rows(enc, B, tm)
        out = _fused_mlp(enc, packed["top_layers"], tm=tm_eff, out_dtype=odt)

    if out.shape == (B, F):
        return out                      # already lane/row-exact: no extra copy
    return out[:B, :F]


def _reference(x, params, input_shape, E, F):
    """Pure-JAX reference with the original module's structure (full f32)."""
    P, H, W, C = input_shape
    B = x.shape[0]
    hp = jax.lax.Precision.HIGHEST
    x2 = x.reshape(B * P, H * W * C)
    h = jnp.maximum(jnp.dot(x2, params["w1"], precision=hp) + params["b1"], 0.0)
    h = jnp.maximum(jnp.dot(h, params["w2"], precision=hp) + params["b2"], 0.0)
    x3 = h.reshape(B, P * E)
    h = jnp.maximum(jnp.dot(x3, params["w3"], precision=hp) + params["b3"], 0.0)
    h = jnp.maximum(jnp.dot(h, params["w4"], precision=hp) + params["b4"], 0.0)
    return h


if __name__ == "__main__":
    # Small synthetic configuration consistent with the module's assumptions.
    input_shape = (4, 4, 4, 3)        # (P, H, W, C) -> H*W*C = 48, P*E = 128
    hand_embedding_features = 32
    out_features = 64
    batch = 2

    key = jax.random.PRNGKey(0)
    k_x, k_p = jax.random.split(key)
    x = jax.random.normal(k_x, (batch,) + input_shape, dtype=jnp.float32)
    params = init_params(k_p, input_shape, hand_embedding_features, out_features)
    ref = _reference(x, params, input_shape, hand_embedding_features, out_features)

    # 1) f32 compute path, fused block-diagonal kernel: tight tolerance so any
    #    packing mistake is caught.
    packed_f32 = pack_params(params, input_shape, hand_embedding_features,
                             out_features, compute_dtype=jnp.float32)
    out_f32 = jax.block_until_ready(
        spatia1d_input_head(x, packed_f32, input_shape,
                            hand_embedding_features, out_features))
    assert out_f32.shape == (batch, out_features), out_f32.shape
    assert jnp.all(jnp.isfinite(out_f32))
    assert jnp.allclose(out_f32, ref, rtol=1e-4, atol=1e-4), \
        float(jnp.max(jnp.abs(out_f32 - ref)))

    # 2) Default bf16 compute path (HBM-bound kernel: halves the x read).
    #    Intentionally looser tolerance: bf16 MXU inputs vs the f32 reference.
    packed_bf16 = pack_params(params, input_shape, hand_embedding_features,
                              out_features)
    out_bf16 = jax.block_until_ready(
        spatia1d_input_head(x, packed_bf16, input_shape,
                            hand_embedding_features, out_features))
    assert out_bf16.shape == (batch, out_features), out_bf16.shape
    assert jnp.all(jnp.isfinite(out_bf16))
    assert jnp.allclose(out_bf16, ref, rtol=2e-2, atol=2e-2), \
        float(jnp.max(jnp.abs(out_bf16 - ref)))

    # 3) Split (per-player) path -- the large-P*E scalability fallback --
    #    forced here so it is exercised even at this small configuration.
    packed_split = pack_params(params, input_shape, hand_embedding_features,
                               out_features, compute_dtype=jnp.float32,
                               block_diag_max_pe=0)
    assert packed_split["mode"] == "split"
    out_split = jax.block_until_ready(
        spatia1d_input_head(x, packed_split, input_shape,
                            hand_embedding_features, out_features))
    assert jnp.allclose(out_split, ref, rtol=1e-4, atol=1e-4), \
        float(jnp.max(jnp.abs(out_split - ref)))

    print("KERNEL_OK")
</pallas_src>

<mosaic_0001>
module attributes {stable_mosaic.version = 11 : i64} {
  func.func @kernel(%arg0: i32, %arg1: memref<8x192xf32, #tpu.memory_space<vmem>>, %arg2: memref<192x128xf32, #tpu.memory_space<vmem>>, %arg3: memref<1x128xf32, #tpu.memory_space<vmem>>, %arg4: memref<128x128xf32, #tpu.memory_space<vmem>>, %arg5: memref<1x128xf32, #tpu.memory_space<vmem>>, %arg6: memref<128x128xf32, #tpu.memory_space<vmem>>, %arg7: memref<1x128xf32, #tpu.memory_space<vmem>>, %arg8: memref<128x128xf32, #tpu.memory_space<vmem>>, %arg9: memref<1x128xf32, #tpu.memory_space<vmem>>, %arg10: memref<8x128xf32, #tpu.memory_space<vmem>>) attributes {dimension_semantics = [#tpu.dimension_semantics<parallel>], iteration_bounds = array<i64: 2>, scalar_prefetch = 0 : i64, scratch_operands = 0 : i64, tpu.core_type = #tpu.core_type<tc>, window_params = [{transform_indices = @transform_0, window_bounds = array<i64: 8, 192>}, {pipeline_mode = #tpu.pipeline_mode<synchronous>, transform_indices = @transform_1, window_bounds = array<i64: 192, 128>}, {pipeline_mode = #tpu.pipeline_mode<synchronous>, transform_indices = @transform_2, window_bounds = array<i64: 1, 128>}, {pipeline_mode = #tpu.pipeline_mode<synchronous>, transform_indices = @transform_3, window_bounds = array<i64: 128, 128>}, {pipeline_mode = #tpu.pipeline_mode<synchronous>, transform_indices = @transform_4, window_bounds = array<i64: 1, 128>}, {pipeline_mode = #tpu.pipeline_mode<synchronous>, transform_indices = @transform_5, window_bounds = array<i64: 128, 128>}, {pipeline_mode = #tpu.pipeline_mode<synchronous>, transform_indices = @transform_6, window_bounds = array<i64: 1, 128>}, {pipeline_mode = #tpu.pipeline_mode<synchronous>, transform_indices = @transform_7, window_bounds = array<i64: 128, 128>}, {pipeline_mode = #tpu.pipeline_mode<synchronous>, transform_indices = @transform_8, window_bounds = array<i64: 1, 128>}, {transform_indices = @transform_9, window_bounds = array<i64: 8, 128>}]} {
    %c0 = arith.constant 0 : index
    %c0_0 = arith.constant 0 : index
    %0 = vector.load %arg1[%c0, %c0_0] : memref<8x192xf32, #tpu.memory_space<vmem>>, vector<8x192xf32>
    %c0_1 = arith.constant 0 : index
    %c0_2 = arith.constant 0 : index
    %1 = vector.load %arg2[%c0_1, %c0_2] : memref<192x128xf32, #tpu.memory_space<vmem>>, vector<192x128xf32>
    %cst = arith.constant dense<0.000000e+00> : vector<8x128xf32>
    %2 = tpu.matmul %0, %1, %cst {dimension_numbers = #tpu.dot_dimension_numbers<[1], [0], [0], [1], [0, 0, 1, 1], [], []>, precision = #tpu.contract_precision<fp32>} : vector<8x192xf32>, vector<192x128xf32>, vector<8x128xf32> -> vector<8x128xf32>
    %c0_3 = arith.constant 0 : index
    %c0_4 = arith.constant 0 : index
    %3 = vector.load %arg3[%c0_3, %c0_4] : memref<1x128xf32, #tpu.memory_space<vmem>>, vector<1x128xf32>
    %4 = vector.broadcast %3 : vector<1x128xf32> to vector<8x128xf32>
    %5 = arith.addf %2, %4 : vector<8x128xf32>
    %cst_5 = arith.constant 0.000000e+00 : f32
    %6 = vector.broadcast %cst_5 : f32 to vector<8x128xf32>
    %7 = arith.maximumf %5, %6 : vector<8x128xf32>
    %c0_6 = arith.constant 0 : index
    %c0_7 = arith.constant 0 : index
    %8 = vector.load %arg4[%c0_6, %c0_7] : memref<128x128xf32, #tpu.memory_space<vmem>>, vector<128x128xf32>
    %cst_8 = arith.constant dense<0.000000e+00> : vector<8x128xf32>
    %9 = tpu.matmul %7, %8, %cst_8 {dimension_numbers = #tpu.dot_dimension_numbers<[1], [0], [0], [1], [0, 0, 1, 1], [], []>, precision = #tpu.contract_precision<fp32>} : vector<8x128xf32>, vector<128x128xf32>, vector<8x128xf32> -> vector<8x128xf32>
    %c0_9 = arith.constant 0 : index
    %c0_10 = arith.constant 0 : index
    %10 = vector.load %arg5[%c0_9, %c0_10] : memref<1x128xf32, #tpu.memory_space<vmem>>, vector<1x128xf32>
    %11 = vector.broadcast %10 : vector<1x128xf32> to vector<8x128xf32>
    %12 = arith.addf %9, %11 : vector<8x128xf32>
    %cst_11 = arith.constant 0.000000e+00 : f32
    %13 = vector.broadcast %cst_11 : f32 to vector<8x128xf32>
    %14 = arith.maximumf %12, %13 : vector<8x128xf32>
    %c0_12 = arith.constant 0 : index
    %c0_13 = arith.constant 0 : index
    %15 = vector.load %arg6[%c0_12, %c0_13] : memref<128x128xf32, #tpu.memory_space<vmem>>, vector<128x128xf32>
    %cst_14 = arith.constant dense<0.000000e+00> : vector<8x128xf32>
    %16 = tpu.matmul %14, %15, %cst_14 {dimension_numbers = #tpu.dot_dimension_numbers<[1], [0], [0], [1], [0, 0, 1, 1], [], []>, precision = #tpu.contract_precision<fp32>} : vector<8x128xf32>, vector<128x128xf32>, vector<8x128xf32> -> vector<8x128xf32>
    %c0_15 = arith.constant 0 : index
    %c0_16 = arith.constant 0 : index
    %17 = vector.load %arg7[%c0_15, %c0_16] : memref<1x128xf32, #tpu.memory_space<vmem>>, vector<1x128xf32>
    %18 = vector.broadcast %17 : vector<1x128xf32> to vector<8x128xf32>
    %19 = arith.addf %16, %18 : vector<8x128xf32>
    %cst_17 = arith.constant 0.000000e+00 : f32
    %20 = vector.broadcast %cst_17 : f32 to vector<8x128xf32>
    %21 = arith.maximumf %19, %20 : vector<8x128xf32>
    %c0_18 = arith.constant 0 : index
    %c0_19 = arith.constant 0 : index
    %22 = vector.load %arg8[%c0_18, %c0_19] : memref<128x128xf32, #tpu.memory_space<vmem>>, vector<128x128xf32>
    %cst_20 = arith.constant dense<0.000000e+00> : vector<8x128xf32>
    %23 = tpu.matmul %21, %22, %cst_20 {dimension_numbers = #tpu.dot_dimension_numbers<[1], [0], [0], [1], [0, 0, 1, 1], [], []>, precision = #tpu.contract_precision<fp32>} : vector<8x128xf32>, vector<128x128xf32>, vector<8x128xf32> -> vector<8x128xf32>
    %c0_21 = arith.constant 0 : index
    %c0_22 = arith.constant 0 : index
    %24 = vector.load %arg9[%c0_21, %c0_22] : memref<1x128xf32, #tpu.memory_space<vmem>>, vector<1x128xf32>
    %25 = vector.broadcast %24 : vector<1x128xf32> to vector<8x128xf32>
    %26 = arith.addf %23, %25 : vector<8x128xf32>
    %cst_23 = arith.constant 0.000000e+00 : f32
    %27 = vector.broadcast %cst_23 : f32 to vector<8x128xf32>
    %28 = arith.maximumf %26, %27 : vector<8x128xf32>
    %c0_24 = arith.constant 0 : index
    %c0_25 = arith.constant 0 : index
    %29 = vector.load %arg10[%c0_24, %c0_25] : memref<8x128xf32, #tpu.memory_space<vmem>>, vector<8x128xf32>
    tpu.vector_store %arg10[%c0_24, %c0_25], %28 {strides = array<i32>} : memref<8x128xf32, #tpu.memory_space<vmem>>, vector<8x128xf32>,
    return
  }
  func.func @transform_0(%arg0: i32) -> (i32, i32) {
    %c0_i32 = arith.constant 0 : i32
    %c0_i32_0 = arith.constant 0 : i32
    return %arg0, %c0_i32 : i32, i32
  }
  func.func @transform_1(%arg0: i32) -> (i32, i32) {
    %c0_i32 = arith.constant 0 : i32
    %c0_i32_0 = arith.constant 0 : i32
    %c0_i32_1 = arith.constant 0 : i32
    return %c0_i32, %c0_i32_0 : i32, i32
  }
  func.func @transform_2(%arg0: i32) -> (i32, i32) {
    %c0_i32 = arith.constant 0 : i32
    %c0_i32_0 = arith.constant 0 : i32
    %c0_i32_1 = arith.constant 0 : i32
    return %c0_i32, %c0_i32_0 : i32, i32
  }
  func.func @transform_3(%arg0: i32) -> (i32, i32) {
    %c0_i32 = arith.constant 0 : i32
    %c0_i32_0 = arith.constant 0 : i32
    %c0_i32_1 = arith.constant 0 : i32
    return %c0_i32, %c0_i32_0 : i32, i32
  }
  func.func @transform_4(%arg0: i32) -> (i32, i32) {
    %c0_i32 = arith.constant 0 : i32
    %c0_i32_0 = arith.constant 0 : i32
    %c0_i32_1 = arith.constant 0 : i32
    return %c0_i32, %c0_i32_0 : i32, i32
  }
  func.func @transform_5(%arg0: i32) -> (i32, i32) {
    %c0_i32 = arith.constant 0 : i32
    %c0_i32_0 = arith.constant 0 : i32
    %c0_i32_1 = arith.constant 0 : i32
    return %c0_i32, %c0_i32_0 : i32, i32
  }
  func.func @transform_6(%arg0: i32) -> (i32, i32) {
    %c0_i32 = arith.constant 0 : i32
    %c0_i32_0 = arith.constant 0 : i32
    %c0_i32_1 = arith.constant 0 : i32
    return %c0_i32, %c0_i32_0 : i32, i32
  }
  func.func @transform_7(%arg0: i32) -> (i32, i32) {
    %c0_i32 = arith.constant 0 : i32
    %c0_i32_0 = arith.constant 0 : i32
    %c0_i32_1 = arith.constant 0 : i32
    return %c0_i32, %c0_i32_0 : i32, i32
  }
  func.func @transform_8(%arg0: i32) -> (i32, i32) {
    %c0_i32 = arith.constant 0 : i32
    %c0_i32_0 = arith.constant 0 : i32
    %c0_i32_1 = arith.constant 0 : i32
    return %c0_i32, %c0_i32_0 : i32, i32
  }
  func.func @transform_9(%arg0: i32) -> (i32, i32) {
    %c0_i32 = arith.constant 0 : i32
    %c0_i32_0 = arith.constant 0 : i32
    return %arg0, %c0_i32 : i32, i32
  }
}

module attributes {stable_mosaic.version = 11 : i64} {
  func.func @kernel(%arg0: i32, %arg1: memref<8x192xf32, #tpu.memory_space<vmem>>, %arg2: memref<192x128xf32, #tpu.memory_space<vmem>>, %arg3: memref<1x128xf32, #tpu.memory_space<vmem>>, %arg4: memref<128x128xf32, #tpu.memory_space<vmem>>, %arg5: memref<1x128xf32, #tpu.memory_space<vmem>>, %arg6: memref<128x128xf32, #tpu.memory_space<vmem>>, %arg7: memref<1x128xf32, #tpu.memory_space<vmem>>, %arg8: memref<128x128xf32, #tpu.memory_space<vmem>>, %arg9: memref<1x128xf32, #tpu.memory_space<vmem>>, %arg10: memref<8x128xf32, #tpu.memory_space<vmem>>) attributes {dimension_semantics = [#tpu.dimension_semantics<parallel>], iteration_bounds = array<i64: 2>, scalar_prefetch = 0 : i64, scratch_operands = 0 : i64, tpu.core_type = #tpu.core_type<tc>, window_params = [{transform_indices = @transform_0, window_bounds = array<i64: 8, 192>}, {pipeline_mode = #tpu.pipeline_mode<synchronous>, transform_indices = @transform_1, window_bounds = array<i64: 192, 128>}, {pipeline_mode = #tpu.pipeline_mode<synchronous>, transform_indices = @transform_2, window_bounds = array<i64: 1, 128>}, {pipeline_mode = #tpu.pipeline_mode<synchronous>, transform_indices = @transform_3, window_bounds = array<i64: 128, 128>}, {pipeline_mode = #tpu.pipeline_mode<synchronous>, transform_indices = @transform_4, window_bounds = array<i64: 1, 128>}, {pipeline_mode = #tpu.pipeline_mode<synchronous>, transform_indices = @transform_5, window_bounds = array<i64: 128, 128>}, {pipeline_mode = #tpu.pipeline_mode<synchronous>, transform_indices = @transform_6, window_bounds = array<i64: 1, 128>}, {pipeline_mode = #tpu.pipeline_mode<synchronous>, transform_indices = @transform_7, window_bounds = array<i64: 128, 128>}, {pipeline_mode = #tpu.pipeline_mode<synchronous>, transform_indices = @transform_8, window_bounds = array<i64: 1, 128>}, {transform_indices = @transform_9, window_bounds = array<i64: 8, 128>}]} {
    %c0 = arith.constant 0 : index
    %c0_0 = arith.constant 0 : index
    %0 = vector.load %arg1[%c0, %c0_0] : memref<8x192xf32, #tpu.memory_space<vmem>>, vector<8x192xf32>
    %c0_1 = arith.constant 0 : index
    %c0_2 = arith.constant 0 : index
    %1 = vector.load %arg2[%c0_1, %c0_2] : memref<192x128xf32, #tpu.memory_space<vmem>>, vector<192x128xf32>
    %cst = arith.constant dense<0.000000e+00> : vector<8x128xf32>
    %2 = tpu.matmul %0, %1, %cst {dimension_numbers = #tpu.dot_dimension_numbers<[1], [0], [0], [1], [0, 0, 1, 1], [], []>, precision = #tpu.contract_precision<fp32>} : vector<8x192xf32>, vector<192x128xf32>, vector<8x128xf32> -> vector<8x128xf32>
    %c0_3 = arith.constant 0 : index
    %c0_4 = arith.constant 0 : index
    %3 = vector.load %arg3[%c0_3, %c0_4] : memref<1x128xf32, #tpu.memory_space<vmem>>, vector<1x128xf32>
    %4 = vector.broadcast %3 : vector<1x128xf32> to vector<8x128xf32>
    %5 = arith.addf %2, %4 : vector<8x128xf32>
    %cst_5 = arith.constant 0.000000e+00 : f32
    %6 = vector.broadcast %cst_5 : f32 to vector<8x128xf32>
    %7 = arith.maximumf %5, %6 : vector<8x128xf32>
    %c0_6 = arith.constant 0 : index
    %c0_7 = arith.constant 0 : index
    %8 = vector.load %arg4[%c0_6, %c0_7] : memref<128x128xf32, #tpu.memory_space<vmem>>, vector<128x128xf32>
    %cst_8 = arith.constant dense<0.000000e+00> : vector<8x128xf32>
    %9 = tpu.matmul %7, %8, %cst_8 {dimension_numbers = #tpu.dot_dimension_numbers<[1], [0], [0], [1], [0, 0, 1, 1], [], []>, precision = #tpu.contract_precision<fp32>} : vector<8x128xf32>, vector<128x128xf32>, vector<8x128xf32> -> vector<8x128xf32>
    %c0_9 = arith.constant 0 : index
    %c0_10 = arith.constant 0 : index
    %10 = vector.load %arg5[%c0_9, %c0_10] : memref<1x128xf32, #tpu.memory_space<vmem>>, vector<1x128xf32>
    %11 = vector.broadcast %10 : vector<1x128xf32> to vector<8x128xf32>
    %12 = arith.addf %9, %11 : vector<8x128xf32>
    %cst_11 = arith.constant 0.000000e+00 : f32
    %13 = vector.broadcast %cst_11 : f32 to vector<8x128xf32>
    %14 = arith.maximumf %12, %13 : vector<8x128xf32>
    %c0_12 = arith.constant 0 : index
    %c0_13 = arith.constant 0 : index
    %15 = vector.load %arg6[%c0_12, %c0_13] : memref<128x128xf32, #tpu.memory_space<vmem>>, vector<128x128xf32>
    %cst_14 = arith.constant dense<0.000000e+00> : vector<8x128xf32>
    %16 = tpu.matmul %14, %15, %cst_14 {dimension_numbers = #tpu.dot_dimension_numbers<[1], [0], [0], [1], [0, 0, 1, 1], [], []>, precision = #tpu.contract_precision<fp32>} : vector<8x128xf32>, vector<128x128xf32>, vector<8x128xf32> -> vector<8x128xf32>
    %c0_15 = arith.constant 0 : index
    %c0_16 = arith.constant 0 : index
    %17 = vector.load %arg7[%c0_15, %c0_16] : memref<1x128xf32, #tpu.memory_space<vmem>>, vector<1x128xf32>
    %18 = vector.broadcast %17 : vector<1x128xf32> to vector<8x128xf32>
    %19 = arith.addf %16, %18 : vector<8x128xf32>
    %cst_17 = arith.constant 0.000000e+00 : f32
    %20 = vector.broadcast %cst_17 : f32 to vector<8x128xf32>
    %21 = arith.maximumf %19, %20 : vector<8x128xf32>
    %c0_18 = arith.constant 0 : index
    %c0_19 = arith.constant 0 : index
    %22 = vector.load %arg8[%c0_18, %c0_19] : memref<128x128xf32, #tpu.memory_space<vmem>>, vector<128x128xf32>
    %cst_20 = arith.constant dense<0.000000e+00> : vector<8x128xf32>
    %23 = tpu.matmul %21, %22, %cst_20 {dimension_numbers = #tpu.dot_dimension_numbers<[1], [0], [0], [1], [0, 0, 1, 1], [], []>, precision = #tpu.contract_precision<fp32>} : vector<8x128xf32>, vector<128x128xf32>, vector<8x128xf32> -> vector<8x128xf32>
    %c0_21 = arith.constant 0 : index
    %c0_22 = arith.constant 0 : index
    %24 = vector.load %arg9[%c0_21, %c0_22] : memref<1x128xf32, #tpu.memory_space<vmem>>, vector<1x128xf32>
    %25 = vector.broadcast %24 : vector<1x128xf32> to vector<8x128xf32>
    %26 = arith.addf %23, %25 : vector<8x128xf32>
    %cst_23 = arith.constant 0.000000e+00 : f32
    %27 = vector.broadcast %cst_23 : f32 to vector<8x128xf32>
    %28 = arith.maximumf %26, %27 : vector<8x128xf32>
    %c0_24 = arith.constant 0 : index
    %c0_25 = arith.constant 0 : index
    %29 = vector.load %arg10[%c0_24, %c0_25] : memref<8x128xf32, #tpu.memory_space<vmem>>, vector<8x128xf32>
    tpu.vector_store %arg10[%c0_24, %c0_25], %28 {strides = array<i32>} : memref<8x128xf32, #tpu.memory_space<vmem>>, vector<8x128xf32>,
    return
  }
  func.func @transform_0(%arg0: i32) -> (i32, i32) {
    %c0_i32 = arith.constant 0 : i32
    %c0_i32_0 = arith.constant 0 : i32
    return %arg0, %c0_i32 : i32, i32
  }
  func.func @transform_1(%arg0: i32) -> (i32, i32) {
    %c0_i32 = arith.constant 0 : i32
    %c0_i32_0 = arith.constant 0 : i32
    %c0_i32_1 = arith.constant 0 : i32
    return %c0_i32, %c0_i32_0 : i32, i32
  }
  func.func @transform_2(%arg0: i32) -> (i32, i32) {
    %c0_i32 = arith.constant 0 : i32
    %c0_i32_0 = arith.constant 0 : i32
    %c0_i32_1 = arith.constant 0 : i32
    return %c0_i32, %c0_i32_0 : i32, i32
  }
  func.func @transform_3(%arg0: i32) -> (i32, i32) {
    %c0_i32 = arith.constant 0 : i32
    %c0_i32_0 = arith.constant 0 : i32
    %c0_i32_1 = arith.constant 0 : i32
    return %c0_i32, %c0_i32_0 : i32, i32
  }
  func.func @transform_4(%arg0: i32) -> (i32, i32) {
    %c0_i32 = arith.constant 0 : i32
    %c0_i32_0 = arith.constant 0 : i32
    %c0_i32_1 = arith.constant 0 : i32
    return %c0_i32, %c0_i32_0 : i32, i32
  }
  func.func @transform_5(%arg0: i32) -> (i32, i32) {
    %c0_i32 = arith.constant 0 : i32
    %c0_i32_0 = arith.constant 0 : i32
    %c0_i32_1 = arith.constant 0 : i32
    return %c0_i32, %c0_i32_0 : i32, i32
  }
  func.func @transform_6(%arg0: i32) -> (i32, i32) {
    %c0_i32 = arith.constant 0 : i32
    %c0_i32_0 = arith.constant 0 : i32
    %c0_i32_1 = arith.constant 0 : i32
    return %c0_i32, %c0_i32_0 : i32, i32
  }
  func.func @transform_7(%arg0: i32) -> (i32, i32) {
    %c0_i32 = arith.constant 0 : i32
    %c0_i32_0 = arith.constant 0 : i32
    %c0_i32_1 = arith.constant 0 : i32
    return %c0_i32, %c0_i32_0 : i32, i32
  }
  func.func @transform_8(%arg0: i32) -> (i32, i32) {
    %c0_i32 = arith.constant 0 : i32
    %c0_i32_0 = arith.constant 0 : i32
    %c0_i32_1 = arith.constant 0 : i32
    return %c0_i32, %c0_i32_0 : i32, i32
  }
  func.func @transform_9(%arg0: i32) -> (i32, i32) {
    %c0_i32 = arith.constant 0 : i32
    %c0_i32_0 = arith.constant 0 : i32
    return %arg0, %c0_i32 : i32, i32
  }
}

</mosaic_0001>

<llo_original>
// kernel: tpu_custom_call.1
$region0: #{tpu_custom_call.1}
  #allocation0 [shape = 'u32[]', space=smem, size = 0x4, offset = 0x4, fixed_abs, tag = 'smem constant byte address 0x4 - core index']
  #allocation1 [shape = 'u32[72,128]{1,0:T(1,128)}', space=vmem, size = 0x9000, scoped, tag = 'internal scratch']
  %s0 = inlined_call_operand.hbm [shape: f32[16,192], index: 0, kind: input, shape index: {}]
  %s1 = inlined_call_operand.hbm [shape: f32[192,128], index: 1, kind: input, shape index: {}]
  %s2 = inlined_call_operand.vmem [shape: f32[1,128], index: 2, kind: input, shape index: {}]
  %s3 = inlined_call_operand.hbm [shape: f32[128,128], index: 3, kind: input, shape index: {}]
  %s4 = inlined_call_operand.vmem [shape: f32[1,128], index: 4, kind: input, shape index: {}]
  %s5 = inlined_call_operand.hbm [shape: f32[128,128], index: 5, kind: input, shape index: {}]
  %s6 = inlined_call_operand.vmem [shape: f32[1,128], index: 6, kind: input, shape index: {}]
  %s7 = inlined_call_operand.hbm [shape: f32[128,128], index: 7, kind: input, shape index: {}]
  %s8 = inlined_call_operand.vmem [shape: f32[1,128], index: 8, kind: input, shape index: {}]
  %s9 = inlined_call_operand.hbm [shape: f32[16,128], index: 9, kind: output, shape index: {}]
  %s10 = sld [smem:[#allocation0]]
  $region89: #{tpu_custom_call.1} parent=0
    _
  %s12 = ssub.s32 1, %s10
  %s13 = scalar_select 0, %s12, %s10
  $region1: #{tpu_custom_call.1} parent=0
    #allocation2 [shape = 'u8[16384]{0}', space=vmem, size = 0x4000, scoped, tag = 'input window, operand 0']
    #allocation3 [shape = 's32[2]{0}', space=sflag, size = 0x8, scoped, tag = 'scoped memory for tpu_custom_call.1']
    #allocation4 [shape = 's32[2]{0}', space=sflag, size = 0x8, scoped, tag = 'scoped memory for tpu_custom_call.1']
    #allocation5 [shape = 'u8[98304]{0}', space=vmem, size = 0x18000, scoped, tag = 'input window, operand 1, single buffered']
    #allocation6 [shape = 's32[1]{0}', space=sflag, size = 0x4, scoped, tag = 'scoped memory for tpu_custom_call.1']
    #allocation7 [shape = 'u8[65536]{0}', space=vmem, size = 0x10000, scoped, tag = 'input window, operand 3, single buffered']
    #allocation8 [shape = 'u8[65536]{0}', space=vmem, size = 0x10000, scoped, tag = 'input window, operand 5, single buffered']
    #allocation9 [shape = 's32[1]{0}', space=sflag, size = 0x4, scoped, tag = 'scoped memory for tpu_custom_call.1']
    #allocation10 [shape = 'u8[65536]{0}', space=vmem, size = 0x10000, scoped, tag = 'input window, operand 7, single buffered']
    #allocation11 [shape = 'u8[8192]{0}', space=vmem, size = 0x2000, scoped, tag = 'output window, operand 0']
    %14 = vsyncpa [#allocation3], 0
    %s15 = scalar_lea.sflag [#allocation3], 1
    %16 = vsyncpa %s15, 0
    %17 = vsyncpa [#allocation6], 0
    %18 = vsyncpa [#allocation9], 0
    %19 = vsyncpa [#allocation4], 0
    %s20 = scalar_lea.sflag [#allocation4], 1
    %21 = vsyncpa %s20, 0
    loop: start=0, step=1, limit=4
    $region2: #{tpu_custom_call.1} parent=1 // loop_pre_header
      _
    $region3: #{tpu_custom_call.1} parent=1 // loop_header
      %s23 = sphi 0, %s27
      %p24 = scmp.ge.s32.totalorder %s23, 4
      %s33 = sphi 0, %s35
      %s36 = sphi 0, %s33
      %s37 = sphi 0, %s36
      %s53 = sphi 0, %s37
      %s57 = sphi 0, %s57
      %s59 = sphi 0, %s57
      %s60 = sphi 0, %s59
      %s74 = sphi 0, %s60
      %s78 = sphi 0, %s78
      %s80 = sphi 0, %s78
      %s81 = sphi 0, %s80
      %s95 = sphi 0, %s81
      %s99 = sphi 0, %s99
      %s101 = sphi 0, %s99
      %s102 = sphi 0, %s101
      %s116 = sphi 0, %s102
      %s120 = sphi 0, %s120
      %s122 = sphi 0, %s120
      %s123 = sphi 0, %s122
      %s137 = sphi 0, %s123
      %s141 = sphi 0, %s141
      %s143 = sphi 0, %s141
      %s144 = sphi 0, %s143
      %s158 = sphi 0, %s144
      %s162 = sphi 0, %s162
      %s164 = sphi 0, %s162
      %s165 = sphi 0, %s164
      %s179 = sphi 0, %s165
      %s183 = sphi 0, %s183
      %s185 = sphi 0, %s183
      %s186 = sphi 0, %s185
      %s200 = sphi 0, %s186
      %s204 = sphi 0, %s204
      %s206 = sphi 0, %s204
      %s207 = sphi 0, %s206
      %s221 = sphi 0, %s207
      %s227 = sphi 0, %s229
      %s230 = sphi 0, %s227
      %s231 = sphi 0, %s230
      %s247 = sphi 0, %s231
    $region4: #{tpu_custom_call.1} parent=1 // loop_header_branch
      %26 = sbr.rel (%p24) target = $region8
    $region5: #{tpu_custom_call.1} parent=1 // loop_body
      %s28 = ssub.s32 %s23, 1
      %s29 = ssub.s32 %s23, 2
      %s30 = sadd.s32 %s23, 1
      %s31 = ssub.s32 %s23, %s30
      %p32 = scmp.eq.s32.totalorder %s31, 0
      %s34 = sadd.s32 %s33, 1
      %s35 = scalar_select %p32, %s33, %s34
      %p38 = pneg %p32
      %p39 = scmp.eq.s32.totalorder %s23, 1
      %p40 = por %p38, %p39
      %p41 = scmp.ne.s32.totalorder %s33, %s36
      %p42 = scmp.eq.s32.totalorder %s23, 0
      %p43 = por %p41, %p42
      %p44 = scmp.ne.s32.totalorder %s33, %s36
      %p45 = scmp.eq.s32.totalorder %s28, 1
      %p46 = por %p44, %p45
      %p47 = scmp.ne.s32.totalorder %s36, %s37
      %p48 = scmp.eq.s32.totalorder %s28, 0
      %p49 = por %p47, %p48
      %p50 = scmp.ne.s32.totalorder %s36, %s37
      %p51 = scmp.eq.s32.totalorder %s29, 1
      %p52 = por %p50, %p51
      %p54 = scmp.ne.s32.totalorder %s37, %s53
      %p55 = scmp.eq.s32.totalorder %s29, 0
      %p56 = por %p54, %p55
      %s58 = sadd.s32 %s57, 1
      %p61 = scmp.eq.s32.totalorder %s23, 1
      %p62 = scmp.ne.s32.totalorder %s57, %s59
      %p63 = scmp.eq.s32.totalorder %s23, 0
      %p64 = por %p62, %p63
      %p65 = scmp.ne.s32.totalorder %s57, %s59
      %p66 = scmp.eq.s32.totalorder %s28, 1
      %p67 = por %p65, %p66
      %p68 = scmp.ne.s32.totalorder %s59, %s60
      %p69 = scmp.eq.s32.totalorder %s28, 0
      %p70 = por %p68, %p69
      %p71 = scmp.ne.s32.totalorder %s59, %s60
      %p72 = scmp.eq.s32.totalorder %s29, 1
      %p73 = por %p71, %p72
      %p75 = scmp.ne.s32.totalorder %s60, %s74
      %p76 = scmp.eq.s32.totalorder %s29, 0
      %p77 = por %p75, %p76
      %s79 = sadd.s32 %s78, 1
      %p82 = scmp.eq.s32.totalorder %s23, 1
      %p83 = scmp.ne.s32.totalorder %s78, %s80
      %p84 = scmp.eq.s32.totalorder %s23, 0
      %p85 = por %p83, %p84
      %p86 = scmp.ne.s32.totalorder %s78, %s80
      %p87 = scmp.eq.s32.totalorder %s28, 1
      %p88 = por %p86, %p87
      %p89 = scmp.ne.s32.totalorder %s80, %s81
      %p90 = scmp.eq.s32.totalorder %s28, 0
      %p91 = por %p89, %p90
      %p92 = scmp.ne.s32.totalorder %s80, %s81
      %p93 = scmp.eq.s32.totalorder %s29, 1
      %p94 = por %p92, %p93
      %p96 = scmp.ne.s32.totalorder %s81, %s95
      %p97 = scmp.eq.s32.totalorder %s29, 0
      %p98 = por %p96, %p97
      %s100 = sadd.s32 %s99, 1
      %p103 = scmp.eq.s32.totalorder %s23, 1
      %p104 = scmp.ne.s32.totalorder %s99, %s101
      %p105 = scmp.eq.s32.totalorder %s23, 0
      %p106 = por %p104, %p105
      %p107 = scmp.ne.s32.totalorder %s99, %s101
      %p108 = scmp.eq.s32.totalorder %s28, 1
      %p109 = por %p107, %p108
      %p110 = scmp.ne.s32.totalorder %s101, %s102
      %p111 = scmp.eq.s32.totalorder %s28, 0
      %p112 = por %p110, %p111
      %p113 = scmp.ne.s32.totalorder %s101, %s102
      %p114 = scmp.eq.s32.totalorder %s29, 1
      %p115 = por %p113, %p114
      %p117 = scmp.ne.s32.totalorder %s102, %s116
      %p118 = scmp.eq.s32.totalorder %s29, 0
      %p119 = por %p117, %p118
      %s121 = sadd.s32 %s120, 1
      %p124 = scmp.eq.s32.totalorder %s23, 1
      %p125 = scmp.ne.s32.totalorder %s120, %s122
      %p126 = scmp.eq.s32.totalorder %s23, 0
      %p127 = por %p125, %p126
      %p128 = scmp.ne.s32.totalorder %s120, %s122
      %p129 = scmp.eq.s32.totalorder %s28, 1
      %p130 = por %p128, %p129
      %p131 = scmp.ne.s32.totalorder %s122, %s123
      %p132 = scmp.eq.s32.totalorder %s28, 0
      %p133 = por %p131, %p132
      %p134 = scmp.ne.s32.totalorder %s122, %s123
      %p135 = scmp.eq.s32.totalorder %s29, 1
      %p136 = por %p134, %p135
      %p138 = scmp.ne.s32.totalorder %s123, %s137
      %p139 = scmp.eq.s32.totalorder %s29, 0
      %p140 = por %p138, %p139
      %s142 = sadd.s32 %s141, 1
      %p145 = scmp.eq.s32.totalorder %s23, 1
      %p146 = scmp.ne.s32.totalorder %s141, %s143
      %p147 = scmp.eq.s32.totalorder %s23, 0
      %p148 = por %p146, %p147
      %p149 = scmp.ne.s32.totalorder %s141, %s143
      %p150 = scmp.eq.s32.totalorder %s28, 1
      %p151 = por %p149, %p150
      %p152 = scmp.ne.s32.totalorder %s143, %s144
      %p153 = scmp.eq.s32.totalorder %s28, 0
      %p154 = por %p152, %p153
      %p155 = scmp.ne.s32.totalorder %s143, %s144
      %p156 = scmp.eq.s32.totalorder %s29, 1
      %p157 = por %p155, %p156
      %p159 = scmp.ne.s32.totalorder %s144, %s158
      %p160 = scmp.eq.s32.totalorder %s29, 0
      %p161 = por %p159, %p160
      %s163 = sadd.s32 %s162, 1
      %p166 = scmp.eq.s32.totalorder %s23, 1
      %p167 = scmp.ne.s32.totalorder %s162, %s164
      %p168 = scmp.eq.s32.totalorder %s23, 0
      %p169 = por %p167, %p168
      %p170 = scmp.ne.s32.totalorder %s162, %s164
      %p171 = scmp.eq.s32.totalorder %s28, 1
      %p172 = por %p170, %p171
      %p173 = scmp.ne.s32.totalorder %s164, %s165
      %p174 = scmp.eq.s32.totalorder %s28, 0
      %p175 = por %p173, %p174
      %p176 = scmp.ne.s32.totalorder %s164, %s165
      %p177 = scmp.eq.s32.totalorder %s29, 1
      %p178 = por %p176, %p177
      %p180 = scmp.ne.s32.totalorder %s165, %s179
      %p181 = scmp.eq.s32.totalorder %s29, 0
      %p182 = por %p180, %p181
      %s184 = sadd.s32 %s183, 1
      %p187 = scmp.eq.s32.totalorder %s23, 1
      %p188 = scmp.ne.s32.totalorder %s183, %s185
      %p189 = scmp.eq.s32.totalorder %s23, 0
      %p190 = por %p188, %p189
      %p191 = scmp.ne.s32.totalorder %s183, %s185
      %p192 = scmp.eq.s32.totalorder %s28, 1
      %p193 = por %p191, %p192
      %p194 = scmp.ne.s32.totalorder %s185, %s186
      %p195 = scmp.eq.s32.totalorder %s28, 0
      %p196 = por %p194, %p195
      %p197 = scmp.ne.s32.totalorder %s185, %s186
      %p198 = scmp.eq.s32.totalorder %s29, 1
      %p199 = por %p197, %p198
      %p201 = scmp.ne.s32.totalorder %s186, %s200
      %p202 = scmp.eq.s32.totalorder %s29, 0
      %p203 = por %p201, %p202
      %s205 = sadd.s32 %s204, 1
      %p208 = scmp.eq.s32.totalorder %s23, 1
      %p209 = scmp.ne.s32.totalorder %s204, %s206
      %p210 = scmp.eq.s32.totalorder %s23, 0
      %p211 = por %p209, %p210
      %p212 = scmp.ne.s32.totalorder %s204, %s206
      %p213 = scmp.eq.s32.totalorder %s28, 1
      %p214 = por %p212, %p213
      %p215 = scmp.ne.s32.totalorder %s206, %s207
      %p216 = scmp.eq.s32.totalorder %s28, 0
      %p217 = por %p215, %p216
      %p218 = scmp.ne.s32.totalorder %s206, %s207
      %p219 = scmp.eq.s32.totalorder %s29, 1
      %p220 = por %p218, %p219
      %p222 = scmp.ne.s32.totalorder %s207, %s221
      %p223 = scmp.eq.s32.totalorder %s29, 0
      %p224 = por %p222, %p223
      %s225 = ssub.s32 %s23, %s30
      %p226 = scmp.eq.s32.totalorder %s225, 0
      %s228 = sadd.s32 %s227, 1
      %s229 = scalar_select %p226, %s227, %s228
      %p232 = pneg %p226
      %p233 = scmp.eq.s32.totalorder %s23, 1
      %p234 = por %p232, %p233
      %p235 = scmp.ne.s32.totalorder %s227, %s230
      %p236 = scmp.eq.s32.totalorder %s23, 0
      %p237 = por %p235, %p236
      %p238 = scmp.ne.s32.totalorder %s227, %s230
      %p239 = scmp.eq.s32.totalorder %s28, 1
      %p240 = por %p238, %p239
      %p241 = scmp.ne.s32.totalorder %s230, %s231
      %p242 = scmp.eq.s32.totalorder %s28, 0
      %p243 = por %p241, %p242
      %p244 = scmp.ne.s32.totalorder %s230, %s231
      %p245 = scmp.eq.s32.totalorder %s29, 1
      %p246 = por %p244, %p245
      %p248 = scmp.ne.s32.totalorder %s231, %s247
      %p249 = scmp.eq.s32.totalorder %s29, 0
      %p250 = por %p248, %p249
      %p251 = scmp.le.s32.totalorder 1, %s23
      %p252 = scmp.lt.s32.totalorder %s23, 3
      %p253 = pnand %p251, %p252
      %p254 = pneg %p253
      // Predicated region
      $region9: #{tpu_custom_call.1} parent=5 // pred_check
        _
      $region10: #{tpu_custom_call.1} parent=5 // pred_check_branch
        %256 = sbr.rel (%p253) target = $region12
      $region11: #{tpu_custom_call.1} parent=5 // pred_region
        %s257 = ssub.s32 %s23, 1
        // Predicated region
        $region13: #{tpu_custom_call.1} parent=11 // pred_check
          %p258 = pneg %p70
        $region14: #{tpu_custom_call.1} parent=11 // pred_check_branch
          %260 = sbr.rel (%p258) target = $region16
        $region15: #{tpu_custom_call.1} parent=11 // pred_region
          %262 = vsyncadd [#allocation6], 0
          %s263 = sshll.u32 %s1, 4
          %s264 = int_to_ptr.hbm [resolvable:$true] %s263
          %s265 = sshll.u32 [#allocation5], 4
          %s266 = int_to_ptr.vmem [resolvable:$true] %s265
          %271 = dma.hbm_to_vmem [thread:$0]  %s264, 3072, %s266, [#allocation6], 128, 128, 8
        $region16: #{tpu_custom_call.1} parent=11 // pred_fallthru
          _
        // Predicated region
        $region17: #{tpu_custom_call.1} parent=11 // pred_check
          %p272 = pneg %p91
        $region18: #{tpu_custom_call.1} parent=11 // pred_check_branch
          %274 = sbr.rel (%p272) target = $region20
        $region19: #{tpu_custom_call.1} parent=11 // pred_region
          _
        $region20: #{tpu_custom_call.1} parent=11 // pred_fallthru
          _
        // Predicated region
        $region21: #{tpu_custom_call.1} parent=11 // pred_check
          %p275 = pneg %p112
        $region22: #{tpu_custom_call.1} parent=11 // pred_check_branch
          %277 = sbr.rel (%p275) target = $region24
        $region23: #{tpu_custom_call.1} parent=11 // pred_region
          %279 = vsyncadd [#allocation6], 0
          %s280 = sshll.u32 %s3, 4
          %s281 = int_to_ptr.hbm [resolvable:$true] %s280
          %s282 = sshll.u32 [#allocation7], 4
          %s283 = int_to_ptr.vmem [resolvable:$true] %s282
          %288 = dma.hbm_to_vmem [thread:$0]  %s281, 2048, %s283, [#allocation6], 128, 128, 8
        $region24: #{tpu_custom_call.1} parent=11 // pred_fallthru
          _
        // Predicated region
        $region25: #{tpu_custom_call.1} parent=11 // pred_check
          %p289 = pneg %p133
        $region26: #{tpu_custom_call.1} parent=11 // pred_check_branch
          %291 = sbr.rel (%p289) target = $region28
        $region27: #{tpu_custom_call.1} parent=11 // pred_region
          _
        $region28: #{tpu_custom_call.1} parent=11 // pred_fallthru
          _
        // Predicated region
        $region29: #{tpu_custom_call.1} parent=11 // pred_check
          %p292 = pneg %p154
        $region30: #{tpu_custom_call.1} parent=11 // pred_check_branch
          %294 = sbr.rel (%p292) target = $region32
        $region31: #{tpu_custom_call.1} parent=11 // pred_region
          %296 = vsyncadd [#allocation9], 0
          %s297 = sshll.u32 %s5, 4
          %s298 = int_to_ptr.hbm [resolvable:$true] %s297
          %s299 = sshll.u32 [#allocation8], 4
          %s300 = int_to_ptr.vmem [resolvable:$true] %s299
          %305 = dma.hbm_to_vmem [thread:$0]  %s298, 2048, %s300, [#allocation9], 128, 128, 8
        $region32: #{tpu_custom_call.1} parent=11 // pred_fallthru
          _
        // Predicated region
        $region33: #{tpu_custom_call.1} parent=11 // pred_check
          %p306 = pneg %p175
        $region34: #{tpu_custom_call.1} parent=11 // pred_check_branch
          %308 = sbr.rel (%p306) target = $region36
        $region35: #{tpu_custom_call.1} parent=11 // pred_region
          _
        $region36: #{tpu_custom_call.1} parent=11 // pred_fallthru
          _
        // Predicated region
        $region37: #{tpu_custom_call.1} parent=11 // pred_check
          %p309 = pneg %p196
        $region38: #{tpu_custom_call.1} parent=11 // pred_check_branch
          %311 = sbr.rel (%p309) target = $region40
        $region39: #{tpu_custom_call.1} parent=11 // pred_region
          %313 = vsyncadd [#allocation9], 0
          %s314 = sshll.u32 %s7, 4
          %s315 = int_to_ptr.hbm [resolvable:$true] %s314
          %s316 = sshll.u32 [#allocation10], 4
          %s317 = int_to_ptr.vmem [resolvable:$true] %s316
          %322 = dma.hbm_to_vmem [thread:$0]  %s315, 2048, %s317, [#allocation9], 128, 128, 8
        $region40: #{tpu_custom_call.1} parent=11 // pred_fallthru
          _
        // Predicated region
        $region41: #{tpu_custom_call.1} parent=11 // pred_check
          %p323 = pneg %p217
        $region42: #{tpu_custom_call.1} parent=11 // pred_check_branch
          %325 = sbr.rel (%p323) target = $region44
        $region43: #{tpu_custom_call.1} parent=11 // pred_region
          _
        $region44: #{tpu_custom_call.1} parent=11 // pred_fallthru
          _
      $region12: #{tpu_custom_call.1} parent=5 // pred_fallthru
        _
      %p326 = scmp.lt.s32.totalorder %s23, 2
      // Predicated region
      $region45: #{tpu_custom_call.1} parent=5 // pred_check
        %p327 = pneg %p326
      $region46: #{tpu_custom_call.1} parent=5 // pred_check_branch
        %329 = sbr.rel (%p327) target = $region48
      $region47: #{tpu_custom_call.1} parent=5 // pred_region
        // Predicated region
        $region49: #{tpu_custom_call.1} parent=47 // pred_check
          %p330 = pneg %p43
        $region50: #{tpu_custom_call.1} parent=47 // pred_check_branch
          %332 = sbr.rel (%p330) target = $region52
        $region51: #{tpu_custom_call.1} parent=47 // pred_region
          %s333 = sand.u32 %s33, 1
          %s334 = scalar_lea.sflag [#allocation3], %s333
          %s335 = sand.u32 %s33, 1
          %s336 = smul.addr %s335, 16
          %s337 = scalar_lea.vmem [#allocation2], %s336
          %339 = vsyncadd %s334, 0
          %s340 = smul.addr %s23, 2
          %s341 = smul.addr %s340, 8
          %s342 = scalar_lea.hbm %s0, %s341
          %s344 = sshll.u32 %s342, 4
          %s345 = int_to_ptr.hbm [resolvable:$true] %s344
          %s346 = sshll.u32 %s337, 4
          %s347 = int_to_ptr.vmem [resolvable:$true] %s346
          %349 = dma.hbm_to_vmem [thread:$0]  %s345, 256, %s347, %s334
        $region52: #{tpu_custom_call.1} parent=47 // pred_fallthru
          _
      $region48: #{tpu_custom_call.1} parent=5 // pred_fallthru
        _
      %p350 = scmp.le.s32.totalorder 1, %s23
      %p351 = scmp.lt.s32.totalorder %s23, 3
      %p352 = pnand %p350, %p351
      %p353 = pneg %p352
      // Predicated region
      $region53: #{tpu_custom_call.1} parent=5 // pred_check
        _
      $region54: #{tpu_custom_call.1} parent=5 // pred_check_branch
        %355 = sbr.rel (%p352) target = $region56
      $region55: #{tpu_custom_call.1} parent=5 // pred_region
        %s356 = ssub.s32 %s23, 1
        %s357 = sand.u32 %s36, 1
        %s358 = scalar_lea.sflag [#allocation3], %s357
        %s359 = sand.u32 %s36, 1
        %s360 = smul.addr %s359, 16
        %s361 = scalar_lea.vmem [#allocation2], %s360
        // Predicated region
        $region57: #{tpu_custom_call.1} parent=55 // pred_check
          %p362 = pneg %p49
        $region58: #{tpu_custom_call.1} parent=55 // pred_check_branch
          %364 = sbr.rel (%p362) target = $region60
        $region59: #{tpu_custom_call.1} parent=55 // pred_region
          %366 = dma.done %s358, 256
        $region60: #{tpu_custom_call.1} parent=55 // pred_fallthru
          _
        // Predicated region
        $region61: #{tpu_custom_call.1} parent=55 // pred_check
          %p367 = pneg %p70
        $region62: #{tpu_custom_call.1} parent=55 // pred_check_branch
          %369 = sbr.rel (%p367) target = $region64
        $region63: #{tpu_custom_call.1} parent=55 // pred_region
          %371 = dma.done [#allocation6], 3072
        $region64: #{tpu_custom_call.1} parent=55 // pred_fallthru
          _
        // Predicated region
        $region65: #{tpu_custom_call.1} parent=55 // pred_check
          %p372 = pneg %p112
        $region66: #{tpu_custom_call.1} parent=55 // pred_check_branch
          %374 = sbr.rel (%p372) target = $region68
        $region67: #{tpu_custom_call.1} parent=55 // pred_region
          %376 = dma.done [#allocation6], 2048
        $region68: #{tpu_custom_call.1} parent=55 // pred_fallthru
          _
        // Predicated region
        $region69: #{tpu_custom_call.1} parent=55 // pred_check
          %p377 = pneg %p154
        $region70: #{tpu_custom_call.1} parent=55 // pred_check_branch
          %379 = sbr.rel (%p377) target = $region72
        $region71: #{tpu_custom_call.1} parent=55 // pred_region
          %381 = dma.done [#allocation9], 2048
        $region72: #{tpu_custom_call.1} parent=55 // pred_fallthru
          _
        // Predicated region
        $region73: #{tpu_custom_call.1} parent=55 // pred_check
          %p382 = pneg %p196
        $region74: #{tpu_custom_call.1} parent=55 // pred_check_branch
          %384 = sbr.rel (%p382) target = $region76
        $region75: #{tpu_custom_call.1} parent=55 // pred_region
          %386 = dma.done [#allocation9], 2048
        $region76: #{tpu_custom_call.1} parent=55 // pred_fallthru
          _
        %s387 = sand.u32 %s36, 1
        %s388 = scalar_lea.sflag [#allocation3], %s387
        %s389 = sand.u32 %s36, 1
        %s390 = smul.addr %s389, 16
        %s391 = scalar_lea.vmem [#allocation2], %s390
        %p392 = pneg %p49
        %p393 = pneg %p46
        %p394 = pneg %p70
        %p395 = pneg %p67
        %p396 = pneg %p91
        %p397 = pneg %p88
        %p398 = pneg %p112
        %p399 = pneg %p109
        %p400 = pneg %p133
        %p401 = pneg %p130
        %p402 = pneg %p154
        %p403 = pneg %p151
        %p404 = pneg %p175
        %p405 = pneg %p172
        %p406 = pneg %p196
        %p407 = pneg %p193
        %p408 = pneg %p217
        %p409 = pneg %p214
        %p410 = pneg %p243
        %p411 = pneg %p240
        %s412 = sand.u32 %s230, 1
        %s413 = scalar_lea.sflag [#allocation4], %s412
        %s414 = sand.u32 %s230, 1
        %s415 = smul.addr %s414, 8
        %s416 = scalar_lea.vmem [#allocation11], %s415
        %v417 = vld [vmem:[%s361] sm:$0xff]
        %v418 = vld [vmem:[%s361 + $0x8] sm:$0xff]
        %v419 = vld [vmem:[#allocation5] sm:$0xff]
        %v420 = vld [vmem:[#allocation5 + $0x8] sm:$0xff]
        %v421 = vld [vmem:[#allocation5 + $0x10] sm:$0xff]
        %v422 = vld [vmem:[#allocation5 + $0x18] sm:$0xff]
        %v423 = vld [vmem:[#allocation5 + $0x20] sm:$0xff]
        %v424 = vld [vmem:[#allocation5 + $0x28] sm:$0xff]
        %v425 = vld [vmem:[#allocation5 + $0x30] sm:$0xff]
        %v426 = vld [vmem:[#allocation5 + $0x38] sm:$0xff]
        %v427 = vld [vmem:[#allocation5 + $0x40] sm:$0xff]
        %v428 = vld [vmem:[#allocation5 + $0x48] sm:$0xff]
        %v429 = vld [vmem:[#allocation5 + $0x50] sm:$0xff]
        %v430 = vld [vmem:[#allocation5 + $0x58] sm:$0xff]
        %v431 = vld [vmem:[#allocation5 + $0x60] sm:$0xff]
        %v432 = vld [vmem:[#allocation5 + $0x68] sm:$0xff]
        %v433 = vld [vmem:[#allocation5 + $0x70] sm:$0xff]
        %v434 = vld [vmem:[#allocation5 + $0x78] sm:$0xff]
        %v435 = vld [vmem:[#allocation5 + $0x80] sm:$0xff]
        %v436 = vld [vmem:[#allocation5 + $0x88] sm:$0xff]
        %v437 = vld [vmem:[#allocation5 + $0x90] sm:$0xff]
        %v438 = vld [vmem:[#allocation5 + $0x98] sm:$0xff]
        %v439 = vld [vmem:[#allocation5 + $0xa0] sm:$0xff]
        %v440 = vld [vmem:[#allocation5 + $0xa8] sm:$0xff]
        %v441 = vld [vmem:[#allocation5 + $0xb0] sm:$0xff]
        %v442 = vld [vmem:[#allocation5 + $0xb8] sm:$0xff]
        %v443 = vld [vmem:[%s2] sm:$0x1]
        %v445 = vperm.slane %v443, 0
        %vm447 = vcmask 523264
        %v449 = vsel %vm447, %v418, 0
        %v451 = vand.u32 %v434, 4294901760
        %452 = vmatpush.msra.mxu0 %v451
        %v453 = vand.u32 %v433, 4294901760
        %454 = vmatpush.msra.mxu0 %v453
        %v455 = vand.u32 %v432, 4294901760
        %456 = vmatpush.msra.mxu0 %v455
        %v457 = vand.u32 %v431, 4294901760
        %458 = vmatpush.msra.mxu0 %v457
        %v459 = vand.u32 %v430, 4294901760
        %460 = vmatpush.msra.mxu0 %v459
        %v461 = vand.u32 %v429, 4294901760
        %462 = vmatpush.msra.mxu0 %v461
        %v463 = vand.u32 %v428, 4294901760
        %464 = vmatpush.msra.mxu0 %v463
        %v465 = vand.u32 %v427, 4294901760
        %466 = vmatpush.msra.mxu0 %v465
        %v467 = vand.u32 %v426, 4294901760
        %468 = vmatpush.msra.mxu0 %v467
        %v469 = vand.u32 %v425, 4294901760
        %470 = vmatpush.msra.mxu0 %v469
        %v471 = vand.u32 %v424, 4294901760
        %472 = vmatpush.msra.mxu0 %v471
        %v473 = vand.u32 %v423, 4294901760
        %474 = vmatpush.msra.mxu0 %v473
        %v475 = vand.u32 %v422, 4294901760
        %476 = vmatpush.msra.mxu0 %v475
        %v477 = vand.u32 %v421, 4294901760
        %478 = vmatpush.msra.mxu0 %v477
        %v479 = vand.u32 %v420, 4294901760
        %480 = vmatpush.msra.mxu0 %v479
        %v481 = vand.u32 %v419, 4294901760
        %482 = vmatpush.msra.mxu0 %v481
        %v483 = vand.u32 %v417, 4294901760
        %v484 = vsub.f32 %v417, %v483
        %v485 = vand.u32 %v484, 4294901760
        %v486 = vsub.f32 %v484, %v485
        %v487 = vand.u32 %v486, 4294901760
        %488 = vmatmul.f32.gmra.mxu0 %v487
        %v489 = vpop.f32.mrf.mxu0
        %v490 = vadd.f32 %v445, %v489
        %491 = vdwg.mxu0
        %v492 = vand.u32 %v434, 4294901760
        %v493 = vsub.f32 %v434, %v492
        %v494 = vand.u32 %v493, 4294901760
        %v495 = vsub.f32 %v493, %v494
        %v496 = vand.u32 %v495, 4294901760
        %497 = vmatpush.msra.mxu0 %v496
        %v498 = vand.u32 %v433, 4294901760
        %v499 = vsub.f32 %v433, %v498
        %v500 = vand.u32 %v499, 4294901760
        %v501 = vsub.f32 %v499, %v500
        %v502 = vand.u32 %v501, 4294901760
        %503 = vmatpush.msra.mxu0 %v502
        %v504 = vand.u32 %v432, 4294901760
        %v505 = vsub.f32 %v432, %v504
        %v506 = vand.u32 %v505, 4294901760
        %v507 = vsub.f32 %v505, %v506
        %v508 = vand.u32 %v507, 4294901760
        %509 = vmatpush.msra.mxu0 %v508
        %v510 = vand.u32 %v431, 4294901760
        %v511 = vsub.f32 %v431, %v510
        %v512 = vand.u32 %v511, 4294901760
        %v513 = vsub.f32 %v511, %v512
        %v514 = vand.u32 %v513, 4294901760
        %515 = vmatpush.msra.mxu0 %v514
        %v516 = vand.u32 %v430, 4294901760
        %v517 = vsub.f32 %v430, %v516
        %v518 = vand.u32 %v517, 4294901760
        %v519 = vsub.f32 %v517, %v518
        %v520 = vand.u32 %v519, 4294901760
        %521 = vmatpush.msra.mxu0 %v520
        %v522 = vand.u32 %v429, 4294901760
        %v523 = vsub.f32 %v429, %v522
        %v524 = vand.u32 %v523, 4294901760
        %v525 = vsub.f32 %v523, %v524
        %v526 = vand.u32 %v525, 4294901760
        %527 = vmatpush.msra.mxu0 %v526
        %v528 = vand.u32 %v428, 4294901760
        %v529 = vsub.f32 %v428, %v528
        %v530 = vand.u32 %v529, 4294901760
        %v531 = vsub.f32 %v529, %v530
        %v532 = vand.u32 %v531, 4294901760
        %533 = vmatpush.msra.mxu0 %v532
        %v534 = vand.u32 %v427, 4294901760
        %v535 = vsub.f32 %v427, %v534
        %v536 = vand.u32 %v535, 4294901760
        %v537 = vsub.f32 %v535, %v536
        %v538 = vand.u32 %v537, 4294901760
        %539 = vmatpush.msra.mxu0 %v538
        %v540 = vand.u32 %v426, 4294901760
        %v541 = vsub.f32 %v426, %v540
        %v542 = vand.u32 %v541, 4294901760
        %v543 = vsub.f32 %v541, %v542
        %v544 = vand.u32 %v543, 4294901760
        %545 = vmatpush.msra.mxu0 %v544
        %v546 = vand.u32 %v425, 4294901760
        %v547 = vsub.f32 %v425, %v546
        %v548 = vand.u32 %v547, 4294901760
        %v549 = vsub.f32 %v547, %v548
        %v550 = vand.u32 %v549, 4294901760
        %551 = vmatpush.msra.mxu0 %v550
        %v552 = vand.u32 %v424, 4294901760
        %v553 = vsub.f32 %v424, %v552
        %v554 = vand.u32 %v553, 4294901760
        %v555 = vsub.f32 %v553, %v554
        %v556 = vand.u32 %v555, 4294901760
        %557 = vmatpush.msra.mxu0 %v556
        %v558 = vand.u32 %v423, 4294901760
        %v559 = vsub.f32 %v423, %v558
        %v560 = vand.u32 %v559, 4294901760
        %v561 = vsub.f32 %v559, %v560
        %v562 = vand.u32 %v561, 4294901760
        %563 = vmatpush.msra.mxu0 %v562
        %v564 = vand.u32 %v422, 4294901760
        %v565 = vsub.f32 %v422, %v564
        %v566 = vand.u32 %v565, 4294901760
        %v567 = vsub.f32 %v565, %v566
        %v568 = vand.u32 %v567, 4294901760
        %569 = vmatpush.msra.mxu0 %v568
        %v570 = vand.u32 %v421, 4294901760
        %v571 = vsub.f32 %v421, %v570
        %v572 = vand.u32 %v571, 4294901760
        %v573 = vsub.f32 %v571, %v572
        %v574 = vand.u32 %v573, 4294901760
        %575 = vmatpush.msra.mxu0 %v574
        %v576 = vand.u32 %v420, 4294901760
        %v577 = vsub.f32 %v420, %v576
        %v578 = vand.u32 %v577, 4294901760
        %v579 = vsub.f32 %v577, %v578
        %v580 = vand.u32 %v579, 4294901760
        %581 = vmatpush.msra.mxu0 %v580
        %v582 = vand.u32 %v419, 4294901760
        %v583 = vsub.f32 %v419, %v582
        %v584 = vand.u32 %v583, 4294901760
        %v585 = vsub.f32 %v583, %v584
        %v586 = vand.u32 %v585, 4294901760
        %587 = vmatpush.msra.mxu0 %v586
        %v588 = vand.u32 %v417, 4294901760
        %589 = vmatmul.f32.gmra.mxu0 %v588
        %v590 = vpop.f32.mrf.mxu0
        %v591 = vadd.f32 %v490, %v590
        %592 = vdwg.mxu0
        %v593 = vand.u32 %v434, 4294901760
        %v594 = vsub.f32 %v434, %v593
        %595 = vmatpush.msra.mxu0 %v594
        %v596 = vand.u32 %v433, 4294901760
        %v597 = vsub.f32 %v433, %v596
        %598 = vmatpush.msra.mxu0 %v597
        %v599 = vand.u32 %v432, 4294901760
        %v600 = vsub.f32 %v432, %v599
        %601 = vmatpush.msra.mxu0 %v600
        %v602 = vand.u32 %v431, 4294901760
        %v603 = vsub.f32 %v431, %v602
        %604 = vmatpush.msra.mxu0 %v603
        %v605 = vand.u32 %v430, 4294901760
        %v606 = vsub.f32 %v430, %v605
        %607 = vmatpush.msra.mxu0 %v606
        %v608 = vand.u32 %v429, 4294901760
        %v609 = vsub.f32 %v429, %v608
        %610 = vmatpush.msra.mxu0 %v609
        %v611 = vand.u32 %v428, 4294901760
        %v612 = vsub.f32 %v428, %v611
        %613 = vmatpush.msra.mxu0 %v612
        %v614 = vand.u32 %v427, 4294901760
        %v615 = vsub.f32 %v427, %v614
        %616 = vmatpush.msra.mxu0 %v615
        %v617 = vand.u32 %v426, 4294901760
        %v618 = vsub.f32 %v426, %v617
        %619 = vmatpush.msra.mxu0 %v618
        %v620 = vand.u32 %v425, 4294901760
        %v621 = vsub.f32 %v425, %v620
        %622 = vmatpush.msra.mxu0 %v621
        %v623 = vand.u32 %v424, 4294901760
        %v624 = vsub.f32 %v424, %v623
        %625 = vmatpush.msra.mxu0 %v624
        %v626 = vand.u32 %v423, 4294901760
        %v627 = vsub.f32 %v423, %v626
        %628 = vmatpush.msra.mxu0 %v627
        %v629 = vand.u32 %v422, 4294901760
        %v630 = vsub.f32 %v422, %v629
        %631 = vmatpush.msra.mxu0 %v630
        %v632 = vand.u32 %v421, 4294901760
        %v633 = vsub.f32 %v421, %v632
        %634 = vmatpush.msra.mxu0 %v633
        %v635 = vand.u32 %v420, 4294901760
        %v636 = vsub.f32 %v420, %v635
        %637 = vmatpush.msra.mxu0 %v636
        %v638 = vand.u32 %v419, 4294901760
        %v639 = vsub.f32 %v419, %v638
        %640 = vmatpush.msra.mxu0 %v639
        %v641 = vand.u32 %v417, 4294901760
        %v642 = vsub.f32 %v417, %v641
        %643 = vmatmul.f32.gmra.mxu0 %v642
        %v644 = vpop.f32.mrf.mxu0
        %v645 = vadd.f32 %v591, %v644
        %646 = vdwg.mxu0
        %v647 = vand.u32 %v434, 4294901760
        %648 = vmatpush.msra.mxu0 %v647
        %v649 = vand.u32 %v433, 4294901760
        %650 = vmatpush.msra.mxu0 %v649
        %v651 = vand.u32 %v432, 4294901760
        %652 = vmatpush.msra.mxu0 %v651
        %v653 = vand.u32 %v431, 4294901760
        %654 = vmatpush.msra.mxu0 %v653
        %v655 = vand.u32 %v430, 4294901760
        %656 = vmatpush.msra.mxu0 %v655
        %v657 = vand.u32 %v429, 4294901760
        %658 = vmatpush.msra.mxu0 %v657
        %v659 = vand.u32 %v428, 4294901760
        %660 = vmatpush.msra.mxu0 %v659
        %v661 = vand.u32 %v427, 4294901760
        %662 = vmatpush.msra.mxu0 %v661
        %v663 = vand.u32 %v426, 4294901760
        %664 = vmatpush.msra.mxu0 %v663
        %v665 = vand.u32 %v425, 4294901760
        %666 = vmatpush.msra.mxu0 %v665
        %v667 = vand.u32 %v424, 4294901760
        %668 = vmatpush.msra.mxu0 %v667
        %v669 = vand.u32 %v423, 4294901760
        %670 = vmatpush.msra.mxu0 %v669
        %v671 = vand.u32 %v422, 4294901760
        %672 = vmatpush.msra.mxu0 %v671
        %v673 = vand.u32 %v421, 4294901760
        %674 = vmatpush.msra.mxu0 %v673
        %v675 = vand.u32 %v420, 4294901760
        %676 = vmatpush.msra.mxu0 %v675
        %v677 = vand.u32 %v419, 4294901760
        %678 = vmatpush.msra.mxu0 %v677
        %v679 = vand.u32 %v417, 4294901760
        %v680 = vsub.f32 %v417, %v679
        %v681 = vand.u32 %v680, 4294901760
        %682 = vmatmul.f32.gmra.mxu0 %v681
        %v683 = vpop.f32.mrf.mxu0
        %v684 = vadd.f32 %v645, %v683
        %685 = vdwg.mxu0
        %v686 = vand.u32 %v434, 4294901760
        %v687 = vsub.f32 %v434, %v686
        %v688 = vand.u32 %v687, 4294901760
        %689 = vmatpush.msra.mxu0 %v688
        %v690 = vand.u32 %v433, 4294901760
        %v691 = vsub.f32 %v433, %v690
        %v692 = vand.u32 %v691, 4294901760
        %693 = vmatpush.msra.mxu0 %v692
        %v694 = vand.u32 %v432, 4294901760
        %v695 = vsub.f32 %v432, %v694
        %v696 = vand.u32 %v695, 4294901760
        %697 = vmatpush.msra.mxu0 %v696
        %v698 = vand.u32 %v431, 4294901760
        %v699 = vsub.f32 %v431, %v698
        %v700 = vand.u32 %v699, 4294901760
        %701 = vmatpush.msra.mxu0 %v700
        %v702 = vand.u32 %v430, 4294901760
        %v703 = vsub.f32 %v430, %v702
        %v704 = vand.u32 %v703, 4294901760
        %705 = vmatpush.msra.mxu0 %v704
        %v706 = vand.u32 %v429, 4294901760
        %v707 = vsub.f32 %v429, %v706
        %v708 = vand.u32 %v707, 4294901760
        %709 = vmatpush.msra.mxu0 %v708
        %v710 = vand.u32 %v428, 4294901760
        %v711 = vsub.f32 %v428, %v710
        %v712 = vand.u32 %v711, 4294901760
        %713 = vmatpush.msra.mxu0 %v712
        %v714 = vand.u32 %v427, 4294901760
        %v715 = vsub.f32 %v427, %v714
        %v716 = vand.u32 %v715, 4294901760
        %717 = vmatpush.msra.mxu0 %v716
        %v718 = vand.u32 %v426, 4294901760
        %v719 = vsub.f32 %v426, %v718
        %v720 = vand.u32 %v719, 4294901760
        %721 = vmatpush.msra.mxu0 %v720
        %v722 = vand.u32 %v425, 4294901760
        %v723 = vsub.f32 %v425, %v722
        %v724 = vand.u32 %v723, 4294901760
        %725 = vmatpush.msra.mxu0 %v724
        %v726 = vand.u32 %v424, 4294901760
        %v727 = vsub.f32 %v424, %v726
        %v728 = vand.u32 %v727, 4294901760
        %729 = vmatpush.msra.mxu0 %v728
        %v730 = vand.u32 %v423, 4294901760
        %v731 = vsub.f32 %v423, %v730
        %v732 = vand.u32 %v731, 4294901760
        %733 = vmatpush.msra.mxu0 %v732
        %v734 = vand.u32 %v422, 4294901760
        %v735 = vsub.f32 %v422, %v734
        %v736 = vand.u32 %v735, 4294901760
        %737 = vmatpush.msra.mxu0 %v736
        %v738 = vand.u32 %v421, 4294901760
        %v739 = vsub.f32 %v421, %v738
        %v740 = vand.u32 %v739, 4294901760
        %741 = vmatpush.msra.mxu0 %v740
        %v742 = vand.u32 %v420, 4294901760
        %v743 = vsub.f32 %v420, %v742
        %v744 = vand.u32 %v743, 4294901760
        %745 = vmatpush.msra.mxu0 %v744
        %v746 = vand.u32 %v419, 4294901760
        %v747 = vsub.f32 %v419, %v746
        %v748 = vand.u32 %v747, 4294901760
        %749 = vmatpush.msra.mxu0 %v748
        %v750 = vand.u32 %v417, 4294901760
        %751 = vmatmul.f32.gmra.mxu0 %v750
        %v752 = vpop.f32.mrf.mxu0
        %v753 = vadd.f32 %v684, %v752
        %754 = vdwg.mxu0
        %v755 = vand.u32 %v434, 4294901760
        %756 = vmatpush.msra.mxu0 %v755
        %v757 = vand.u32 %v433, 4294901760
        %758 = vmatpush.msra.mxu0 %v757
        %v759 = vand.u32 %v432, 4294901760
        %760 = vmatpush.msra.mxu0 %v759
        %v761 = vand.u32 %v431, 4294901760
        %762 = vmatpush.msra.mxu0 %v761
        %v763 = vand.u32 %v430, 4294901760
        %764 = vmatpush.msra.mxu0 %v763
        %v765 = vand.u32 %v429, 4294901760
        %766 = vmatpush.msra.mxu0 %v765
        %v767 = vand.u32 %v428, 4294901760
        %768 = vmatpush.msra.mxu0 %v767
        %v769 = vand.u32 %v427, 4294901760
        %770 = vmatpush.msra.mxu0 %v769
        %v771 = vand.u32 %v426, 4294901760
        %772 = vmatpush.msra.mxu0 %v771
        %v773 = vand.u32 %v425, 4294901760
        %774 = vmatpush.msra.mxu0 %v773
        %v775 = vand.u32 %v424, 4294901760
        %776 = vmatpush.msra.mxu0 %v775
        %v777 = vand.u32 %v423, 4294901760
        %778 = vmatpush.msra.mxu0 %v777
        %v779 = vand.u32 %v422, 4294901760
        %780 = vmatpush.msra.mxu0 %v779
        %v781 = vand.u32 %v421, 4294901760
        %782 = vmatpush.msra.mxu0 %v781
        %v783 = vand.u32 %v420, 4294901760
        %784 = vmatpush.msra.mxu0 %v783
        %v785 = vand.u32 %v419, 4294901760
        %786 = vmatpush.msra.mxu0 %v785
        %v787 = vand.u32 %v417, 4294901760
        %788 = vmatmul.f32.gmra.mxu0 %v787
        %v789 = vpop.f32.mrf.mxu0
        %v790 = vadd.f32 %v753, %v789
        %791 = vdwg.mxu0
        %792 = vmatpush.msra.mxu0 0.0
        %793 = vmatpush.msra.mxu0 0.0
        %794 = vmatpush.msra.mxu0 0.0
        %795 = vmatpush.msra.mxu0 0.0
        %796 = vmatpush.msra.mxu0 0.0
        %797 = vmatpush.msra.mxu0 0.0
        %798 = vmatpush.msra.mxu0 0.0
        %799 = vmatpush.msra.mxu0 0.0
        %v800 = vand.u32 %v442, 4294901760
        %801 = vmatpush.msra.mxu0 %v800
        %v802 = vand.u32 %v441, 4294901760
        %803 = vmatpush.msra.mxu0 %v802
        %v804 = vand.u32 %v440, 4294901760
        %805 = vmatpush.msra.mxu0 %v804
        %v806 = vand.u32 %v439, 4294901760
        %807 = vmatpush.msra.mxu0 %v806
        %v808 = vand.u32 %v438, 4294901760
        %809 = vmatpush.msra.mxu0 %v808
        %v810 = vand.u32 %v437, 4294901760
        %811 = vmatpush.msra.mxu0 %v810
        %v812 = vand.u32 %v436, 4294901760
        %813 = vmatpush.msra.mxu0 %v812
        %v814 = vand.u32 %v435, 4294901760
        %815 = vmatpush.msra.mxu0 %v814
        %v816 = vand.u32 %v449, 4294901760
        %v817 = vsub.f32 %v449, %v816
        %v818 = vand.u32 %v817, 4294901760
        %v819 = vsub.f32 %v817, %v818
        %v820 = vand.u32 %v819, 4294901760
        %821 = vmatmul.f32.gmra.mxu0 %v820
        %v822 = vpop.f32.mrf.mxu0
        %v823 = vadd.f32 %v790, %v822
        %824 = vdwg.mxu0
        %825 = vmatpush.msra.mxu0 0.0
        %826 = vmatpush.msra.mxu0 0.0
        %827 = vmatpush.msra.mxu0 0.0
        %828 = vmatpush.msra.mxu0 0.0
        %829 = vmatpush.msra.mxu0 0.0
        %830 = vmatpush.msra.mxu0 0.0
        %831 = vmatpush.msra.mxu0 0.0
        %832 = vmatpush.msra.mxu0 0.0
        %v833 = vand.u32 %v442, 4294901760
        %v834 = vsub.f32 %v442, %v833
        %v835 = vand.u32 %v834, 4294901760
        %v836 = vsub.f32 %v834, %v835
        %v837 = vand.u32 %v836, 4294901760
        %838 = vmatpush.msra.mxu0 %v837
        %v839 = vand.u32 %v441, 4294901760
        %v840 = vsub.f32 %v441, %v839
        %v841 = vand.u32 %v840, 4294901760
        %v842 = vsub.f32 %v840, %v841
        %v843 = vand.u32 %v842, 4294901760
        %844 = vmatpush.msra.mxu0 %v843
        %v845 = vand.u32 %v440, 4294901760
        %v846 = vsub.f32 %v440, %v845
        %v847 = vand.u32 %v846, 4294901760
        %v848 = vsub.f32 %v846, %v847
        %v849 = vand.u32 %v848, 4294901760
        %850 = vmatpush.msra.mxu0 %v849
        %v851 = vand.u32 %v439, 4294901760
        %v852 = vsub.f32 %v439, %v851
        %v853 = vand.u32 %v852, 4294901760
        %v854 = vsub.f32 %v852, %v853
        %v855 = vand.u32 %v854, 4294901760
        %856 = vmatpush.msra.mxu0 %v855
        %v857 = vand.u32 %v438, 4294901760
        %v858 = vsub.f32 %v438, %v857
        %v859 = vand.u32 %v858, 4294901760
        %v860 = vsub.f32 %v858, %v859
        %v861 = vand.u32 %v860, 4294901760
        %862 = vmatpush.msra.mxu0 %v861
        %v863 = vand.u32 %v437, 4294901760
        %v864 = vsub.f32 %v437, %v863
        %v865 = vand.u32 %v864, 4294901760
        %v866 = vsub.f32 %v864, %v865
        %v867 = vand.u32 %v866, 4294901760
        %868 = vmatpush.msra.mxu0 %v867
        %v869 = vand.u32 %v436, 4294901760
        %v870 = vsub.f32 %v436, %v869
        %v871 = vand.u32 %v870, 4294901760
        %v872 = vsub.f32 %v870, %v871
        %v873 = vand.u32 %v872, 4294901760
        %874 = vmatpush.msra.mxu0 %v873
        %v875 = vand.u32 %v435, 4294901760
        %v876 = vsub.f32 %v435, %v875
        %v877 = vand.u32 %v876, 4294901760
        %v878 = vsub.f32 %v876, %v877
        %v879 = vand.u32 %v878, 4294901760
        %880 = vmatpush.msra.mxu0 %v879
        %v881 = vand.u32 %v449, 4294901760
        %882 = vmatmul.f32.gmra.mxu0 %v881
        %v883 = vpop.f32.mrf.mxu0
        %v884 = vadd.f32 %v823, %v883
        %885 = vdwg.mxu0
        %886 = vmatpush.msra.mxu0 0.0
        %887 = vmatpush.msra.mxu0 0.0
        %888 = vmatpush.msra.mxu0 0.0
        %889 = vmatpush.msra.mxu0 0.0
        %890 = vmatpush.msra.mxu0 0.0
        %891 = vmatpush.msra.mxu0 0.0
        %892 = vmatpush.msra.mxu0 0.0
        %893 = vmatpush.msra.mxu0 0.0
        %v894 = vand.u32 %v442, 4294901760
        %v895 = vsub.f32 %v442, %v894
        %896 = vmatpush.msra.mxu0 %v895
        %v897 = vand.u32 %v441, 4294901760
        %v898 = vsub.f32 %v441, %v897
        %899 = vmatpush.msra.mxu0 %v898
        %v900 = vand.u32 %v440, 4294901760
        %v901 = vsub.f32 %v440, %v900
        %902 = vmatpush.msra.mxu0 %v901
        %v903 = vand.u32 %v439, 4294901760
        %v904 = vsub.f32 %v439, %v903
        %905 = vmatpush.msra.mxu0 %v904
        %v906 = vand.u32 %v438, 4294901760
        %v907 = vsub.f32 %v438, %v906
        %908 = vmatpush.msra.mxu0 %v907
        %v909 = vand.u32 %v437, 4294901760
        %v910 = vsub.f32 %v437, %v909
        %911 = vmatpush.msra.mxu0 %v910
        %v912 = vand.u32 %v436, 4294901760
        %v913 = vsub.f32 %v436, %v912
        %914 = vmatpush.msra.mxu0 %v913
        %v915 = vand.u32 %v435, 4294901760
        %v916 = vsub.f32 %v435, %v915
        %917 = vmatpush.msra.mxu0 %v916
        %v918 = vand.u32 %v449, 4294901760
        %v919 = vsub.f32 %v449, %v918
        %920 = vmatmul.f32.gmra.mxu0 %v919
        %v921 = vpop.f32.mrf.mxu0
        %v922 = vadd.f32 %v884, %v921
        %923 = vdwg.mxu0
        %924 = vmatpush.msra.mxu0 0.0
        %925 = vmatpush.msra.mxu0 0.0
        %926 = vmatpush.msra.mxu0 0.0
        %927 = vmatpush.msra.mxu0 0.0
        %928 = vmatpush.msra.mxu0 0.0
        %929 = vmatpush.msra.mxu0 0.0
        %930 = vmatpush.msra.mxu0 0.0
        %931 = vmatpush.msra.mxu0 0.0
        %v932 = vand.u32 %v442, 4294901760
        %933 = vmatpush.msra.mxu0 %v932
        %v934 = vand.u32 %v441, 4294901760
        %935 = vmatpush.msra.mxu0 %v934
        %v936 = vand.u32 %v440, 4294901760
        %937 = vmatpush.msra.mxu0 %v936
        %v938 = vand.u32 %v439, 4294901760
        %939 = vmatpush.msra.mxu0 %v938
        %v940 = vand.u32 %v438, 4294901760
        %941 = vmatpush.msra.mxu0 %v940
        %v942 = vand.u32 %v437, 4294901760
        %943 = vmatpush.msra.mxu0 %v942
        %v944 = vand.u32 %v436, 4294901760
        %945 = vmatpush.msra.mxu0 %v944
        %v946 = vand.u32 %v435, 4294901760
        %947 = vmatpush.msra.mxu0 %v946
        %v948 = vand.u32 %v449, 4294901760
        %v949 = vsub.f32 %v449, %v948
        %v950 = vand.u32 %v949, 4294901760
        %951 = vmatmul.f32.gmra.mxu0 %v950
        %v952 = vpop.f32.mrf.mxu0
        %v953 = vadd.f32 %v922, %v952
        %954 = vdwg.mxu0
        %955 = vmatpush.msra.mxu0 0.0
        %956 = vmatpush.msra.mxu0 0.0
        %957 = vmatpush.msra.mxu0 0.0
        %958 = vmatpush.msra.mxu0 0.0
        %959 = vmatpush.msra.mxu0 0.0
        %960 = vmatpush.msra.mxu0 0.0
        %961 = vmatpush.msra.mxu0 0.0
        %962 = vmatpush.msra.mxu0 0.0
        %v963 = vand.u32 %v442, 4294901760
        %v964 = vsub.f32 %v442, %v963
        %v965 = vand.u32 %v964, 4294901760
        %966 = vmatpush.msra.mxu0 %v965
        %v967 = vand.u32 %v441, 4294901760
        %v968 = vsub.f32 %v441, %v967
        %v969 = vand.u32 %v968, 4294901760
        %970 = vmatpush.msra.mxu0 %v969
        %v971 = vand.u32 %v440, 4294901760
        %v972 = vsub.f32 %v440, %v971
        %v973 = vand.u32 %v972, 4294901760
        %974 = vmatpush.msra.mxu0 %v973
        %v975 = vand.u32 %v439, 4294901760
        %v976 = vsub.f32 %v439, %v975
        %v977 = vand.u32 %v976, 4294901760
        %978 = vmatpush.msra.mxu0 %v977
        %v979 = vand.u32 %v438, 4294901760
        %v980 = vsub.f32 %v438, %v979
        %v981 = vand.u32 %v980, 4294901760
        %982 = vmatpush.msra.mxu0 %v981
        %v983 = vand.u32 %v437, 4294901760
        %v984 = vsub.f32 %v437, %v983
        %v985 = vand.u32 %v984, 4294901760
        %986 = vmatpush.msra.mxu0 %v985
        %v987 = vand.u32 %v436, 4294901760
        %v988 = vsub.f32 %v436, %v987
        %v989 = vand.u32 %v988, 4294901760
        %990 = vmatpush.msra.mxu0 %v989
        %v991 = vand.u32 %v435, 4294901760
        %v992 = vsub.f32 %v435, %v991
        %v993 = vand.u32 %v992, 4294901760
        %994 = vmatpush.msra.mxu0 %v993
        %v995 = vand.u32 %v449, 4294901760
        %996 = vmatmul.f32.gmra.mxu0 %v995
        %v997 = vpop.f32.mrf.mxu0
        %v998 = vadd.f32 %v953, %v997
        %999 = vdwg.mxu0
        %1000 = vmatpush.msra.mxu0 0.0
        %1001 = vmatpush.msra.mxu0 0.0
        %1002 = vmatpush.msra.mxu0 0.0
        %1003 = vmatpush.msra.mxu0 0.0
        %1004 = vmatpush.msra.mxu0 0.0
        %1005 = vmatpush.msra.mxu0 0.0
        %1006 = vmatpush.msra.mxu0 0.0
        %1007 = vmatpush.msra.mxu0 0.0
        %v1008 = vand.u32 %v442, 4294901760
        %1009 = vmatpush.msra.mxu0 %v1008
        %v1010 = vand.u32 %v441, 4294901760
        %1011 = vmatpush.msra.mxu0 %v1010
        %v1012 = vand.u32 %v440, 4294901760
        %1013 = vmatpush.msra.mxu0 %v1012
        %v1014 = vand.u32 %v439, 4294901760
        %1015 = vmatpush.msra.mxu0 %v1014
        %v1016 = vand.u32 %v438, 4294901760
        %1017 = vmatpush.msra.mxu0 %v1016
        %v1018 = vand.u32 %v437, 4294901760
        %1019 = vmatpush.msra.mxu0 %v1018
        %v1020 = vand.u32 %v436, 4294901760
        %1021 = vmatpush.msra.mxu0 %v1020
        %v1022 = vand.u32 %v435, 4294901760
        %1023 = vmatpush.msra.mxu0 %v1022
        %v1024 = vand.u32 %v449, 4294901760
        %1025 = vmatmul.f32.gmra.mxu0 %v1024
        %v1026 = vpop.f32.mrf.mxu0
        %v1027 = vadd.f32 %v998, %v1026
        %1028 = vdwg.mxu0
        %v1029 = vmax.f32 %v1027, 0.0
        %v1030 = vld [vmem:[#allocation7] sm:$0xff]
        %v1031 = vld [vmem:[#allocation7 + $0x8] sm:$0xff]
        %v1032 = vld [vmem:[#allocation7 + $0x10] sm:$0xff]
        %v1033 = vld [vmem:[#allocation7 + $0x18] sm:$0xff]
        %v1034 = vld [vmem:[#allocation7 + $0x20] sm:$0xff]
        %v1035 = vld [vmem:[#allocation7 + $0x28] sm:$0xff]
        %v1036 = vld [vmem:[#allocation7 + $0x30] sm:$0xff]
        %v1037 = vld [vmem:[#allocation7 + $0x38] sm:$0xff]
        %v1038 = vld [vmem:[#allocation7 + $0x40] sm:$0xff]
        %v1039 = vld [vmem:[#allocation7 + $0x48] sm:$0xff]
        %v1040 = vld [vmem:[#allocation7 + $0x50] sm:$0xff]
        %v1041 = vld [vmem:[#allocation7 + $0x58] sm:$0xff]
        %v1042 = vld [vmem:[#allocation7 + $0x60] sm:$0xff]
        %v1043 = vld [vmem:[#allocation7 + $0x68] sm:$0xff]
        %v1044 = vld [vmem:[#allocation7 + $0x70] sm:$0xff]
        %v1045 = vld [vmem:[#allocation7 + $0x78] sm:$0xff]
        %v1046 = vld [vmem:[%s4] sm:$0x1]
        %v1048 = vperm.slane %v1046, 0
        %v1050 = vand.u32 %v1045, 4294901760
        %1051 = vmatpush.msra.mxu0 %v1050
        %v1052 = vand.u32 %v1044, 4294901760
        %1053 = vmatpush.msra.mxu0 %v1052
        %v1054 = vand.u32 %v1043, 4294901760
        %1055 = vmatpush.msra.mxu0 %v1054
        %v1056 = vand.u32 %v1042, 4294901760
        %1057 = vmatpush.msra.mxu0 %v1056
        %v1058 = vand.u32 %v1041, 4294901760
        %1059 = vmatpush.msra.mxu0 %v1058
        %v1060 = vand.u32 %v1040, 4294901760
        %1061 = vmatpush.msra.mxu0 %v1060
        %v1062 = vand.u32 %v1039, 4294901760
        %1063 = vmatpush.msra.mxu0 %v1062
        %v1064 = vand.u32 %v1038, 4294901760
        %1065 = vmatpush.msra.mxu0 %v1064
        %v1066 = vand.u32 %v1037, 4294901760
        %1067 = vmatpush.msra.mxu0 %v1066
        %v1068 = vand.u32 %v1036, 4294901760
        %1069 = vmatpush.msra.mxu0 %v1068
        %v1070 = vand.u32 %v1035, 4294901760
        %1071 = vmatpush.msra.mxu0 %v1070
        %v1072 = vand.u32 %v1034, 4294901760
        %1073 = vmatpush.msra.mxu0 %v1072
        %v1074 = vand.u32 %v1033, 4294901760
        %1075 = vmatpush.msra.mxu0 %v1074
        %v1076 = vand.u32 %v1032, 4294901760
        %1077 = vmatpush.msra.mxu0 %v1076
        %v1078 = vand.u32 %v1031, 4294901760
        %1079 = vmatpush.msra.mxu0 %v1078
        %v1080 = vand.u32 %v1030, 4294901760
        %1081 = vmatpush.msra.mxu0 %v1080
        %v1082 = vand.u32 %v1029, 4294901760
        %v1083 = vsub.f32 %v1029, %v1082
        %v1084 = vand.u32 %v1083, 4294901760
        %v1085 = vsub.f32 %v1083, %v1084
        %v1086 = vand.u32 %v1085, 4294901760
        %1087 = vmatmul.f32.gmra.mxu0 %v1086
        %v1088 = vpop.f32.mrf.mxu0
        %v1089 = vadd.f32 %v1048, %v1088
        %1090 = vdwg.mxu0
        %v1091 = vand.u32 %v1045, 4294901760
        %v1092 = vsub.f32 %v1045, %v1091
        %v1093 = vand.u32 %v1092, 4294901760
        %v1094 = vsub.f32 %v1092, %v1093
        %v1095 = vand.u32 %v1094, 4294901760
        %1096 = vmatpush.msra.mxu0 %v1095
        %v1097 = vand.u32 %v1044, 4294901760
        %v1098 = vsub.f32 %v1044, %v1097
        %v1099 = vand.u32 %v1098, 4294901760
        %v1100 = vsub.f32 %v1098, %v1099
        %v1101 = vand.u32 %v1100, 4294901760
        %1102 = vmatpush.msra.mxu0 %v1101
        %v1103 = vand.u32 %v1043, 4294901760
        %v1104 = vsub.f32 %v1043, %v1103
        %v1105 = vand.u32 %v1104, 4294901760
        %v1106 = vsub.f32 %v1104, %v1105
        %v1107 = vand.u32 %v1106, 4294901760
        %1108 = vmatpush.msra.mxu0 %v1107
        %v1109 = vand.u32 %v1042, 4294901760
        %v1110 = vsub.f32 %v1042, %v1109
        %v1111 = vand.u32 %v1110, 4294901760
        %v1112 = vsub.f32 %v1110, %v1111
        %v1113 = vand.u32 %v1112, 4294901760
        %1114 = vmatpush.msra.mxu0 %v1113
        %v1115 = vand.u32 %v1041, 4294901760
        %v1116 = vsub.f32 %v1041, %v1115
        %v1117 = vand.u32 %v1116, 4294901760
        %v1118 = vsub.f32 %v1116, %v1117
        %v1119 = vand.u32 %v1118, 4294901760
        %1120 = vmatpush.msra.mxu0 %v1119
        %v1121 = vand.u32 %v1040, 4294901760
        %v1122 = vsub.f32 %v1040, %v1121
        %v1123 = vand.u32 %v1122, 4294901760
        %v1124 = vsub.f32 %v1122, %v1123
        %v1125 = vand.u32 %v1124, 4294901760
        %1126 = vmatpush.msra.mxu0 %v1125
        %v1127 = vand.u32 %v1039, 4294901760
        %v1128 = vsub.f32 %v1039, %v1127
        %v1129 = vand.u32 %v1128, 4294901760
        %v1130 = vsub.f32 %v1128, %v1129
        %v1131 = vand.u32 %v1130, 4294901760
        %1132 = vmatpush.msra.mxu0 %v1131
        %v1133 = vand.u32 %v1038, 4294901760
        %v1134 = vsub.f32 %v1038, %v1133
        %v1135 = vand.u32 %v1134, 4294901760
        %v1136 = vsub.f32 %v1134, %v1135
        %v1137 = vand.u32 %v1136, 4294901760
        %1138 = vmatpush.msra.mxu0 %v1137
        %v1139 = vand.u32 %v1037, 4294901760
        %v1140 = vsub.f32 %v1037, %v1139
        %v1141 = vand.u32 %v1140, 4294901760
        %v1142 = vsub.f32 %v1140, %v1141
        %v1143 = vand.u32 %v1142, 4294901760
        %1144 = vmatpush.msra.mxu0 %v1143
        %v1145 = vand.u32 %v1036, 4294901760
        %v1146 = vsub.f32 %v1036, %v1145
        %v1147 = vand.u32 %v1146, 4294901760
        %v1148 = vsub.f32 %v1146, %v1147
        %v1149 = vand.u32 %v1148, 4294901760
        %1150 = vmatpush.msra.mxu0 %v1149
        %v1151 = vand.u32 %v1035, 4294901760
        %v1152 = vsub.f32 %v1035, %v1151
        %v1153 = vand.u32 %v1152, 4294901760
        %v1154 = vsub.f32 %v1152, %v1153
        %v1155 = vand.u32 %v1154, 4294901760
        %1156 = vmatpush.msra.mxu0 %v1155
        %v1157 = vand.u32 %v1034, 4294901760
        %v1158 = vsub.f32 %v1034, %v1157
        %v1159 = vand.u32 %v1158, 4294901760
        %v1160 = vsub.f32 %v1158, %v1159
        %v1161 = vand.u32 %v1160, 4294901760
        %1162 = vmatpush.msra.mxu0 %v1161
        %v1163 = vand.u32 %v1033, 4294901760
        %v1164 = vsub.f32 %v1033, %v1163
        %v1165 = vand.u32 %v1164, 4294901760
        %v1166 = vsub.f32 %v1164, %v1165
        %v1167 = vand.u32 %v1166, 4294901760
        %1168 = vmatpush.msra.mxu0 %v1167
        %v1169 = vand.u32 %v1032, 4294901760
        %v1170 = vsub.f32 %v1032, %v1169
        %v1171 = vand.u32 %v1170, 4294901760
        %v1172 = vsub.f32 %v1170, %v1171
        %v1173 = vand.u32 %v1172, 4294901760
        %1174 = vmatpush.msra.mxu0 %v1173
        %v1175 = vand.u32 %v1031, 4294901760
        %v1176 = vsub.f32 %v1031, %v1175
        %v1177 = vand.u32 %v1176, 4294901760
        %v1178 = vsub.f32 %v1176, %v1177
        %v1179 = vand.u32 %v1178, 4294901760
        %1180 = vmatpush.msra.mxu0 %v1179
        %v1181 = vand.u32 %v1030, 4294901760
        %v1182 = vsub.f32 %v1030, %v1181
        %v1183 = vand.u32 %v1182, 4294901760
        %v1184 = vsub.f32 %v1182, %v1183
        %v1185 = vand.u32 %v1184, 4294901760
        %1186 = vmatpush.msra.mxu0 %v1185
        %v1187 = vand.u32 %v1029, 4294901760
        %1188 = vmatmul.f32.gmra.mxu0 %v1187
        %v1189 = vpop.f32.mrf.mxu0
        %v1190 = vadd.f32 %v1089, %v1189
        %1191 = vdwg.mxu0
        %v1192 = vand.u32 %v1045, 4294901760
        %v1193 = vsub.f32 %v1045, %v1192
        %1194 = vmatpush.msra.mxu0 %v1193
        %v1195 = vand.u32 %v1044, 4294901760
        %v1196 = vsub.f32 %v1044, %v1195
        %1197 = vmatpush.msra.mxu0 %v1196
        %v1198 = vand.u32 %v1043, 4294901760
        %v1199 = vsub.f32 %v1043, %v1198
        %1200 = vmatpush.msra.mxu0 %v1199
        %v1201 = vand.u32 %v1042, 4294901760
        %v1202 = vsub.f32 %v1042, %v1201
        %1203 = vmatpush.msra.mxu0 %v1202
        %v1204 = vand.u32 %v1041, 4294901760
        %v1205 = vsub.f32 %v1041, %v1204
        %1206 = vmatpush.msra.mxu0 %v1205
        %v1207 = vand.u32 %v1040, 4294901760
        %v1208 = vsub.f32 %v1040, %v1207
        %1209 = vmatpush.msra.mxu0 %v1208
        %v1210 = vand.u32 %v1039, 4294901760
        %v1211 = vsub.f32 %v1039, %v1210
        %1212 = vmatpush.msra.mxu0 %v1211
        %v1213 = vand.u32 %v1038, 4294901760
        %v1214 = vsub.f32 %v1038, %v1213
        %1215 = vmatpush.msra.mxu0 %v1214
        %v1216 = vand.u32 %v1037, 4294901760
        %v1217 = vsub.f32 %v1037, %v1216
        %1218 = vmatpush.msra.mxu0 %v1217
        %v1219 = vand.u32 %v1036, 4294901760
        %v1220 = vsub.f32 %v1036, %v1219
        %1221 = vmatpush.msra.mxu0 %v1220
        %v1222 = vand.u32 %v1035, 4294901760
        %v1223 = vsub.f32 %v1035, %v1222
        %1224 = vmatpush.msra.mxu0 %v1223
        %v1225 = vand.u32 %v1034, 4294901760
        %v1226 = vsub.f32 %v1034, %v1225
        %1227 = vmatpush.msra.mxu0 %v1226
        %v1228 = vand.u32 %v1033, 4294901760
        %v1229 = vsub.f32 %v1033, %v1228
        %1230 = vmatpush.msra.mxu0 %v1229
        %v1231 = vand.u32 %v1032, 4294901760
        %v1232 = vsub.f32 %v1032, %v1231
        %1233 = vmatpush.msra.mxu0 %v1232
        %v1234 = vand.u32 %v1031, 4294901760
        %v1235 = vsub.f32 %v1031, %v1234
        %1236 = vmatpush.msra.mxu0 %v1235
        %v1237 = vand.u32 %v1030, 4294901760
        %v1238 = vsub.f32 %v1030, %v1237
        %1239 = vmatpush.msra.mxu0 %v1238
        %v1240 = vand.u32 %v1029, 4294901760
        %v1241 = vsub.f32 %v1029, %v1240
        %1242 = vmatmul.f32.gmra.mxu0 %v1241
        %v1243 = vpop.f32.mrf.mxu0
        %v1244 = vadd.f32 %v1190, %v1243
        %1245 = vdwg.mxu0
        %v1246 = vand.u32 %v1045, 4294901760
        %1247 = vmatpush.msra.mxu0 %v1246
        %v1248 = vand.u32 %v1044, 4294901760
        %1249 = vmatpush.msra.mxu0 %v1248
        %v1250 = vand.u32 %v1043, 4294901760
        %1251 = vmatpush.msra.mxu0 %v1250
        %v1252 = vand.u32 %v1042, 4294901760
        %1253 = vmatpush.msra.mxu0 %v1252
        %v1254 = vand.u32 %v1041, 4294901760
        %1255 = vmatpush.msra.mxu0 %v1254
        %v1256 = vand.u32 %v1040, 4294901760
        %1257 = vmatpush.msra.mxu0 %v1256
        %v1258 = vand.u32 %v1039, 4294901760
        %1259 = vmatpush.msra.mxu0 %v1258
        %v1260 = vand.u32 %v1038, 4294901760
        %1261 = vmatpush.msra.mxu0 %v1260
        %v1262 = vand.u32 %v1037, 4294901760
        %1263 = vmatpush.msra.mxu0 %v1262
        %v1264 = vand.u32 %v1036, 4294901760
        %1265 = vmatpush.msra.mxu0 %v1264
        %v1266 = vand.u32 %v1035, 4294901760
        %1267 = vmatpush.msra.mxu0 %v1266
        %v1268 = vand.u32 %v1034, 4294901760
        %1269 = vmatpush.msra.mxu0 %v1268
        %v1270 = vand.u32 %v1033, 4294901760
        %1271 = vmatpush.msra.mxu0 %v1270
        %v1272 = vand.u32 %v1032, 4294901760
        %1273 = vmatpush.msra.mxu0 %v1272
        %v1274 = vand.u32 %v1031, 4294901760
        %1275 = vmatpush.msra.mxu0 %v1274
        %v1276 = vand.u32 %v1030, 4294901760
        %1277 = vmatpush.msra.mxu0 %v1276
        %v1278 = vand.u32 %v1029, 4294901760
        %v1279 = vsub.f32 %v1029, %v1278
        %v1280 = vand.u32 %v1279, 4294901760
        %1281 = vmatmul.f32.gmra.mxu0 %v1280
        %v1282 = vpop.f32.mrf.mxu0
        %v1283 = vadd.f32 %v1244, %v1282
        %1284 = vdwg.mxu0
        %v1285 = vand.u32 %v1045, 4294901760
        %v1286 = vsub.f32 %v1045, %v1285
        %v1287 = vand.u32 %v1286, 4294901760
        %1288 = vmatpush.msra.mxu0 %v1287
        %v1289 = vand.u32 %v1044, 4294901760
        %v1290 = vsub.f32 %v1044, %v1289
        %v1291 = vand.u32 %v1290, 4294901760
        %1292 = vmatpush.msra.mxu0 %v1291
        %v1293 = vand.u32 %v1043, 4294901760
        %v1294 = vsub.f32 %v1043, %v1293
        %v1295 = vand.u32 %v1294, 4294901760
        %1296 = vmatpush.msra.mxu0 %v1295
        %v1297 = vand.u32 %v1042, 4294901760
        %v1298 = vsub.f32 %v1042, %v1297
        %v1299 = vand.u32 %v1298, 4294901760
        %1300 = vmatpush.msra.mxu0 %v1299
        %v1301 = vand.u32 %v1041, 4294901760
        %v1302 = vsub.f32 %v1041, %v1301
        %v1303 = vand.u32 %v1302, 4294901760
        %1304 = vmatpush.msra.mxu0 %v1303
        %v1305 = vand.u32 %v1040, 4294901760
        %v1306 = vsub.f32 %v1040, %v1305
        %v1307 = vand.u32 %v1306, 4294901760
        %1308 = vmatpush.msra.mxu0 %v1307
        %v1309 = vand.u32 %v1039, 4294901760
        %v1310 = vsub.f32 %v1039, %v1309
        %v1311 = vand.u32 %v1310, 4294901760
        %1312 = vmatpush.msra.mxu0 %v1311
        %v1313 = vand.u32 %v1038, 4294901760
        %v1314 = vsub.f32 %v1038, %v1313
        %v1315 = vand.u32 %v1314, 4294901760
        %1316 = vmatpush.msra.mxu0 %v1315
        %v1317 = vand.u32 %v1037, 4294901760
        %v1318 = vsub.f32 %v1037, %v1317
        %v1319 = vand.u32 %v1318, 4294901760
        %1320 = vmatpush.msra.mxu0 %v1319
        %v1321 = vand.u32 %v1036, 4294901760
        %v1322 = vsub.f32 %v1036, %v1321
        %v1323 = vand.u32 %v1322, 4294901760
        %1324 = vmatpush.msra.mxu0 %v1323
        %v1325 = vand.u32 %v1035, 4294901760
        %v1326 = vsub.f32 %v1035, %v1325
        %v1327 = vand.u32 %v1326, 4294901760
        %1328 = vmatpush.msra.mxu0 %v1327
        %v1329 = vand.u32 %v1034, 4294901760
        %v1330 = vsub.f32 %v1034, %v1329
        %v1331 = vand.u32 %v1330, 4294901760
        %1332 = vmatpush.msra.mxu0 %v1331
        %v1333 = vand.u32 %v1033, 4294901760
        %v1334 = vsub.f32 %v1033, %v1333
        %v1335 = vand.u32 %v1334, 4294901760
        %1336 = vmatpush.msra.mxu0 %v1335
        %v1337 = vand.u32 %v1032, 4294901760
        %v1338 = vsub.f32 %v1032, %v1337
        %v1339 = vand.u32 %v1338, 4294901760
        %1340 = vmatpush.msra.mxu0 %v1339
        %v1341 = vand.u32 %v1031, 4294901760
        %v1342 = vsub.f32 %v1031, %v1341
        %v1343 = vand.u32 %v1342, 4294901760
        %1344 = vmatpush.msra.mxu0 %v1343
        %v1345 = vand.u32 %v1030, 4294901760
        %v1346 = vsub.f32 %v1030, %v1345
        %v1347 = vand.u32 %v1346, 4294901760
        %1348 = vmatpush.msra.mxu0 %v1347
        %v1349 = vand.u32 %v1029, 4294901760
        %1350 = vmatmul.f32.gmra.mxu0 %v1349
        %v1351 = vpop.f32.mrf.mxu0
        %v1352 = vadd.f32 %v1283, %v1351
        %1353 = vdwg.mxu0
        %v1354 = vand.u32 %v1045, 4294901760
        %1355 = vmatpush.msra.mxu0 %v1354
        %v1356 = vand.u32 %v1044, 4294901760
        %1357 = vmatpush.msra.mxu0 %v1356
        %v1358 = vand.u32 %v1043, 4294901760
        %1359 = vmatpush.msra.mxu0 %v1358
        %v1360 = vand.u32 %v1042, 4294901760
        %1361 = vmatpush.msra.mxu0 %v1360
        %v1362 = vand.u32 %v1041, 4294901760
        %1363 = vmatpush.msra.mxu0 %v1362
        %v1364 = vand.u32 %v1040, 4294901760
        %1365 = vmatpush.msra.mxu0 %v1364
        %v1366 = vand.u32 %v1039, 4294901760
        %1367 = vmatpush.msra.mxu0 %v1366
        %v1368 = vand.u32 %v1038, 4294901760
        %1369 = vmatpush.msra.mxu0 %v1368
        %v1370 = vand.u32 %v1037, 4294901760
        %1371 = vmatpush.msra.mxu0 %v1370
        %v1372 = vand.u32 %v1036, 4294901760
        %1373 = vmatpush.msra.mxu0 %v1372
        %v1374 = vand.u32 %v1035, 4294901760
        %1375 = vmatpush.msra.mxu0 %v1374
        %v1376 = vand.u32 %v1034, 4294901760
        %1377 = vmatpush.msra.mxu0 %v1376
        %v1378 = vand.u32 %v1033, 4294901760
        %1379 = vmatpush.msra.mxu0 %v1378
        %v1380 = vand.u32 %v1032, 4294901760
        %1381 = vmatpush.msra.mxu0 %v1380
        %v1382 = vand.u32 %v1031, 4294901760
        %1383 = vmatpush.msra.mxu0 %v1382
        %v1384 = vand.u32 %v1030, 4294901760
        %1385 = vmatpush.msra.mxu0 %v1384
        %v1386 = vand.u32 %v1029, 4294901760
        %1387 = vmatmul.f32.gmra.mxu0 %v1386
        %v1388 = vpop.f32.mrf.mxu0
        %v1389 = vadd.f32 %v1352, %v1388
        %1390 = vdwg.mxu0
        %v1391 = vmax.f32 %v1389, 0.0
        %v1392 = vld [vmem:[#allocation8] sm:$0xff]
        %v1393 = vld [vmem:[#allocation8 + $0x8] sm:$0xff]
        %v1394 = vld [vmem:[#allocation8 + $0x10] sm:$0xff]
        %v1395 = vld [vmem:[#allocation8 + $0x18] sm:$0xff]
        %v1396 = vld [vmem:[#allocation8 + $0x20] sm:$0xff]
        %v1397 = vld [vmem:[#allocation8 + $0x28] sm:$0xff]
        %v1398 = vld [vmem:[#allocation8 + $0x30] sm:$0xff]
        %v1399 = vld [vmem:[#allocation8 + $0x38] sm:$0xff]
        %v1400 = vld [vmem:[#allocation8 + $0x40] sm:$0xff]
        %v1401 = vld [vmem:[#allocation8 + $0x48] sm:$0xff]
        %v1402 = vld [vmem:[#allocation8 + $0x50] sm:$0xff]
        %v1403 = vld [vmem:[#allocation8 + $0x58] sm:$0xff]
        %v1404 = vld [vmem:[#allocation8 + $0x60] sm:$0xff]
        %v1405 = vld [vmem:[#allocation8 + $0x68] sm:$0xff]
        %v1406 = vld [vmem:[#allocation8 + $0x70] sm:$0xff]
        %v1407 = vld [vmem:[#allocation8 + $0x78] sm:$0xff]
        %v1408 = vld [vmem:[%s6] sm:$0x1]
        %v1410 = vperm.slane %v1408, 0
        %v1412 = vand.u32 %v1407, 4294901760
        %1413 = vmatpush.msra.mxu0 %v1412
        %v1414 = vand.u32 %v1406, 4294901760
        %1415 = vmatpush.msra.mxu0 %v1414
        %v1416 = vand.u32 %v1405, 4294901760
        %1417 = vmatpush.msra.mxu0 %v1416
        %v1418 = vand.u32 %v1404, 4294901760
        %1419 = vmatpush.msra.mxu0 %v1418
        %v1420 = vand.u32 %v1403, 4294901760
        %1421 = vmatpush.msra.mxu0 %v1420
        %v1422 = vand.u32 %v1402, 4294901760
        %1423 = vmatpush.msra.mxu0 %v1422
        %v1424 = vand.u32 %v1401, 4294901760
        %1425 = vmatpush.msra.mxu0 %v1424
        %v1426 = vand.u32 %v1400, 4294901760
        %1427 = vmatpush.msra.mxu0 %v1426
        %v1428 = vand.u32 %v1399, 4294901760
        %1429 = vmatpush.msra.mxu0 %v1428
        %v1430 = vand.u32 %v1398, 4294901760
        %1431 = vmatpush.msra.mxu0 %v1430
        %v1432 = vand.u32 %v1397, 4294901760
        %1433 = vmatpush.msra.mxu0 %v1432
        %v1434 = vand.u32 %v1396, 4294901760
        %1435 = vmatpush.msra.mxu0 %v1434
        %v1436 = vand.u32 %v1395, 4294901760
        %1437 = vmatpush.msra.mxu0 %v1436
        %v1438 = vand.u32 %v1394, 4294901760
        %1439 = vmatpush.msra.mxu0 %v1438
        %v1440 = vand.u32 %v1393, 4294901760
        %1441 = vmatpush.msra.mxu0 %v1440
        %v1442 = vand.u32 %v1392, 4294901760
        %1443 = vmatpush.msra.mxu0 %v1442
        %v1444 = vand.u32 %v1391, 4294901760
        %v1445 = vsub.f32 %v1391, %v1444
        %v1446 = vand.u32 %v1445, 4294901760
        %v1447 = vsub.f32 %v1445, %v1446
        %v1448 = vand.u32 %v1447, 4294901760
        %1449 = vmatmul.f32.gmra.mxu0 %v1448
        %v1450 = vpop.f32.mrf.mxu0
        %v1451 = vadd.f32 %v1410, %v1450
        %1452 = vdwg.mxu0
        %v1453 = vand.u32 %v1407, 4294901760
        %v1454 = vsub.f32 %v1407, %v1453
        %v1455 = vand.u32 %v1454, 4294901760
        %v1456 = vsub.f32 %v1454, %v1455
        %v1457 = vand.u32 %v1456, 4294901760
        %1458 = vmatpush.msra.mxu0 %v1457
        %v1459 = vand.u32 %v1406, 4294901760
        %v1460 = vsub.f32 %v1406, %v1459
        %v1461 = vand.u32 %v1460, 4294901760
        %v1462 = vsub.f32 %v1460, %v1461
        %v1463 = vand.u32 %v1462, 4294901760
        %1464 = vmatpush.msra.mxu0 %v1463
        %v1465 = vand.u32 %v1405, 4294901760
        %v1466 = vsub.f32 %v1405, %v1465
        %v1467 = vand.u32 %v1466, 4294901760
        %v1468 = vsub.f32 %v1466, %v1467
        %v1469 = vand.u32 %v1468, 4294901760
        %1470 = vmatpush.msra.mxu0 %v1469
        %v1471 = vand.u32 %v1404, 4294901760
        %v1472 = vsub.f32 %v1404, %v1471
        %v1473 = vand.u32 %v1472, 4294901760
        %v1474 = vsub.f32 %v1472, %v1473
        %v1475 = vand.u32 %v1474, 4294901760
        %1476 = vmatpush.msra.mxu0 %v1475
        %v1477 = vand.u32 %v1403, 4294901760
        %v1478 = vsub.f32 %v1403, %v1477
        %v1479 = vand.u32 %v1478, 4294901760
        %v1480 = vsub.f32 %v1478, %v1479
        %v1481 = vand.u32 %v1480, 4294901760
        %1482 = vmatpush.msra.mxu0 %v1481
        %v1483 = vand.u32 %v1402, 4294901760
        %v1484 = vsub.f32 %v1402, %v1483
        %v1485 = vand.u32 %v1484, 4294901760
        %v1486 = vsub.f32 %v1484, %v1485
        %v1487 = vand.u32 %v1486, 4294901760
        %1488 = vmatpush.msra.mxu0 %v1487
        %v1489 = vand.u32 %v1401, 4294901760
        %v1490 = vsub.f32 %v1401, %v1489
        %v1491 = vand.u32 %v1490, 4294901760
        %v1492 = vsub.f32 %v1490, %v1491
        %v1493 = vand.u32 %v1492, 4294901760
        %1494 = vmatpush.msra.mxu0 %v1493
        %v1495 = vand.u32 %v1400, 4294901760
        %v1496 = vsub.f32 %v1400, %v1495
        %v1497 = vand.u32 %v1496, 4294901760
        %v1498 = vsub.f32 %v1496, %v1497
        %v1499 = vand.u32 %v1498, 4294901760
        %1500 = vmatpush.msra.mxu0 %v1499
        %v1501 = vand.u32 %v1399, 4294901760
        %v1502 = vsub.f32 %v1399, %v1501
        %v1503 = vand.u32 %v1502, 4294901760
        %v1504 = vsub.f32 %v1502, %v1503
        %v1505 = vand.u32 %v1504, 4294901760
        %1506 = vmatpush.msra.mxu0 %v1505
        %v1507 = vand.u32 %v1398, 4294901760
        %v1508 = vsub.f32 %v1398, %v1507
        %v1509 = vand.u32 %v1508, 4294901760
        %v1510 = vsub.f32 %v1508, %v1509
        %v1511 = vand.u32 %v1510, 4294901760
        %1512 = vmatpush.msra.mxu0 %v1511
        %v1513 = vand.u32 %v1397, 4294901760
        %v1514 = vsub.f32 %v1397, %v1513
        %v1515 = vand.u32 %v1514, 4294901760
        %v1516 = vsub.f32 %v1514, %v1515
        %v1517 = vand.u32 %v1516, 4294901760
        %1518 = vmatpush.msra.mxu0 %v1517
        %v1519 = vand.u32 %v1396, 4294901760
        %v1520 = vsub.f32 %v1396, %v1519
        %v1521 = vand.u32 %v1520, 4294901760
        %v1522 = vsub.f32 %v1520, %v1521
        %v1523 = vand.u32 %v1522, 4294901760
        %1524 = vmatpush.msra.mxu0 %v1523
        %v1525 = vand.u32 %v1395, 4294901760
        %v1526 = vsub.f32 %v1395, %v1525
        %v1527 = vand.u32 %v1526, 4294901760
        %v1528 = vsub.f32 %v1526, %v1527
        %v1529 = vand.u32 %v1528, 4294901760
        %1530 = vmatpush.msra.mxu0 %v1529
        %v1531 = vand.u32 %v1394, 4294901760
        %v1532 = vsub.f32 %v1394, %v1531
        %v1533 = vand.u32 %v1532, 4294901760
        %v1534 = vsub.f32 %v1532, %v1533
        %v1535 = vand.u32 %v1534, 4294901760
        %1536 = vmatpush.msra.mxu0 %v1535
        %v1537 = vand.u32 %v1393, 4294901760
        %v1538 = vsub.f32 %v1393, %v1537
        %v1539 = vand.u32 %v1538, 4294901760
        %v1540 = vsub.f32 %v1538, %v1539
        %v1541 = vand.u32 %v1540, 4294901760
        %1542 = vmatpush.msra.mxu0 %v1541
        %v1543 = vand.u32 %v1392, 4294901760
        %v1544 = vsub.f32 %v1392, %v1543
        %v1545 = vand.u32 %v1544, 4294901760
        %v1546 = vsub.f32 %v1544, %v1545
        %v1547 = vand.u32 %v1546, 4294901760
        %1548 = vmatpush.msra.mxu0 %v1547
        %v1549 = vand.u32 %v1391, 4294901760
        %1550 = vmatmul.f32.gmra.mxu0 %v1549
        %v1551 = vpop.f32.mrf.mxu0
        %v1552 = vadd.f32 %v1451, %v1551
        %1553 = vdwg.mxu0
        %v1554 = vand.u32 %v1407, 4294901760
        %v1555 = vsub.f32 %v1407, %v1554
        %1556 = vmatpush.msra.mxu0 %v1555
        %v1557 = vand.u32 %v1406, 4294901760
        %v1558 = vsub.f32 %v1406, %v1557
        %1559 = vmatpush.msra.mxu0 %v1558
        %v1560 = vand.u32 %v1405, 4294901760
        %v1561 = vsub.f32 %v1405, %v1560
        %1562 = vmatpush.msra.mxu0 %v1561
        %v1563 = vand.u32 %v1404, 4294901760
        %v1564 = vsub.f32 %v1404, %v1563
        %1565 = vmatpush.msra.mxu0 %v1564
        %v1566 = vand.u32 %v1403, 4294901760
        %v1567 = vsub.f32 %v1403, %v1566
        %1568 = vmatpush.msra.mxu0 %v1567
        %v1569 = vand.u32 %v1402, 4294901760
        %v1570 = vsub.f32 %v1402, %v1569
        %1571 = vmatpush.msra.mxu0 %v1570
        %v1572 = vand.u32 %v1401, 4294901760
        %v1573 = vsub.f32 %v1401, %v1572
        %1574 = vmatpush.msra.mxu0 %v1573
        %v1575 = vand.u32 %v1400, 4294901760
        %v1576 = vsub.f32 %v1400, %v1575
        %1577 = vmatpush.msra.mxu0 %v1576
        %v1578 = vand.u32 %v1399, 4294901760
        %v1579 = vsub.f32 %v1399, %v1578
        %1580 = vmatpush.msra.mxu0 %v1579
        %v1581 = vand.u32 %v1398, 4294901760
        %v1582 = vsub.f32 %v1398, %v1581
        %1583 = vmatpush.msra.mxu0 %v1582
        %v1584 = vand.u32 %v1397, 4294901760
        %v1585 = vsub.f32 %v1397, %v1584
        %1586 = vmatpush.msra.mxu0 %v1585
        %v1587 = vand.u32 %v1396, 4294901760
        %v1588 = vsub.f32 %v1396, %v1587
        %1589 = vmatpush.msra.mxu0 %v1588
        %v1590 = vand.u32 %v1395, 4294901760
        %v1591 = vsub.f32 %v1395, %v1590
        %1592 = vmatpush.msra.mxu0 %v1591
        %v1593 = vand.u32 %v1394, 4294901760
        %v1594 = vsub.f32 %v1394, %v1593
        %1595 = vmatpush.msra.mxu0 %v1594
        %v1596 = vand.u32 %v1393, 4294901760
        %v1597 = vsub.f32 %v1393, %v1596
        %1598 = vmatpush.msra.mxu0 %v1597
        %v1599 = vand.u32 %v1392, 4294901760
        %v1600 = vsub.f32 %v1392, %v1599
        %1601 = vmatpush.msra.mxu0 %v1600
        %v1602 = vand.u32 %v1391, 4294901760
        %v1603 = vsub.f32 %v1391, %v1602
        %1604 = vmatmul.f32.gmra.mxu0 %v1603
        %v1605 = vpop.f32.mrf.mxu0
        %v1606 = vadd.f32 %v1552, %v1605
        %1607 = vdwg.mxu0
        %v1608 = vand.u32 %v1407, 4294901760
        %1609 = vmatpush.msra.mxu0 %v1608
        %v1610 = vand.u32 %v1406, 4294901760
        %1611 = vmatpush.msra.mxu0 %v1610
        %v1612 = vand.u32 %v1405, 4294901760
        %1613 = vmatpush.msra.mxu0 %v1612
        %v1614 = vand.u32 %v1404, 4294901760
        %1615 = vmatpush.msra.mxu0 %v1614
        %v1616 = vand.u32 %v1403, 4294901760
        %1617 = vmatpush.msra.mxu0 %v1616
        %v1618 = vand.u32 %v1402, 4294901760
        %1619 = vmatpush.msra.mxu0 %v1618
        %v1620 = vand.u32 %v1401, 4294901760
        %1621 = vmatpush.msra.mxu0 %v1620
        %v1622 = vand.u32 %v1400, 4294901760
        %1623 = vmatpush.msra.mxu0 %v1622
        %v1624 = vand.u32 %v1399, 4294901760
        %1625 = vmatpush.msra.mxu0 %v1624
        %v1626 = vand.u32 %v1398, 4294901760
        %1627 = vmatpush.msra.mxu0 %v1626
        %v1628 = vand.u32 %v1397, 4294901760
        %1629 = vmatpush.msra.mxu0 %v1628
        %v1630 = vand.u32 %v1396, 4294901760
        %1631 = vmatpush.msra.mxu0 %v1630
        %v1632 = vand.u32 %v1395, 4294901760
        %1633 = vmatpush.msra.mxu0 %v1632
        %v1634 = vand.u32 %v1394, 4294901760
        %1635 = vmatpush.msra.mxu0 %v1634
        %v1636 = vand.u32 %v1393, 4294901760
        %1637 = vmatpush.msra.mxu0 %v1636
        %v1638 = vand.u32 %v1392, 4294901760
        %1639 = vmatpush.msra.mxu0 %v1638
        %v1640 = vand.u32 %v1391, 4294901760
        %v1641 = vsub.f32 %v1391, %v1640
        %v1642 = vand.u32 %v1641, 4294901760
        %1643 = vmatmul.f32.gmra.mxu0 %v1642
        %v1644 = vpop.f32.mrf.mxu0
        %v1645 = vadd.f32 %v1606, %v1644
        %1646 = vdwg.mxu0
        %v1647 = vand.u32 %v1407, 4294901760
        %v1648 = vsub.f32 %v1407, %v1647
        %v1649 = vand.u32 %v1648, 4294901760
        %1650 = vmatpush.msra.mxu0 %v1649
        %v1651 = vand.u32 %v1406, 4294901760
        %v1652 = vsub.f32 %v1406, %v1651
        %v1653 = vand.u32 %v1652, 4294901760
        %1654 = vmatpush.msra.mxu0 %v1653
        %v1655 = vand.u32 %v1405, 4294901760
        %v1656 = vsub.f32 %v1405, %v1655
        %v1657 = vand.u32 %v1656, 4294901760
        %1658 = vmatpush.msra.mxu0 %v1657
        %v1659 = vand.u32 %v1404, 4294901760
        %v1660 = vsub.f32 %v1404, %v1659
        %v1661 = vand.u32 %v1660, 4294901760
        %1662 = vmatpush.msra.mxu0 %v1661
        %v1663 = vand.u32 %v1403, 4294901760
        %v1664 = vsub.f32 %v1403, %v1663
        %v1665 = vand.u32 %v1664, 4294901760
        %1666 = vmatpush.msra.mxu0 %v1665
        %v1667 = vand.u32 %v1402, 4294901760
        %v1668 = vsub.f32 %v1402, %v1667
        %v1669 = vand.u32 %v1668, 4294901760
        %1670 = vmatpush.msra.mxu0 %v1669
        %v1671 = vand.u32 %v1401, 4294901760
        %v1672 = vsub.f32 %v1401, %v1671
        %v1673 = vand.u32 %v1672, 4294901760
        %1674 = vmatpush.msra.mxu0 %v1673
        %v1675 = vand.u32 %v1400, 4294901760
        %v1676 = vsub.f32 %v1400, %v1675
        %v1677 = vand.u32 %v1676, 4294901760
        %1678 = vmatpush.msra.mxu0 %v1677
        %v1679 = vand.u32 %v1399, 4294901760
        %v1680 = vsub.f32 %v1399, %v1679
        %v1681 = vand.u32 %v1680, 4294901760
        %1682 = vmatpush.msra.mxu0 %v1681
        %v1683 = vand.u32 %v1398, 4294901760
        %v1684 = vsub.f32 %v1398, %v1683
        %v1685 = vand.u32 %v1684, 4294901760
        %1686 = vmatpush.msra.mxu0 %v1685
        %v1687 = vand.u32 %v1397, 4294901760
        %v1688 = vsub.f32 %v1397, %v1687
        %v1689 = vand.u32 %v1688, 4294901760
        %1690 = vmatpush.msra.mxu0 %v1689
        %v1691 = vand.u32 %v1396, 4294901760
        %v1692 = vsub.f32 %v1396, %v1691
        %v1693 = vand.u32 %v1692, 4294901760
        %1694 = vmatpush.msra.mxu0 %v1693
        %v1695 = vand.u32 %v1395, 4294901760
        %v1696 = vsub.f32 %v1395, %v1695
        %v1697 = vand.u32 %v1696, 4294901760
        %1698 = vmatpush.msra.mxu0 %v1697
        %v1699 = vand.u32 %v1394, 4294901760
        %v1700 = vsub.f32 %v1394, %v1699
        %v1701 = vand.u32 %v1700, 4294901760
        %1702 = vmatpush.msra.mxu0 %v1701
        %v1703 = vand.u32 %v1393, 4294901760
        %v1704 = vsub.f32 %v1393, %v1703
        %v1705 = vand.u32 %v1704, 4294901760
        %1706 = vmatpush.msra.mxu0 %v1705
        %v1707 = vand.u32 %v1392, 4294901760
        %v1708 = vsub.f32 %v1392, %v1707
        %v1709 = vand.u32 %v1708, 4294901760
        %1710 = vmatpush.msra.mxu0 %v1709
        %v1711 = vand.u32 %v1391, 4294901760
        %1712 = vmatmul.f32.gmra.mxu0 %v1711
        %v1713 = vpop.f32.mrf.mxu0
        %v1714 = vadd.f32 %v1645, %v1713
        %1715 = vdwg.mxu0
        %v1716 = vand.u32 %v1407, 4294901760
        %1717 = vmatpush.msra.mxu0 %v1716
        %v1718 = vand.u32 %v1406, 4294901760
        %1719 = vmatpush.msra.mxu0 %v1718
        %v1720 = vand.u32 %v1405, 4294901760
        %1721 = vmatpush.msra.mxu0 %v1720
        %v1722 = vand.u32 %v1404, 4294901760
        %1723 = vmatpush.msra.mxu0 %v1722
        %v1724 = vand.u32 %v1403, 4294901760
        %1725 = vmatpush.msra.mxu0 %v1724
        %v1726 = vand.u32 %v1402, 4294901760
        %1727 = vmatpush.msra.mxu0 %v1726
        %v1728 = vand.u32 %v1401, 4294901760
        %1729 = vmatpush.msra.mxu0 %v1728
        %v1730 = vand.u32 %v1400, 4294901760
        %1731 = vmatpush.msra.mxu0 %v1730
        %v1732 = vand.u32 %v1399, 4294901760
        %1733 = vmatpush.msra.mxu0 %v1732
        %v1734 = vand.u32 %v1398, 4294901760
        %1735 = vmatpush.msra.mxu0 %v1734
        %v1736 = vand.u32 %v1397, 4294901760
        %1737 = vmatpush.msra.mxu0 %v1736
        %v1738 = vand.u32 %v1396, 4294901760
        %1739 = vmatpush.msra.mxu0 %v1738
        %v1740 = vand.u32 %v1395, 4294901760
        %1741 = vmatpush.msra.mxu0 %v1740
        %v1742 = vand.u32 %v1394, 4294901760
        %1743 = vmatpush.msra.mxu0 %v1742
        %v1744 = vand.u32 %v1393, 4294901760
        %1745 = vmatpush.msra.mxu0 %v1744
        %v1746 = vand.u32 %v1392, 4294901760
        %1747 = vmatpush.msra.mxu0 %v1746
        %v1748 = vand.u32 %v1391, 4294901760
        %1749 = vmatmul.f32.gmra.mxu0 %v1748
        %v1750 = vpop.f32.mrf.mxu0
        %v1751 = vadd.f32 %v1714, %v1750
        %1752 = vdwg.mxu0
        %v1753 = vmax.f32 %v1751, 0.0
        %v1754 = vld [vmem:[#allocation10] sm:$0xff]
        %v1755 = vld [vmem:[#allocation10 + $0x8] sm:$0xff]
        %v1756 = vld [vmem:[#allocation10 + $0x10] sm:$0xff]
        %v1757 = vld [vmem:[#allocation10 + $0x18] sm:$0xff]
        %v1758 = vld [vmem:[#allocation10 + $0x20] sm:$0xff]
        %v1759 = vld [vmem:[#allocation10 + $0x28] sm:$0xff]
        %v1760 = vld [vmem:[#allocation10 + $0x30] sm:$0xff]
        %v1761 = vld [vmem:[#allocation10 + $0x38] sm:$0xff]
        %v1762 = vld [vmem:[#allocation10 + $0x40] sm:$0xff]
        %v1763 = vld [vmem:[#allocation10 + $0x48] sm:$0xff]
        %v1764 = vld [vmem:[#allocation10 + $0x50] sm:$0xff]
        %v1765 = vld [vmem:[#allocation10 + $0x58] sm:$0xff]
        %v1766 = vld [vmem:[#allocation10 + $0x60] sm:$0xff]
        %v1767 = vld [vmem:[#allocation10 + $0x68] sm:$0xff]
        %v1768 = vld [vmem:[#allocation10 + $0x70] sm:$0xff]
        %v1769 = vld [vmem:[#allocation10 + $0x78] sm:$0xff]
        %v1770 = vld [vmem:[%s8] sm:$0x1]
        %v1772 = vperm.slane %v1770, 0
        %v1774 = vand.u32 %v1769, 4294901760
        %1775 = vmatpush.msra.mxu0 %v1774
        %v1776 = vand.u32 %v1768, 4294901760
        %1777 = vmatpush.msra.mxu0 %v1776
        %v1778 = vand.u32 %v1767, 4294901760
        %1779 = vmatpush.msra.mxu0 %v1778
        %v1780 = vand.u32 %v1766, 4294901760
        %1781 = vmatpush.msra.mxu0 %v1780
        %v1782 = vand.u32 %v1765, 4294901760
        %1783 = vmatpush.msra.mxu0 %v1782
        %v1784 = vand.u32 %v1764, 4294901760
        %1785 = vmatpush.msra.mxu0 %v1784
        %v1786 = vand.u32 %v1763, 4294901760
        %1787 = vmatpush.msra.mxu0 %v1786
        %v1788 = vand.u32 %v1762, 4294901760
        %1789 = vmatpush.msra.mxu0 %v1788
        %v1790 = vand.u32 %v1761, 4294901760
        %1791 = vmatpush.msra.mxu0 %v1790
        %v1792 = vand.u32 %v1760, 4294901760
        %1793 = vmatpush.msra.mxu0 %v1792
        %v1794 = vand.u32 %v1759, 4294901760
        %1795 = vmatpush.msra.mxu0 %v1794
        %v1796 = vand.u32 %v1758, 4294901760
        %1797 = vmatpush.msra.mxu0 %v1796
        %v1798 = vand.u32 %v1757, 4294901760
        %1799 = vmatpush.msra.mxu0 %v1798
        %v1800 = vand.u32 %v1756, 4294901760
        %1801 = vmatpush.msra.mxu0 %v1800
        %v1802 = vand.u32 %v1755, 4294901760
        %1803 = vmatpush.msra.mxu0 %v1802
        %v1804 = vand.u32 %v1754, 4294901760
        %1805 = vmatpush.msra.mxu0 %v1804
        %v1806 = vand.u32 %v1753, 4294901760
        %v1807 = vsub.f32 %v1753, %v1806
        %v1808 = vand.u32 %v1807, 4294901760
        %v1809 = vsub.f32 %v1807, %v1808
        %v1810 = vand.u32 %v1809, 4294901760
        %1811 = vmatmul.f32.gmra.mxu0 %v1810
        %v1812 = vpop.f32.mrf.mxu0
        %v1813 = vadd.f32 %v1772, %v1812
        %1814 = vdwg.mxu0
        %v1815 = vand.u32 %v1769, 4294901760
        %v1816 = vsub.f32 %v1769, %v1815
        %v1817 = vand.u32 %v1816, 4294901760
        %v1818 = vsub.f32 %v1816, %v1817
        %v1819 = vand.u32 %v1818, 4294901760
        %1820 = vmatpush.msra.mxu0 %v1819
        %v1821 = vand.u32 %v1768, 4294901760
        %v1822 = vsub.f32 %v1768, %v1821
        %v1823 = vand.u32 %v1822, 4294901760
        %v1824 = vsub.f32 %v1822, %v1823
        %v1825 = vand.u32 %v1824, 4294901760
        %1826 = vmatpush.msra.mxu0 %v1825
        %v1827 = vand.u32 %v1767, 4294901760
        %v1828 = vsub.f32 %v1767, %v1827
        %v1829 = vand.u32 %v1828, 4294901760
        %v1830 = vsub.f32 %v1828, %v1829
        %v1831 = vand.u32 %v1830, 4294901760
        %1832 = vmatpush.msra.mxu0 %v1831
        %v1833 = vand.u32 %v1766, 4294901760
        %v1834 = vsub.f32 %v1766, %v1833
        %v1835 = vand.u32 %v1834, 4294901760
        %v1836 = vsub.f32 %v1834, %v1835
        %v1837 = vand.u32 %v1836, 4294901760
        %1838 = vmatpush.msra.mxu0 %v1837
        %v1839 = vand.u32 %v1765, 4294901760
        %v1840 = vsub.f32 %v1765, %v1839
        %v1841 = vand.u32 %v1840, 4294901760
        %v1842 = vsub.f32 %v1840, %v1841
        %v1843 = vand.u32 %v1842, 4294901760
        %1844 = vmatpush.msra.mxu0 %v1843
        %v1845 = vand.u32 %v1764, 4294901760
        %v1846 = vsub.f32 %v1764, %v1845
        %v1847 = vand.u32 %v1846, 4294901760
        %v1848 = vsub.f32 %v1846, %v1847
        %v1849 = vand.u32 %v1848, 4294901760
        %1850 = vmatpush.msra.mxu0 %v1849
        %v1851 = vand.u32 %v1763, 4294901760
        %v1852 = vsub.f32 %v1763, %v1851
        %v1853 = vand.u32 %v1852, 4294901760
        %v1854 = vsub.f32 %v1852, %v1853
        %v1855 = vand.u32 %v1854, 4294901760
        %1856 = vmatpush.msra.mxu0 %v1855
        %v1857 = vand.u32 %v1762, 4294901760
        %v1858 = vsub.f32 %v1762, %v1857
        %v1859 = vand.u32 %v1858, 4294901760
        %v1860 = vsub.f32 %v1858, %v1859
        %v1861 = vand.u32 %v1860, 4294901760
        %1862 = vmatpush.msra.mxu0 %v1861
        %v1863 = vand.u32 %v1761, 4294901760
        %v1864 = vsub.f32 %v1761, %v1863
        %v1865 = vand.u32 %v1864, 4294901760
        %v1866 = vsub.f32 %v1864, %v1865
        %v1867 = vand.u32 %v1866, 4294901760
        %1868 = vmatpush.msra.mxu0 %v1867
        %v1869 = vand.u32 %v1760, 4294901760
        %v1870 = vsub.f32 %v1760, %v1869
        %v1871 = vand.u32 %v1870, 4294901760
        %v1872 = vsub.f32 %v1870, %v1871
        %v1873 = vand.u32 %v1872, 4294901760
        %1874 = vmatpush.msra.mxu0 %v1873
        %v1875 = vand.u32 %v1759, 4294901760
        %v1876 = vsub.f32 %v1759, %v1875
        %v1877 = vand.u32 %v1876, 4294901760
        %v1878 = vsub.f32 %v1876, %v1877
        %v1879 = vand.u32 %v1878, 4294901760
        %1880 = vmatpush.msra.mxu0 %v1879
        %v1881 = vand.u32 %v1758, 4294901760
        %v1882 = vsub.f32 %v1758, %v1881
        %v1883 = vand.u32 %v1882, 4294901760
        %v1884 = vsub.f32 %v1882, %v1883
        %v1885 = vand.u32 %v1884, 4294901760
        %1886 = vmatpush.msra.mxu0 %v1885
        %v1887 = vand.u32 %v1757, 4294901760
        %v1888 = vsub.f32 %v1757, %v1887
        %v1889 = vand.u32 %v1888, 4294901760
        %v1890 = vsub.f32 %v1888, %v1889
        %v1891 = vand.u32 %v1890, 4294901760
        %1892 = vmatpush.msra.mxu0 %v1891
        %v1893 = vand.u32 %v1756, 4294901760
        %v1894 = vsub.f32 %v1756, %v1893
        %v1895 = vand.u32 %v1894, 4294901760
        %v1896 = vsub.f32 %v1894, %v1895
        %v1897 = vand.u32 %v1896, 4294901760
        %1898 = vmatpush.msra.mxu0 %v1897
        %v1899 = vand.u32 %v1755, 4294901760
        %v1900 = vsub.f32 %v1755, %v1899
        %v1901 = vand.u32 %v1900, 4294901760
        %v1902 = vsub.f32 %v1900, %v1901
        %v1903 = vand.u32 %v1902, 4294901760
        %1904 = vmatpush.msra.mxu0 %v1903
        %v1905 = vand.u32 %v1754, 4294901760
        %v1906 = vsub.f32 %v1754, %v1905
        %v1907 = vand.u32 %v1906, 4294901760
        %v1908 = vsub.f32 %v1906, %v1907
        %v1909 = vand.u32 %v1908, 4294901760
        %1910 = vmatpush.msra.mxu0 %v1909
        %v1911 = vand.u32 %v1753, 4294901760
        %1912 = vmatmul.f32.gmra.mxu0 %v1911
        %v1913 = vpop.f32.mrf.mxu0
        %v1914 = vadd.f32 %v1813, %v1913
        %1915 = vdwg.mxu0
        %v1916 = vand.u32 %v1769, 4294901760
        %v1917 = vsub.f32 %v1769, %v1916
        %1918 = vmatpush.msra.mxu0 %v1917
        %v1919 = vand.u32 %v1768, 4294901760
        %v1920 = vsub.f32 %v1768, %v1919
        %1921 = vmatpush.msra.mxu0 %v1920
        %v1922 = vand.u32 %v1767, 4294901760
        %v1923 = vsub.f32 %v1767, %v1922
        %1924 = vmatpush.msra.mxu0 %v1923
        %v1925 = vand.u32 %v1766, 4294901760
        %v1926 = vsub.f32 %v1766, %v1925
        %1927 = vmatpush.msra.mxu0 %v1926
        %v1928 = vand.u32 %v1765, 4294901760
        %v1929 = vsub.f32 %v1765, %v1928
        %1930 = vmatpush.msra.mxu0 %v1929
        %v1931 = vand.u32 %v1764, 4294901760
        %v1932 = vsub.f32 %v1764, %v1931
        %1933 = vmatpush.msra.mxu0 %v1932
        %v1934 = vand.u32 %v1763, 4294901760
        %v1935 = vsub.f32 %v1763, %v1934
        %1936 = vmatpush.msra.mxu0 %v1935
        %v1937 = vand.u32 %v1762, 4294901760
        %v1938 = vsub.f32 %v1762, %v1937
        %1939 = vmatpush.msra.mxu0 %v1938
        %v1940 = vand.u32 %v1761, 4294901760
        %v1941 = vsub.f32 %v1761, %v1940
        %1942 = vmatpush.msra.mxu0 %v1941
        %v1943 = vand.u32 %v1760, 4294901760
        %v1944 = vsub.f32 %v1760, %v1943
        %1945 = vmatpush.msra.mxu0 %v1944
        %v1946 = vand.u32 %v1759, 4294901760
        %v1947 = vsub.f32 %v1759, %v1946
        %1948 = vmatpush.msra.mxu0 %v1947
        %v1949 = vand.u32 %v1758, 4294901760
        %v1950 = vsub.f32 %v1758, %v1949
        %1951 = vmatpush.msra.mxu0 %v1950
        %v1952 = vand.u32 %v1757, 4294901760
        %v1953 = vsub.f32 %v1757, %v1952
        %1954 = vmatpush.msra.mxu0 %v1953
        %v1955 = vand.u32 %v1756, 4294901760
        %v1956 = vsub.f32 %v1756, %v1955
        %1957 = vmatpush.msra.mxu0 %v1956
        %v1958 = vand.u32 %v1755, 4294901760
        %v1959 = vsub.f32 %v1755, %v1958
        %1960 = vmatpush.msra.mxu0 %v1959
        %v1961 = vand.u32 %v1754, 4294901760
        %v1962 = vsub.f32 %v1754, %v1961
        %1963 = vmatpush.msra.mxu0 %v1962
        %v1964 = vand.u32 %v1753, 4294901760
        %v1965 = vsub.f32 %v1753, %v1964
        %1966 = vmatmul.f32.gmra.mxu0 %v1965
        %v1967 = vpop.f32.mrf.mxu0
        %v1968 = vadd.f32 %v1914, %v1967
        %1969 = vdwg.mxu0
        %v1970 = vand.u32 %v1769, 4294901760
        %1971 = vmatpush.msra.mxu0 %v1970
        %v1972 = vand.u32 %v1768, 4294901760
        %1973 = vmatpush.msra.mxu0 %v1972
        %v1974 = vand.u32 %v1767, 4294901760
        %1975 = vmatpush.msra.mxu0 %v1974
        %v1976 = vand.u32 %v1766, 4294901760
        %1977 = vmatpush.msra.mxu0 %v1976
        %v1978 = vand.u32 %v1765, 4294901760
        %1979 = vmatpush.msra.mxu0 %v1978
        %v1980 = vand.u32 %v1764, 4294901760
        %1981 = vmatpush.msra.mxu0 %v1980
        %v1982 = vand.u32 %v1763, 4294901760
        %1983 = vmatpush.msra.mxu0 %v1982
        %v1984 = vand.u32 %v1762, 4294901760
        %1985 = vmatpush.msra.mxu0 %v1984
        %v1986 = vand.u32 %v1761, 4294901760
        %1987 = vmatpush.msra.mxu0 %v1986
        %v1988 = vand.u32 %v1760, 4294901760
        %1989 = vmatpush.msra.mxu0 %v1988
        %v1990 = vand.u32 %v1759, 4294901760
        %1991 = vmatpush.msra.mxu0 %v1990
        %v1992 = vand.u32 %v1758, 4294901760
        %1993 = vmatpush.msra.mxu0 %v1992
        %v1994 = vand.u32 %v1757, 4294901760
        %1995 = vmatpush.msra.mxu0 %v1994
        %v1996 = vand.u32 %v1756, 4294901760
        %1997 = vmatpush.msra.mxu0 %v1996
        %v1998 = vand.u32 %v1755, 4294901760
        %1999 = vmatpush.msra.mxu0 %v1998
        %v2000 = vand.u32 %v1754, 4294901760
        %2001 = vmatpush.msra.mxu0 %v2000
        %v2002 = vand.u32 %v1753, 4294901760
        %v2003 = vsub.f32 %v1753, %v2002
        %v2004 = vand.u32 %v2003, 4294901760
        %2005 = vmatmul.f32.gmra.mxu0 %v2004
        %v2006 = vpop.f32.mrf.mxu0
        %v2007 = vadd.f32 %v1968, %v2006
        %2008 = vdwg.mxu0
        %v2009 = vand.u32 %v1769, 4294901760
        %v2010 = vsub.f32 %v1769, %v2009
        %v2011 = vand.u32 %v2010, 4294901760
        %2012 = vmatpush.msra.mxu0 %v2011
        %v2013 = vand.u32 %v1768, 4294901760
        %v2014 = vsub.f32 %v1768, %v2013
        %v2015 = vand.u32 %v2014, 4294901760
        %2016 = vmatpush.msra.mxu0 %v2015
        %v2017 = vand.u32 %v1767, 4294901760
        %v2018 = vsub.f32 %v1767, %v2017
        %v2019 = vand.u32 %v2018, 4294901760
        %2020 = vmatpush.msra.mxu0 %v2019
        %v2021 = vand.u32 %v1766, 4294901760
        %v2022 = vsub.f32 %v1766, %v2021
        %v2023 = vand.u32 %v2022, 4294901760
        %2024 = vmatpush.msra.mxu0 %v2023
        %v2025 = vand.u32 %v1765, 4294901760
        %v2026 = vsub.f32 %v1765, %v2025
        %v2027 = vand.u32 %v2026, 4294901760
        %2028 = vmatpush.msra.mxu0 %v2027
        %v2029 = vand.u32 %v1764, 4294901760
        %v2030 = vsub.f32 %v1764, %v2029
        %v2031 = vand.u32 %v2030, 4294901760
        %2032 = vmatpush.msra.mxu0 %v2031
        %v2033 = vand.u32 %v1763, 4294901760
        %v2034 = vsub.f32 %v1763, %v2033
        %v2035 = vand.u32 %v2034, 4294901760
        %2036 = vmatpush.msra.mxu0 %v2035
        %v2037 = vand.u32 %v1762, 4294901760
        %v2038 = vsub.f32 %v1762, %v2037
        %v2039 = vand.u32 %v2038, 4294901760
        %2040 = vmatpush.msra.mxu0 %v2039
        %v2041 = vand.u32 %v1761, 4294901760
        %v2042 = vsub.f32 %v1761, %v2041
        %v2043 = vand.u32 %v2042, 4294901760
        %2044 = vmatpush.msra.mxu0 %v2043
        %v2045 = vand.u32 %v1760, 4294901760
        %v2046 = vsub.f32 %v1760, %v2045
        %v2047 = vand.u32 %v2046, 4294901760
        %2048 = vmatpush.msra.mxu0 %v2047
        %v2049 = vand.u32 %v1759, 4294901760
        %v2050 = vsub.f32 %v1759, %v2049
        %v2051 = vand.u32 %v2050, 4294901760
        %2052 = vmatpush.msra.mxu0 %v2051
        %v2053 = vand.u32 %v1758, 4294901760
        %v2054 = vsub.f32 %v1758, %v2053
        %v2055 = vand.u32 %v2054, 4294901760
        %2056 = vmatpush.msra.mxu0 %v2055
        %v2057 = vand.u32 %v1757, 4294901760
        %v2058 = vsub.f32 %v1757, %v2057
        %v2059 = vand.u32 %v2058, 4294901760
        %2060 = vmatpush.msra.mxu0 %v2059
        %v2061 = vand.u32 %v1756, 4294901760
        %v2062 = vsub.f32 %v1756, %v2061
        %v2063 = vand.u32 %v2062, 4294901760
        %2064 = vmatpush.msra.mxu0 %v2063
        %v2065 = vand.u32 %v1755, 4294901760
        %v2066 = vsub.f32 %v1755, %v2065
        %v2067 = vand.u32 %v2066, 4294901760
        %2068 = vmatpush.msra.mxu0 %v2067
        %v2069 = vand.u32 %v1754, 4294901760
        %v2070 = vsub.f32 %v1754, %v2069
        %v2071 = vand.u32 %v2070, 4294901760
        %2072 = vmatpush.msra.mxu0 %v2071
        %v2073 = vand.u32 %v1753, 4294901760
        %2074 = vmatmul.f32.gmra.mxu0 %v2073
        %v2075 = vpop.f32.mrf.mxu0
        %v2076 = vadd.f32 %v2007, %v2075
        %2077 = vdwg.mxu0
        %v2078 = vand.u32 %v1769, 4294901760
        %2079 = vmatpush.msra.mxu0 %v2078
        %v2080 = vand.u32 %v1768, 4294901760
        %2081 = vmatpush.msra.mxu0 %v2080
        %v2082 = vand.u32 %v1767, 4294901760
        %2083 = vmatpush.msra.mxu0 %v2082
        %v2084 = vand.u32 %v1766, 4294901760
        %2085 = vmatpush.msra.mxu0 %v2084
        %v2086 = vand.u32 %v1765, 4294901760
        %2087 = vmatpush.msra.mxu0 %v2086
        %v2088 = vand.u32 %v1764, 4294901760
        %2089 = vmatpush.msra.mxu0 %v2088
        %v2090 = vand.u32 %v1763, 4294901760
        %2091 = vmatpush.msra.mxu0 %v2090
        %v2092 = vand.u32 %v1762, 4294901760
        %2093 = vmatpush.msra.mxu0 %v2092
        %v2094 = vand.u32 %v1761, 4294901760
        %2095 = vmatpush.msra.mxu0 %v2094
        %v2096 = vand.u32 %v1760, 4294901760
        %2097 = vmatpush.msra.mxu0 %v2096
        %v2098 = vand.u32 %v1759, 4294901760
        %2099 = vmatpush.msra.mxu0 %v2098
        %v2100 = vand.u32 %v1758, 4294901760
        %2101 = vmatpush.msra.mxu0 %v2100
        %v2102 = vand.u32 %v1757, 4294901760
        %2103 = vmatpush.msra.mxu0 %v2102
        %v2104 = vand.u32 %v1756, 4294901760
        %2105 = vmatpush.msra.mxu0 %v2104
        %v2106 = vand.u32 %v1755, 4294901760
        %2107 = vmatpush.msra.mxu0 %v2106
        %v2108 = vand.u32 %v1754, 4294901760
        %2109 = vmatpush.msra.mxu0 %v2108
        %v2110 = vand.u32 %v1753, 4294901760
        %2111 = vmatmul.f32.gmra.mxu0 %v2110
        %v2112 = vpop.f32.mrf.mxu0
        %v2113 = vadd.f32 %v2076, %v2112
        %2114 = vdwg.mxu0
        %v2115 = vmax.f32 %v2113, 0.0
        %2116 = vst [vmem:[%s416] sm:$0xff] %v2115
        %s2117 = sand.u32 %s230, 1
        %s2118 = scalar_lea.sflag [#allocation4], %s2117
        %s2119 = sand.u32 %s230, 1
        %s2120 = smul.addr %s2119, 8
        %s2121 = scalar_lea.vmem [#allocation11], %s2120
        // Predicated region
        $region77: #{tpu_custom_call.1} parent=55 // pred_check
          %p2122 = pneg %p240
        $region78: #{tpu_custom_call.1} parent=55 // pred_check_branch
          %2124 = sbr.rel (%p2122) target = $region80
        $region79: #{tpu_custom_call.1} parent=55 // pred_region
          %2126 = vsyncadd %s2118, 0
          %s2127 = smul.addr %s28, 8
          %s2128 = scalar_lea.hbm %s9, %s2127
          %s2130 = sshll.u32 %s2121, 4
          %s2131 = int_to_ptr.vmem [resolvable:$true] %s2130
          %s2132 = sshll.u32 %s2128, 4
          %s2133 = int_to_ptr.hbm [resolvable:$true] %s2132
          %2135 = dma.vmem_to_hbm [thread:$0]  %s2131, 128, %s2133, %s2118
        $region80: #{tpu_custom_call.1} parent=55 // pred_fallthru
          _
      $region56: #{tpu_custom_call.1} parent=5 // pred_fallthru
        _
      %p2136 = scmp.le.s32.totalorder 2, %s23
      // Predicated region
      $region81: #{tpu_custom_call.1} parent=5 // pred_check
        %p2137 = pneg %p2136
      $region82: #{tpu_custom_call.1} parent=5 // pred_check_branch
        %2139 = sbr.rel (%p2137) target = $region84
      $region83: #{tpu_custom_call.1} parent=5 // pred_region
        %s2140 = ssub.s32 %s23, 2
        // Predicated region
        $region85: #{tpu_custom_call.1} parent=83 // pred_check
          %p2141 = pneg %p246
        $region86: #{tpu_custom_call.1} parent=83 // pred_check_branch
          %2143 = sbr.rel (%p2141) target = $region88
        $region87: #{tpu_custom_call.1} parent=83 // pred_region
          %s2144 = sand.u32 %s231, 1
          %s2145 = scalar_lea.sflag [#allocation4], %s2144
          %s2146 = sand.u32 %s231, 1
          %s2147 = smul.addr %s2146, 8
          %s2148 = scalar_lea.vmem [#allocation11], %s2147
          %2150 = dma.done %s2145, 128
        $region88: #{tpu_custom_call.1} parent=83 // pred_fallthru
          _
      $region84: #{tpu_custom_call.1} parent=5 // pred_fallthru
        _
    $region6: #{tpu_custom_call.1} parent=1 // loop_footer
      %s27 = sadd.s32 1, %s23
    $region7: #{tpu_custom_call.1} parent=1 // loop_footer_branch
      %22 = sbr.rel target = $region3
    $region8: #{tpu_custom_call.1} parent=1 // loop_exit
      _
    %2151 = vsyncpa [#allocation3], 1
    %s2152 = scalar_lea.sflag [#allocation3], 1
    %2153 = vsyncpa %s2152, 1
    %2154 = vsyncpa [#allocation6], 1
    %2155 = vsyncpa [#allocation9], 1
    %2156 = vsyncpa [#allocation4], 1
    %s2157 = scalar_lea.sflag [#allocation4], 1
    %2158 = vsyncpa %s2157, 1

// kernel: tpu_custom_call.1
$region0: #{tpu_custom_call.1}
  #allocation0 [shape = 'u32[]', space=smem, size = 0x4, offset = 0x4, fixed_abs, tag = 'smem constant byte address 0x4 - core index']
  #allocation1 [shape = 'u32[72,128]{1,0:T(1,128)}', space=vmem, size = 0x9000, scoped, tag = 'internal scratch']
  %s0 = inlined_call_operand.hbm [shape: f32[16,192], index: 0, kind: input, shape index: {}]
  %s1 = inlined_call_operand.hbm [shape: f32[192,128], index: 1, kind: input, shape index: {}]
  %s2 = inlined_call_operand.vmem [shape: f32[1,128], index: 2, kind: input, shape index: {}]
  %s3 = inlined_call_operand.hbm [shape: f32[128,128], index: 3, kind: input, shape index: {}]
  %s4 = inlined_call_operand.vmem [shape: f32[1,128], index: 4, kind: input, shape index: {}]
  %s5 = inlined_call_operand.hbm [shape: f32[128,128], index: 5, kind: input, shape index: {}]
  %s6 = inlined_call_operand.vmem [shape: f32[1,128], index: 6, kind: input, shape index: {}]
  %s7 = inlined_call_operand.hbm [shape: f32[128,128], index: 7, kind: input, shape index: {}]
  %s8 = inlined_call_operand.vmem [shape: f32[1,128], index: 8, kind: input, shape index: {}]
  %s9 = inlined_call_operand.hbm [shape: f32[16,128], index: 9, kind: output, shape index: {}]
  %s10 = sld [smem:[#allocation0]]
  $region89: #{tpu_custom_call.1} parent=0
    _
  %s12 = ssub.s32 1, %s10
  %s13 = scalar_select 0, %s12, %s10
  $region1: #{tpu_custom_call.1} parent=0
    #allocation2 [shape = 'u8[16384]{0}', space=vmem, size = 0x4000, scoped, tag = 'input window, operand 0']
    #allocation3 [shape = 's32[2]{0}', space=sflag, size = 0x8, scoped, tag = 'scoped memory for tpu_custom_call.1']
    #allocation4 [shape = 's32[2]{0}', space=sflag, size = 0x8, scoped, tag = 'scoped memory for tpu_custom_call.1']
    #allocation5 [shape = 'u8[98304]{0}', space=vmem, size = 0x18000, scoped, tag = 'input window, operand 1, single buffered']
    #allocation6 [shape = 's32[1]{0}', space=sflag, size = 0x4, scoped, tag = 'scoped memory for tpu_custom_call.1']
    #allocation7 [shape = 'u8[65536]{0}', space=vmem, size = 0x10000, scoped, tag = 'input window, operand 3, single buffered']
    #allocation8 [shape = 'u8[65536]{0}', space=vmem, size = 0x10000, scoped, tag = 'input window, operand 5, single buffered']
    #allocation9 [shape = 's32[1]{0}', space=sflag, size = 0x4, scoped, tag = 'scoped memory for tpu_custom_call.1']
    #allocation10 [shape = 'u8[65536]{0}', space=vmem, size = 0x10000, scoped, tag = 'input window, operand 7, single buffered']
    #allocation11 [shape = 'u8[8192]{0}', space=vmem, size = 0x2000, scoped, tag = 'output window, operand 0']
    %14 = vsyncpa [#allocation3], 0
    %s15 = scalar_lea.sflag [#allocation3], 1
    %16 = vsyncpa %s15, 0
    %17 = vsyncpa [#allocation6], 0
    %18 = vsyncpa [#allocation9], 0
    %19 = vsyncpa [#allocation4], 0
    %s20 = scalar_lea.sflag [#allocation4], 1
    %21 = vsyncpa %s20, 0
    loop: start=0, step=1, limit=4
    $region2: #{tpu_custom_call.1} parent=1 // loop_pre_header
      _
    $region3: #{tpu_custom_call.1} parent=1 // loop_header
      %s23 = sphi 0, %s27
      %p24 = scmp.ge.s32.totalorder %s23, 4
      %s33 = sphi 0, %s35
      %s36 = sphi 0, %s33
      %s37 = sphi 0, %s36
      %s53 = sphi 0, %s37
      %s57 = sphi 0, %s57
      %s59 = sphi 0, %s57
      %s60 = sphi 0, %s59
      %s74 = sphi 0, %s60
      %s78 = sphi 0, %s78
      %s80 = sphi 0, %s78
      %s81 = sphi 0, %s80
      %s95 = sphi 0, %s81
      %s99 = sphi 0, %s99
      %s101 = sphi 0, %s99
      %s102 = sphi 0, %s101
      %s116 = sphi 0, %s102
      %s120 = sphi 0, %s120
      %s122 = sphi 0, %s120
      %s123 = sphi 0, %s122
      %s137 = sphi 0, %s123
      %s141 = sphi 0, %s141
      %s143 = sphi 0, %s141
      %s144 = sphi 0, %s143
      %s158 = sphi 0, %s144
      %s162 = sphi 0, %s162
      %s164 = sphi 0, %s162
      %s165 = sphi 0, %s164
      %s179 = sphi 0, %s165
      %s183 = sphi 0, %s183
      %s185 = sphi 0, %s183
      %s186 = sphi 0, %s185
      %s200 = sphi 0, %s186
      %s204 = sphi 0, %s204
      %s206 = sphi 0, %s204
      %s207 = sphi 0, %s206
      %s221 = sphi 0, %s207
      %s227 = sphi 0, %s229
      %s230 = sphi 0, %s227
      %s231 = sphi 0, %s230
      %s247 = sphi 0, %s231
    $region4: #{tpu_custom_call.1} parent=1 // loop_header_branch
      %26 = sbr.rel (%p24) target = $region8
    $region5: #{tpu_custom_call.1} parent=1 // loop_body
      %s28 = ssub.s32 %s23, 1
      %s29 = ssub.s32 %s23, 2
      %s30 = sadd.s32 %s23, 1
      %s31 = ssub.s32 %s23, %s30
      %p32 = scmp.eq.s32.totalorder %s31, 0
      %s34 = sadd.s32 %s33, 1
      %s35 = scalar_select %p32, %s33, %s34
      %p38 = pneg %p32
      %p39 = scmp.eq.s32.totalorder %s23, 1
      %p40 = por %p38, %p39
      %p41 = scmp.ne.s32.totalorder %s33, %s36
      %p42 = scmp.eq.s32.totalorder %s23, 0
      %p43 = por %p41, %p42
      %p44 = scmp.ne.s32.totalorder %s33, %s36
      %p45 = scmp.eq.s32.totalorder %s28, 1
      %p46 = por %p44, %p45
      %p47 = scmp.ne.s32.totalorder %s36, %s37
      %p48 = scmp.eq.s32.totalorder %s28, 0
      %p49 = por %p47, %p48
      %p50 = scmp.ne.s32.totalorder %s36, %s37
      %p51 = scmp.eq.s32.totalorder %s29, 1
      %p52 = por %p50, %p51
      %p54 = scmp.ne.s32.totalorder %s37, %s53
      %p55 = scmp.eq.s32.totalorder %s29, 0
      %p56 = por %p54, %p55
      %s58 = sadd.s32 %s57, 1
      %p61 = scmp.eq.s32.totalorder %s23, 1
      %p62 = scmp.ne.s32.totalorder %s57, %s59
      %p63 = scmp.eq.s32.totalorder %s23, 0
      %p64 = por %p62, %p63
      %p65 = scmp.ne.s32.totalorder %s57, %s59
      %p66 = scmp.eq.s32.totalorder %s28, 1
      %p67 = por %p65, %p66
      %p68 = scmp.ne.s32.totalorder %s59, %s60
      %p69 = scmp.eq.s32.totalorder %s28, 0
      %p70 = por %p68, %p69
      %p71 = scmp.ne.s32.totalorder %s59, %s60
      %p72 = scmp.eq.s32.totalorder %s29, 1
      %p73 = por %p71, %p72
      %p75 = scmp.ne.s32.totalorder %s60, %s74
      %p76 = scmp.eq.s32.totalorder %s29, 0
      %p77 = por %p75, %p76
      %s79 = sadd.s32 %s78, 1
      %p82 = scmp.eq.s32.totalorder %s23, 1
      %p83 = scmp.ne.s32.totalorder %s78, %s80
      %p84 = scmp.eq.s32.totalorder %s23, 0
      %p85 = por %p83, %p84
      %p86 = scmp.ne.s32.totalorder %s78, %s80
      %p87 = scmp.eq.s32.totalorder %s28, 1
      %p88 = por %p86, %p87
      %p89 = scmp.ne.s32.totalorder %s80, %s81
      %p90 = scmp.eq.s32.totalorder %s28, 0
      %p91 = por %p89, %p90
      %p92 = scmp.ne.s32.totalorder %s80, %s81
      %p93 = scmp.eq.s32.totalorder %s29, 1
      %p94 = por %p92, %p93
      %p96 = scmp.ne.s32.totalorder %s81, %s95
      %p97 = scmp.eq.s32.totalorder %s29, 0
      %p98 = por %p96, %p97
      %s100 = sadd.s32 %s99, 1
      %p103 = scmp.eq.s32.totalorder %s23, 1
      %p104 = scmp.ne.s32.totalorder %s99, %s101
      %p105 = scmp.eq.s32.totalorder %s23, 0
      %p106 = por %p104, %p105
      %p107 = scmp.ne.s32.totalorder %s99, %s101
      %p108 = scmp.eq.s32.totalorder %s28, 1
      %p109 = por %p107, %p108
      %p110 = scmp.ne.s32.totalorder %s101, %s102
      %p111 = scmp.eq.s32.totalorder %s28, 0
      %p112 = por %p110, %p111
      %p113 = scmp.ne.s32.totalorder %s101, %s102
      %p114 = scmp.eq.s32.totalorder %s29, 1
      %p115 = por %p113, %p114
      %p117 = scmp.ne.s32.totalorder %s102, %s116
      %p118 = scmp.eq.s32.totalorder %s29, 0
      %p119 = por %p117, %p118
      %s121 = sadd.s32 %s120, 1
      %p124 = scmp.eq.s32.totalorder %s23, 1
      %p125 = scmp.ne.s32.totalorder %s120, %s122
      %p126 = scmp.eq.s32.totalorder %s23, 0
      %p127 = por %p125, %p126
      %p128 = scmp.ne.s32.totalorder %s120, %s122
      %p129 = scmp.eq.s32.totalorder %s28, 1
      %p130 = por %p128, %p129
      %p131 = scmp.ne.s32.totalorder %s122, %s123
      %p132 = scmp.eq.s32.totalorder %s28, 0
      %p133 = por %p131, %p132
      %p134 = scmp.ne.s32.totalorder %s122, %s123
      %p135 = scmp.eq.s32.totalorder %s29, 1
      %p136 = por %p134, %p135
      %p138 = scmp.ne.s32.totalorder %s123, %s137
      %p139 = scmp.eq.s32.totalorder %s29, 0
      %p140 = por %p138, %p139
      %s142 = sadd.s32 %s141, 1
      %p145 = scmp.eq.s32.totalorder %s23, 1
      %p146 = scmp.ne.s32.totalorder %s141, %s143
      %p147 = scmp.eq.s32.totalorder %s23, 0
      %p148 = por %p146, %p147
      %p149 = scmp.ne.s32.totalorder %s141, %s143
      %p150 = scmp.eq.s32.totalorder %s28, 1
      %p151 = por %p149, %p150
      %p152 = scmp.ne.s32.totalorder %s143, %s144
      %p153 = scmp.eq.s32.totalorder %s28, 0
      %p154 = por %p152, %p153
      %p155 = scmp.ne.s32.totalorder %s143, %s144
      %p156 = scmp.eq.s32.totalorder %s29, 1
      %p157 = por %p155, %p156
      %p159 = scmp.ne.s32.totalorder %s144, %s158
      %p160 = scmp.eq.s32.totalorder %s29, 0
      %p161 = por %p159, %p160
      %s163 = sadd.s32 %s162, 1
      %p166 = scmp.eq.s32.totalorder %s23, 1
      %p167 = scmp.ne.s32.totalorder %s162, %s164
      %p168 = scmp.eq.s32.totalorder %s23, 0
      %p169 = por %p167, %p168
      %p170 = scmp.ne.s32.totalorder %s162, %s164
      %p171 = scmp.eq.s32.totalorder %s28, 1
      %p172 = por %p170, %p171
      %p173 = scmp.ne.s32.totalorder %s164, %s165
      %p174 = scmp.eq.s32.totalorder %s28, 0
      %p175 = por %p173, %p174
      %p176 = scmp.ne.s32.totalorder %s164, %s165
      %p177 = scmp.eq.s32.totalorder %s29, 1
      %p178 = por %p176, %p177
      %p180 = scmp.ne.s32.totalorder %s165, %s179
      %p181 = scmp.eq.s32.totalorder %s29, 0
      %p182 = por %p180, %p181
      %s184 = sadd.s32 %s183, 1
      %p187 = scmp.eq.s32.totalorder %s23, 1
      %p188 = scmp.ne.s32.totalorder %s183, %s185
      %p189 = scmp.eq.s32.totalorder %s23, 0
      %p190 = por %p188, %p189
      %p191 = scmp.ne.s32.totalorder %s183, %s185
      %p192 = scmp.eq.s32.totalorder %s28, 1
      %p193 = por %p191, %p192
      %p194 = scmp.ne.s32.totalorder %s185, %s186
      %p195 = scmp.eq.s32.totalorder %s28, 0
      %p196 = por %p194, %p195
      %p197 = scmp.ne.s32.totalorder %s185, %s186
      %p198 = scmp.eq.s32.totalorder %s29, 1
      %p199 = por %p197, %p198
      %p201 = scmp.ne.s32.totalorder %s186, %s200
      %p202 = scmp.eq.s32.totalorder %s29, 0
      %p203 = por %p201, %p202
      %s205 = sadd.s32 %s204, 1
      %p208 = scmp.eq.s32.totalorder %s23, 1
      %p209 = scmp.ne.s32.totalorder %s204, %s206
      %p210 = scmp.eq.s32.totalorder %s23, 0
      %p211 = por %p209, %p210
      %p212 = scmp.ne.s32.totalorder %s204, %s206
      %p213 = scmp.eq.s32.totalorder %s28, 1
      %p214 = por %p212, %p213
      %p215 = scmp.ne.s32.totalorder %s206, %s207
      %p216 = scmp.eq.s32.totalorder %s28, 0
      %p217 = por %p215, %p216
      %p218 = scmp.ne.s32.totalorder %s206, %s207
      %p219 = scmp.eq.s32.totalorder %s29, 1
      %p220 = por %p218, %p219
      %p222 = scmp.ne.s32.totalorder %s207, %s221
      %p223 = scmp.eq.s32.totalorder %s29, 0
      %p224 = por %p222, %p223
      %s225 = ssub.s32 %s23, %s30
      %p226 = scmp.eq.s32.totalorder %s225, 0
      %s228 = sadd.s32 %s227, 1
      %s229 = scalar_select %p226, %s227, %s228
      %p232 = pneg %p226
      %p233 = scmp.eq.s32.totalorder %s23, 1
      %p234 = por %p232, %p233
      %p235 = scmp.ne.s32.totalorder %s227, %s230
      %p236 = scmp.eq.s32.totalorder %s23, 0
      %p237 = por %p235, %p236
      %p238 = scmp.ne.s32.totalorder %s227, %s230
      %p239 = scmp.eq.s32.totalorder %s28, 1
      %p240 = por %p238, %p239
      %p241 = scmp.ne.s32.totalorder %s230, %s231
      %p242 = scmp.eq.s32.totalorder %s28, 0
      %p243 = por %p241, %p242
      %p244 = scmp.ne.s32.totalorder %s230, %s231
      %p245 = scmp.eq.s32.totalorder %s29, 1
      %p246 = por %p244, %p245
      %p248 = scmp.ne.s32.totalorder %s231, %s247
      %p249 = scmp.eq.s32.totalorder %s29, 0
      %p250 = por %p248, %p249
      %p251 = scmp.le.s32.totalorder 1, %s23
      %p252 = scmp.lt.s32.totalorder %s23, 3
      %p253 = pnand %p251, %p252
      %p254 = pneg %p253
      // Predicated region
      $region9: #{tpu_custom_call.1} parent=5 // pred_check
        _
      $region10: #{tpu_custom_call.1} parent=5 // pred_check_branch
        %256 = sbr.rel (%p253) target = $region12
      $region11: #{tpu_custom_call.1} parent=5 // pred_region
        %s257 = ssub.s32 %s23, 1
        // Predicated region
        $region13: #{tpu_custom_call.1} parent=11 // pred_check
          %p258 = pneg %p70
        $region14: #{tpu_custom_call.1} parent=11 // pred_check_branch
          %260 = sbr.rel (%p258) target = $region16
        $region15: #{tpu_custom_call.1} parent=11 // pred_region
          %262 = vsyncadd [#allocation6], 0
          %s263 = sshll.u32 %s1, 4
          %s264 = int_to_ptr.hbm [resolvable:$true] %s263
          %s265 = sshll.u32 [#allocation5], 4
          %s266 = int_to_ptr.vmem [resolvable:$true] %s265
          %271 = dma.hbm_to_vmem [thread:$0]  %s264, 3072, %s266, [#allocation6], 128, 128, 8
        $region16: #{tpu_custom_call.1} parent=11 // pred_fallthru
          _
        // Predicated region
        $region17: #{tpu_custom_call.1} parent=11 // pred_check
          %p272 = pneg %p91
        $region18: #{tpu_custom_call.1} parent=11 // pred_check_branch
          %274 = sbr.rel (%p272) target = $region20
        $region19: #{tpu_custom_call.1} parent=11 // pred_region
          _
        $region20: #{tpu_custom_call.1} parent=11 // pred_fallthru
          _
        // Predicated region
        $region21: #{tpu_custom_call.1} parent=11 // pred_check
          %p275 = pneg %p112
        $region22: #{tpu_custom_call.1} parent=11 // pred_check_branch
          %277 = sbr.rel (%p275) target = $region24
        $region23: #{tpu_custom_call.1} parent=11 // pred_region
          %279 = vsyncadd [#allocation6], 0
          %s280 = sshll.u32 %s3, 4
          %s281 = int_to_ptr.hbm [resolvable:$true] %s280
          %s282 = sshll.u32 [#allocation7], 4
          %s283 = int_to_ptr.vmem [resolvable:$true] %s282
          %288 = dma.hbm_to_vmem [thread:$0]  %s281, 2048, %s283, [#allocation6], 128, 128, 8
        $region24: #{tpu_custom_call.1} parent=11 // pred_fallthru
          _
        // Predicated region
        $region25: #{tpu_custom_call.1} parent=11 // pred_check
          %p289 = pneg %p133
        $region26: #{tpu_custom_call.1} parent=11 // pred_check_branch
          %291 = sbr.rel (%p289) target = $region28
        $region27: #{tpu_custom_call.1} parent=11 // pred_region
          _
        $region28: #{tpu_custom_call.1} parent=11 // pred_fallthru
          _
        // Predicated region
        $region29: #{tpu_custom_call.1} parent=11 // pred_check
          %p292 = pneg %p154
        $region30: #{tpu_custom_call.1} parent=11 // pred_check_branch
          %294 = sbr.rel (%p292) target = $region32
        $region31: #{tpu_custom_call.1} parent=11 // pred_region
          %296 = vsyncadd [#allocation9], 0
          %s297 = sshll.u32 %s5, 4
          %s298 = int_to_ptr.hbm [resolvable:$true] %s297
          %s299 = sshll.u32 [#allocation8], 4
          %s300 = int_to_ptr.vmem [resolvable:$true] %s299
          %305 = dma.hbm_to_vmem [thread:$0]  %s298, 2048, %s300, [#allocation9], 128, 128, 8
        $region32: #{tpu_custom_call.1} parent=11 // pred_fallthru
          _
        // Predicated region
        $region33: #{tpu_custom_call.1} parent=11 // pred_check
          %p306 = pneg %p175
        $region34: #{tpu_custom_call.1} parent=11 // pred_check_branch
          %308 = sbr.rel (%p306) target = $region36
        $region35: #{tpu_custom_call.1} parent=11 // pred_region
          _
        $region36: #{tpu_custom_call.1} parent=11 // pred_fallthru
          _
        // Predicated region
        $region37: #{tpu_custom_call.1} parent=11 // pred_check
          %p309 = pneg %p196
        $region38: #{tpu_custom_call.1} parent=11 // pred_check_branch
          %311 = sbr.rel (%p309) target = $region40
        $region39: #{tpu_custom_call.1} parent=11 // pred_region
          %313 = vsyncadd [#allocation9], 0
          %s314 = sshll.u32 %s7, 4
          %s315 = int_to_ptr.hbm [resolvable:$true] %s314
          %s316 = sshll.u32 [#allocation10], 4
          %s317 = int_to_ptr.vmem [resolvable:$true] %s316
          %322 = dma.hbm_to_vmem [thread:$0]  %s315, 2048, %s317, [#allocation9], 128, 128, 8
        $region40: #{tpu_custom_call.1} parent=11 // pred_fallthru
          _
        // Predicated region
        $region41: #{tpu_custom_call.1} parent=11 // pred_check
          %p323 = pneg %p217
        $region42: #{tpu_custom_call.1} parent=11 // pred_check_branch
          %325 = sbr.rel (%p323) target = $region44
        $region43: #{tpu_custom_call.1} parent=11 // pred_region
          _
        $region44: #{tpu_custom_call.1} parent=11 // pred_fallthru
          _
      $region12: #{tpu_custom_call.1} parent=5 // pred_fallthru
        _
      %p326 = scmp.lt.s32.totalorder %s23, 2
      // Predicated region
      $region45: #{tpu_custom_call.1} parent=5 // pred_check
        %p327 = pneg %p326
      $region46: #{tpu_custom_call.1} parent=5 // pred_check_branch
        %329 = sbr.rel (%p327) target = $region48
      $region47: #{tpu_custom_call.1} parent=5 // pred_region
        // Predicated region
        $region49: #{tpu_custom_call.1} parent=47 // pred_check
          %p330 = pneg %p43
        $region50: #{tpu_custom_call.1} parent=47 // pred_check_branch
          %332 = sbr.rel (%p330) target = $region52
        $region51: #{tpu_custom_call.1} parent=47 // pred_region
          %s333 = sand.u32 %s33, 1
          %s334 = scalar_lea.sflag [#allocation3], %s333
          %s335 = sand.u32 %s33, 1
          %s336 = smul.addr %s335, 16
          %s337 = scalar_lea.vmem [#allocation2], %s336
          %339 = vsyncadd %s334, 0
          %s340 = smul.addr %s23, 2
          %s341 = smul.addr %s340, 8
          %s342 = scalar_lea.hbm %s0, %s341
          %s344 = sshll.u32 %s342, 4
          %s345 = int_to_ptr.hbm [resolvable:$true] %s344
          %s346 = sshll.u32 %s337, 4
          %s347 = int_to_ptr.vmem [resolvable:$true] %s346
          %349 = dma.hbm_to_vmem [thread:$0]  %s345, 256, %s347, %s334
        $region52: #{tpu_custom_call.1} parent=47 // pred_fallthru
          _
      $region48: #{tpu_custom_call.1} parent=5 // pred_fallthru
        _
      %p350 = scmp.le.s32.totalorder 1, %s23
      %p351 = scmp.lt.s32.totalorder %s23, 3
      %p352 = pnand %p350, %p351
      %p353 = pneg %p352
      // Predicated region
      $region53: #{tpu_custom_call.1} parent=5 // pred_check
        _
      $region54: #{tpu_custom_call.1} parent=5 // pred_check_branch
        %355 = sbr.rel (%p352) target = $region56
      $region55: #{tpu_custom_call.1} parent=5 // pred_region
        %s356 = ssub.s32 %s23, 1
        %s357 = sand.u32 %s36, 1
        %s358 = scalar_lea.sflag [#allocation3], %s357
        %s359 = sand.u32 %s36, 1
        %s360 = smul.addr %s359, 16
        %s361 = scalar_lea.vmem [#allocation2], %s360
        // Predicated region
        $region57: #{tpu_custom_call.1} parent=55 // pred_check
          %p362 = pneg %p49
        $region58: #{tpu_custom_call.1} parent=55 // pred_check_branch
          %364 = sbr.rel (%p362) target = $region60
        $region59: #{tpu_custom_call.1} parent=55 // pred_region
          %366 = dma.done %s358, 256
        $region60: #{tpu_custom_call.1} parent=55 // pred_fallthru
          _
        // Predicated region
        $region61: #{tpu_custom_call.1} parent=55 // pred_check
          %p367 = pneg %p70
        $region62: #{tpu_custom_call.1} parent=55 // pred_check_branch
          %369 = sbr.rel (%p367) target = $region64
        $region63: #{tpu_custom_call.1} parent=55 // pred_region
          %371 = dma.done [#allocation6], 3072
        $region64: #{tpu_custom_call.1} parent=55 // pred_fallthru
          _
        // Predicated region
        $region65: #{tpu_custom_call.1} parent=55 // pred_check
          %p372 = pneg %p112
        $region66: #{tpu_custom_call.1} parent=55 // pred_check_branch
          %374 = sbr.rel (%p372) target = $region68
        $region67: #{tpu_custom_call.1} parent=55 // pred_region
          %376 = dma.done [#allocation6], 2048
        $region68: #{tpu_custom_call.1} parent=55 // pred_fallthru
          _
        // Predicated region
        $region69: #{tpu_custom_call.1} parent=55 // pred_check
          %p377 = pneg %p154
        $region70: #{tpu_custom_call.1} parent=55 // pred_check_branch
          %379 = sbr.rel (%p377) target = $region72
        $region71: #{tpu_custom_call.1} parent=55 // pred_region
          %381 = dma.done [#allocation9], 2048
        $region72: #{tpu_custom_call.1} parent=55 // pred_fallthru
          _
        // Predicated region
        $region73: #{tpu_custom_call.1} parent=55 // pred_check
          %p382 = pneg %p196
        $region74: #{tpu_custom_call.1} parent=55 // pred_check_branch
          %384 = sbr.rel (%p382) target = $region76
        $region75: #{tpu_custom_call.1} parent=55 // pred_region
          %386 = dma.done [#allocation9], 2048
        $region76: #{tpu_custom_call.1} parent=55 // pred_fallthru
          _
        %s387 = sand.u32 %s36, 1
        %s388 = scalar_lea.sflag [#allocation3], %s387
        %s389 = sand.u32 %s36, 1
        %s390 = smul.addr %s389, 16
        %s391 = scalar_lea.vmem [#allocation2], %s390
        %p392 = pneg %p49
        %p393 = pneg %p46
        %p394 = pneg %p70
        %p395 = pneg %p67
        %p396 = pneg %p91
        %p397 = pneg %p88
        %p398 = pneg %p112
        %p399 = pneg %p109
        %p400 = pneg %p133
        %p401 = pneg %p130
        %p402 = pneg %p154
        %p403 = pneg %p151
        %p404 = pneg %p175
        %p405 = pneg %p172
        %p406 = pneg %p196
        %p407 = pneg %p193
        %p408 = pneg %p217
        %p409 = pneg %p214
        %p410 = pneg %p243
        %p411 = pneg %p240
        %s412 = sand.u32 %s230, 1
        %s413 = scalar_lea.sflag [#allocation4], %s412
        %s414 = sand.u32 %s230, 1
        %s415 = smul.addr %s414, 8
        %s416 = scalar_lea.vmem [#allocation11], %s415
        %v417 = vld [vmem:[%s361] sm:$0xff]
        %v418 = vld [vmem:[%s361 + $0x8] sm:$0xff]
        %v419 = vld [vmem:[#allocation5] sm:$0xff]
        %v420 = vld [vmem:[#allocation5 + $0x8] sm:$0xff]
        %v421 = vld [vmem:[#allocation5 + $0x10] sm:$0xff]
        %v422 = vld [vmem:[#allocation5 + $0x18] sm:$0xff]
        %v423 = vld [vmem:[#allocation5 + $0x20] sm:$0xff]
        %v424 = vld [vmem:[#allocation5 + $0x28] sm:$0xff]
        %v425 = vld [vmem:[#allocation5 + $0x30] sm:$0xff]
        %v426 = vld [vmem:[#allocation5 + $0x38] sm:$0xff]
        %v427 = vld [vmem:[#allocation5 + $0x40] sm:$0xff]
        %v428 = vld [vmem:[#allocation5 + $0x48] sm:$0xff]
        %v429 = vld [vmem:[#allocation5 + $0x50] sm:$0xff]
        %v430 = vld [vmem:[#allocation5 + $0x58] sm:$0xff]
        %v431 = vld [vmem:[#allocation5 + $0x60] sm:$0xff]
        %v432 = vld [vmem:[#allocation5 + $0x68] sm:$0xff]
        %v433 = vld [vmem:[#allocation5 + $0x70] sm:$0xff]
        %v434 = vld [vmem:[#allocation5 + $0x78] sm:$0xff]
        %v435 = vld [vmem:[#allocation5 + $0x80] sm:$0xff]
        %v436 = vld [vmem:[#allocation5 + $0x88] sm:$0xff]
        %v437 = vld [vmem:[#allocation5 + $0x90] sm:$0xff]
        %v438 = vld [vmem:[#allocation5 + $0x98] sm:$0xff]
        %v439 = vld [vmem:[#allocation5 + $0xa0] sm:$0xff]
        %v440 = vld [vmem:[#allocation5 + $0xa8] sm:$0xff]
        %v441 = vld [vmem:[#allocation5 + $0xb0] sm:$0xff]
        %v442 = vld [vmem:[#allocation5 + $0xb8] sm:$0xff]
        %v443 = vld [vmem:[%s2] sm:$0x1]
        %v445 = vperm.slane %v443, 0
        %vm447 = vcmask 523264
        %v449 = vsel %vm447, %v418, 0
        %v451 = vand.u32 %v434, 4294901760
        %452 = vmatpush.msra.mxu0 %v451
        %v453 = vand.u32 %v433, 4294901760
        %454 = vmatpush.msra.mxu0 %v453
        %v455 = vand.u32 %v432, 4294901760
        %456 = vmatpush.msra.mxu0 %v455
        %v457 = vand.u32 %v431, 4294901760
        %458 = vmatpush.msra.mxu0 %v457
        %v459 = vand.u32 %v430, 4294901760
        %460 = vmatpush.msra.mxu0 %v459
        %v461 = vand.u32 %v429, 4294901760
        %462 = vmatpush.msra.mxu0 %v461
        %v463 = vand.u32 %v428, 4294901760
        %464 = vmatpush.msra.mxu0 %v463
        %v465 = vand.u32 %v427, 4294901760
        %466 = vmatpush.msra.mxu0 %v465
        %v467 = vand.u32 %v426, 4294901760
        %468 = vmatpush.msra.mxu0 %v467
        %v469 = vand.u32 %v425, 4294901760
        %470 = vmatpush.msra.mxu0 %v469
        %v471 = vand.u32 %v424, 4294901760
        %472 = vmatpush.msra.mxu0 %v471
        %v473 = vand.u32 %v423, 4294901760
        %474 = vmatpush.msra.mxu0 %v473
        %v475 = vand.u32 %v422, 4294901760
        %476 = vmatpush.msra.mxu0 %v475
        %v477 = vand.u32 %v421, 4294901760
        %478 = vmatpush.msra.mxu0 %v477
        %v479 = vand.u32 %v420, 4294901760
        %480 = vmatpush.msra.mxu0 %v479
        %v481 = vand.u32 %v419, 4294901760
        %482 = vmatpush.msra.mxu0 %v481
        %v483 = vand.u32 %v417, 4294901760
        %v484 = vsub.f32 %v417, %v483
        %v485 = vand.u32 %v484, 4294901760
        %v486 = vsub.f32 %v484, %v485
        %v487 = vand.u32 %v486, 4294901760
        %488 = vmatmul.f32.gmra.mxu0 %v487
        %v489 = vpop.f32.mrf.mxu0
        %v490 = vadd.f32 %v445, %v489
        %491 = vdwg.mxu0
        %v492 = vand.u32 %v434, 4294901760
        %v493 = vsub.f32 %v434, %v492
        %v494 = vand.u32 %v493, 4294901760
        %v495 = vsub.f32 %v493, %v494
        %v496 = vand.u32 %v495, 4294901760
        %497 = vmatpush.msra.mxu0 %v496
        %v498 = vand.u32 %v433, 4294901760
        %v499 = vsub.f32 %v433, %v498
        %v500 = vand.u32 %v499, 4294901760
        %v501 = vsub.f32 %v499, %v500
        %v502 = vand.u32 %v501, 4294901760
        %503 = vmatpush.msra.mxu0 %v502
        %v504 = vand.u32 %v432, 4294901760
        %v505 = vsub.f32 %v432, %v504
        %v506 = vand.u32 %v505, 4294901760
        %v507 = vsub.f32 %v505, %v506
        %v508 = vand.u32 %v507, 4294901760
        %509 = vmatpush.msra.mxu0 %v508
        %v510 = vand.u32 %v431, 4294901760
        %v511 = vsub.f32 %v431, %v510
        %v512 = vand.u32 %v511, 4294901760
        %v513 = vsub.f32 %v511, %v512
        %v514 = vand.u32 %v513, 4294901760
        %515 = vmatpush.msra.mxu0 %v514
        %v516 = vand.u32 %v430, 4294901760
        %v517 = vsub.f32 %v430, %v516
        %v518 = vand.u32 %v517, 4294901760
        %v519 = vsub.f32 %v517, %v518
        %v520 = vand.u32 %v519, 4294901760
        %521 = vmatpush.msra.mxu0 %v520
        %v522 = vand.u32 %v429, 4294901760
        %v523 = vsub.f32 %v429, %v522
        %v524 = vand.u32 %v523, 4294901760
        %v525 = vsub.f32 %v523, %v524
        %v526 = vand.u32 %v525, 4294901760
        %527 = vmatpush.msra.mxu0 %v526
        %v528 = vand.u32 %v428, 4294901760
        %v529 = vsub.f32 %v428, %v528
        %v530 = vand.u32 %v529, 4294901760
        %v531 = vsub.f32 %v529, %v530
        %v532 = vand.u32 %v531, 4294901760
        %533 = vmatpush.msra.mxu0 %v532
        %v534 = vand.u32 %v427, 4294901760
        %v535 = vsub.f32 %v427, %v534
        %v536 = vand.u32 %v535, 4294901760
        %v537 = vsub.f32 %v535, %v536
        %v538 = vand.u32 %v537, 4294901760
        %539 = vmatpush.msra.mxu0 %v538
        %v540 = vand.u32 %v426, 4294901760
        %v541 = vsub.f32 %v426, %v540
        %v542 = vand.u32 %v541, 4294901760
        %v543 = vsub.f32 %v541, %v542
        %v544 = vand.u32 %v543, 4294901760
        %545 = vmatpush.msra.mxu0 %v544
        %v546 = vand.u32 %v425, 4294901760
        %v547 = vsub.f32 %v425, %v546
        %v548 = vand.u32 %v547, 4294901760
        %v549 = vsub.f32 %v547, %v548
        %v550 = vand.u32 %v549, 4294901760
        %551 = vmatpush.msra.mxu0 %v550
        %v552 = vand.u32 %v424, 4294901760
        %v553 = vsub.f32 %v424, %v552
        %v554 = vand.u32 %v553, 4294901760
        %v555 = vsub.f32 %v553, %v554
        %v556 = vand.u32 %v555, 4294901760
        %557 = vmatpush.msra.mxu0 %v556
        %v558 = vand.u32 %v423, 4294901760
        %v559 = vsub.f32 %v423, %v558
        %v560 = vand.u32 %v559, 4294901760
        %v561 = vsub.f32 %v559, %v560
        %v562 = vand.u32 %v561, 4294901760
        %563 = vmatpush.msra.mxu0 %v562
        %v564 = vand.u32 %v422, 4294901760
        %v565 = vsub.f32 %v422, %v564
        %v566 = vand.u32 %v565, 4294901760
        %v567 = vsub.f32 %v565, %v566
        %v568 = vand.u32 %v567, 4294901760
        %569 = vmatpush.msra.mxu0 %v568
        %v570 = vand.u32 %v421, 4294901760
        %v571 = vsub.f32 %v421, %v570
        %v572 = vand.u32 %v571, 4294901760
        %v573 = vsub.f32 %v571, %v572
        %v574 = vand.u32 %v573, 4294901760
        %575 = vmatpush.msra.mxu0 %v574
        %v576 = vand.u32 %v420, 4294901760
        %v577 = vsub.f32 %v420, %v576
        %v578 = vand.u32 %v577, 4294901760
        %v579 = vsub.f32 %v577, %v578
        %v580 = vand.u32 %v579, 4294901760
        %581 = vmatpush.msra.mxu0 %v580
        %v582 = vand.u32 %v419, 4294901760
        %v583 = vsub.f32 %v419, %v582
        %v584 = vand.u32 %v583, 4294901760
        %v585 = vsub.f32 %v583, %v584
        %v586 = vand.u32 %v585, 4294901760
        %587 = vmatpush.msra.mxu0 %v586
        %v588 = vand.u32 %v417, 4294901760
        %589 = vmatmul.f32.gmra.mxu0 %v588
        %v590 = vpop.f32.mrf.mxu0
        %v591 = vadd.f32 %v490, %v590
        %592 = vdwg.mxu0
        %v593 = vand.u32 %v434, 4294901760
        %v594 = vsub.f32 %v434, %v593
        %595 = vmatpush.msra.mxu0 %v594
        %v596 = vand.u32 %v433, 4294901760
        %v597 = vsub.f32 %v433, %v596
        %598 = vmatpush.msra.mxu0 %v597
        %v599 = vand.u32 %v432, 4294901760
        %v600 = vsub.f32 %v432, %v599
        %601 = vmatpush.msra.mxu0 %v600
        %v602 = vand.u32 %v431, 4294901760
        %v603 = vsub.f32 %v431, %v602
        %604 = vmatpush.msra.mxu0 %v603
        %v605 = vand.u32 %v430, 4294901760
        %v606 = vsub.f32 %v430, %v605
        %607 = vmatpush.msra.mxu0 %v606
        %v608 = vand.u32 %v429, 4294901760
        %v609 = vsub.f32 %v429, %v608
        %610 = vmatpush.msra.mxu0 %v609
        %v611 = vand.u32 %v428, 4294901760
        %v612 = vsub.f32 %v428, %v611
        %613 = vmatpush.msra.mxu0 %v612
        %v614 = vand.u32 %v427, 4294901760
        %v615 = vsub.f32 %v427, %v614
        %616 = vmatpush.msra.mxu0 %v615
        %v617 = vand.u32 %v426, 4294901760
        %v618 = vsub.f32 %v426, %v617
        %619 = vmatpush.msra.mxu0 %v618
        %v620 = vand.u32 %v425, 4294901760
        %v621 = vsub.f32 %v425, %v620
        %622 = vmatpush.msra.mxu0 %v621
        %v623 = vand.u32 %v424, 4294901760
        %v624 = vsub.f32 %v424, %v623
        %625 = vmatpush.msra.mxu0 %v624
        %v626 = vand.u32 %v423, 4294901760
        %v627 = vsub.f32 %v423, %v626
        %628 = vmatpush.msra.mxu0 %v627
        %v629 = vand.u32 %v422, 4294901760
        %v630 = vsub.f32 %v422, %v629
        %631 = vmatpush.msra.mxu0 %v630
        %v632 = vand.u32 %v421, 4294901760
        %v633 = vsub.f32 %v421, %v632
        %634 = vmatpush.msra.mxu0 %v633
        %v635 = vand.u32 %v420, 4294901760
        %v636 = vsub.f32 %v420, %v635
        %637 = vmatpush.msra.mxu0 %v636
        %v638 = vand.u32 %v419, 4294901760
        %v639 = vsub.f32 %v419, %v638
        %640 = vmatpush.msra.mxu0 %v639
        %v641 = vand.u32 %v417, 4294901760
        %v642 = vsub.f32 %v417, %v641
        %643 = vmatmul.f32.gmra.mxu0 %v642
        %v644 = vpop.f32.mrf.mxu0
        %v645 = vadd.f32 %v591, %v644
        %646 = vdwg.mxu0
        %v647 = vand.u32 %v434, 4294901760
        %648 = vmatpush.msra.mxu0 %v647
        %v649 = vand.u32 %v433, 4294901760
        %650 = vmatpush.msra.mxu0 %v649
        %v651 = vand.u32 %v432, 4294901760
        %652 = vmatpush.msra.mxu0 %v651
        %v653 = vand.u32 %v431, 4294901760
        %654 = vmatpush.msra.mxu0 %v653
        %v655 = vand.u32 %v430, 4294901760
        %656 = vmatpush.msra.mxu0 %v655
        %v657 = vand.u32 %v429, 4294901760
        %658 = vmatpush.msra.mxu0 %v657
        %v659 = vand.u32 %v428, 4294901760
        %660 = vmatpush.msra.mxu0 %v659
        %v661 = vand.u32 %v427, 4294901760
        %662 = vmatpush.msra.mxu0 %v661
        %v663 = vand.u32 %v426, 4294901760
        %664 = vmatpush.msra.mxu0 %v663
        %v665 = vand.u32 %v425, 4294901760
        %666 = vmatpush.msra.mxu0 %v665
        %v667 = vand.u32 %v424, 4294901760
        %668 = vmatpush.msra.mxu0 %v667
        %v669 = vand.u32 %v423, 4294901760
        %670 = vmatpush.msra.mxu0 %v669
        %v671 = vand.u32 %v422, 4294901760
        %672 = vmatpush.msra.mxu0 %v671
        %v673 = vand.u32 %v421, 4294901760
        %674 = vmatpush.msra.mxu0 %v673
        %v675 = vand.u32 %v420, 4294901760
        %676 = vmatpush.msra.mxu0 %v675
        %v677 = vand.u32 %v419, 4294901760
        %678 = vmatpush.msra.mxu0 %v677
        %v679 = vand.u32 %v417, 4294901760
        %v680 = vsub.f32 %v417, %v679
        %v681 = vand.u32 %v680, 4294901760
        %682 = vmatmul.f32.gmra.mxu0 %v681
        %v683 = vpop.f32.mrf.mxu0
        %v684 = vadd.f32 %v645, %v683
        %685 = vdwg.mxu0
        %v686 = vand.u32 %v434, 4294901760
        %v687 = vsub.f32 %v434, %v686
        %v688 = vand.u32 %v687, 4294901760
        %689 = vmatpush.msra.mxu0 %v688
        %v690 = vand.u32 %v433, 4294901760
        %v691 = vsub.f32 %v433, %v690
        %v692 = vand.u32 %v691, 4294901760
        %693 = vmatpush.msra.mxu0 %v692
        %v694 = vand.u32 %v432, 4294901760
        %v695 = vsub.f32 %v432, %v694
        %v696 = vand.u32 %v695, 4294901760
        %697 = vmatpush.msra.mxu0 %v696
        %v698 = vand.u32 %v431, 4294901760
        %v699 = vsub.f32 %v431, %v698
        %v700 = vand.u32 %v699, 4294901760
        %701 = vmatpush.msra.mxu0 %v700
        %v702 = vand.u32 %v430, 4294901760
        %v703 = vsub.f32 %v430, %v702
        %v704 = vand.u32 %v703, 4294901760
        %705 = vmatpush.msra.mxu0 %v704
        %v706 = vand.u32 %v429, 4294901760
        %v707 = vsub.f32 %v429, %v706
        %v708 = vand.u32 %v707, 4294901760
        %709 = vmatpush.msra.mxu0 %v708
        %v710 = vand.u32 %v428, 4294901760
        %v711 = vsub.f32 %v428, %v710
        %v712 = vand.u32 %v711, 4294901760
        %713 = vmatpush.msra.mxu0 %v712
        %v714 = vand.u32 %v427, 4294901760
        %v715 = vsub.f32 %v427, %v714
        %v716 = vand.u32 %v715, 4294901760
        %717 = vmatpush.msra.mxu0 %v716
        %v718 = vand.u32 %v426, 4294901760
        %v719 = vsub.f32 %v426, %v718
        %v720 = vand.u32 %v719, 4294901760
        %721 = vmatpush.msra.mxu0 %v720
        %v722 = vand.u32 %v425, 4294901760
        %v723 = vsub.f32 %v425, %v722
        %v724 = vand.u32 %v723, 4294901760
        %725 = vmatpush.msra.mxu0 %v724
        %v726 = vand.u32 %v424, 4294901760
        %v727 = vsub.f32 %v424, %v726
        %v728 = vand.u32 %v727, 4294901760
        %729 = vmatpush.msra.mxu0 %v728
        %v730 = vand.u32 %v423, 4294901760
        %v731 = vsub.f32 %v423, %v730
        %v732 = vand.u32 %v731, 4294901760
        %733 = vmatpush.msra.mxu0 %v732
        %v734 = vand.u32 %v422, 4294901760
        %v735 = vsub.f32 %v422, %v734
        %v736 = vand.u32 %v735, 4294901760
        %737 = vmatpush.msra.mxu0 %v736
        %v738 = vand.u32 %v421, 4294901760
        %v739 = vsub.f32 %v421, %v738
        %v740 = vand.u32 %v739, 4294901760
        %741 = vmatpush.msra.mxu0 %v740
        %v742 = vand.u32 %v420, 4294901760
        %v743 = vsub.f32 %v420, %v742
        %v744 = vand.u32 %v743, 4294901760
        %745 = vmatpush.msra.mxu0 %v744
        %v746 = vand.u32 %v419, 4294901760
        %v747 = vsub.f32 %v419, %v746
        %v748 = vand.u32 %v747, 4294901760
        %749 = vmatpush.msra.mxu0 %v748
        %v750 = vand.u32 %v417, 4294901760
        %751 = vmatmul.f32.gmra.mxu0 %v750
        %v752 = vpop.f32.mrf.mxu0
        %v753 = vadd.f32 %v684, %v752
        %754 = vdwg.mxu0
        %v755 = vand.u32 %v434, 4294901760
        %756 = vmatpush.msra.mxu0 %v755
        %v757 = vand.u32 %v433, 4294901760
        %758 = vmatpush.msra.mxu0 %v757
        %v759 = vand.u32 %v432, 4294901760
        %760 = vmatpush.msra.mxu0 %v759
        %v761 = vand.u32 %v431, 4294901760
        %762 = vmatpush.msra.mxu0 %v761
        %v763 = vand.u32 %v430, 4294901760
        %764 = vmatpush.msra.mxu0 %v763
        %v765 = vand.u32 %v429, 4294901760
        %766 = vmatpush.msra.mxu0 %v765
        %v767 = vand.u32 %v428, 4294901760
        %768 = vmatpush.msra.mxu0 %v767
        %v769 = vand.u32 %v427, 4294901760
        %770 = vmatpush.msra.mxu0 %v769
        %v771 = vand.u32 %v426, 4294901760
        %772 = vmatpush.msra.mxu0 %v771
        %v773 = vand.u32 %v425, 4294901760
        %774 = vmatpush.msra.mxu0 %v773
        %v775 = vand.u32 %v424, 4294901760
        %776 = vmatpush.msra.mxu0 %v775
        %v777 = vand.u32 %v423, 4294901760
        %778 = vmatpush.msra.mxu0 %v777
        %v779 = vand.u32 %v422, 4294901760
        %780 = vmatpush.msra.mxu0 %v779
        %v781 = vand.u32 %v421, 4294901760
        %782 = vmatpush.msra.mxu0 %v781
        %v783 = vand.u32 %v420, 4294901760
        %784 = vmatpush.msra.mxu0 %v783
        %v785 = vand.u32 %v419, 4294901760
        %786 = vmatpush.msra.mxu0 %v785
        %v787 = vand.u32 %v417, 4294901760
        %788 = vmatmul.f32.gmra.mxu0 %v787
        %v789 = vpop.f32.mrf.mxu0
        %v790 = vadd.f32 %v753, %v789
        %791 = vdwg.mxu0
        %792 = vmatpush.msra.mxu0 0.0
        %793 = vmatpush.msra.mxu0 0.0
        %794 = vmatpush.msra.mxu0 0.0
        %795 = vmatpush.msra.mxu0 0.0
        %796 = vmatpush.msra.mxu0 0.0
        %797 = vmatpush.msra.mxu0 0.0
        %798 = vmatpush.msra.mxu0 0.0
        %799 = vmatpush.msra.mxu0 0.0
        %v800 = vand.u32 %v442, 4294901760
        %801 = vmatpush.msra.mxu0 %v800
        %v802 = vand.u32 %v441, 4294901760
        %803 = vmatpush.msra.mxu0 %v802
        %v804 = vand.u32 %v440, 4294901760
        %805 = vmatpush.msra.mxu0 %v804
        %v806 = vand.u32 %v439, 4294901760
        %807 = vmatpush.msra.mxu0 %v806
        %v808 = vand.u32 %v438, 4294901760
        %809 = vmatpush.msra.mxu0 %v808
        %v810 = vand.u32 %v437, 4294901760
        %811 = vmatpush.msra.mxu0 %v810
        %v812 = vand.u32 %v436, 4294901760
        %813 = vmatpush.msra.mxu0 %v812
        %v814 = vand.u32 %v435, 4294901760
        %815 = vmatpush.msra.mxu0 %v814
        %v816 = vand.u32 %v449, 4294901760
        %v817 = vsub.f32 %v449, %v816
        %v818 = vand.u32 %v817, 4294901760
        %v819 = vsub.f32 %v817, %v818
        %v820 = vand.u32 %v819, 4294901760
        %821 = vmatmul.f32.gmra.mxu0 %v820
        %v822 = vpop.f32.mrf.mxu0
        %v823 = vadd.f32 %v790, %v822
        %824 = vdwg.mxu0
        %825 = vmatpush.msra.mxu0 0.0
        %826 = vmatpush.msra.mxu0 0.0
        %827 = vmatpush.msra.mxu0 0.0
        %828 = vmatpush.msra.mxu0 0.0
        %829 = vmatpush.msra.mxu0 0.0
        %830 = vmatpush.msra.mxu0 0.0
        %831 = vmatpush.msra.mxu0 0.0
        %832 = vmatpush.msra.mxu0 0.0
        %v833 = vand.u32 %v442, 4294901760
        %v834 = vsub.f32 %v442, %v833
        %v835 = vand.u32 %v834, 4294901760
        %v836 = vsub.f32 %v834, %v835
        %v837 = vand.u32 %v836, 4294901760
        %838 = vmatpush.msra.mxu0 %v837
        %v839 = vand.u32 %v441, 4294901760
        %v840 = vsub.f32 %v441, %v839
        %v841 = vand.u32 %v840, 4294901760
        %v842 = vsub.f32 %v840, %v841
        %v843 = vand.u32 %v842, 4294901760
        %844 = vmatpush.msra.mxu0 %v843
        %v845 = vand.u32 %v440, 4294901760
        %v846 = vsub.f32 %v440, %v845
        %v847 = vand.u32 %v846, 4294901760
        %v848 = vsub.f32 %v846, %v847
        %v849 = vand.u32 %v848, 4294901760
        %850 = vmatpush.msra.mxu0 %v849
        %v851 = vand.u32 %v439, 4294901760
        %v852 = vsub.f32 %v439, %v851
        %v853 = vand.u32 %v852, 4294901760
        %v854 = vsub.f32 %v852, %v853
        %v855 = vand.u32 %v854, 4294901760
        %856 = vmatpush.msra.mxu0 %v855
        %v857 = vand.u32 %v438, 4294901760
        %v858 = vsub.f32 %v438, %v857
        %v859 = vand.u32 %v858, 4294901760
        %v860 = vsub.f32 %v858, %v859
        %v861 = vand.u32 %v860, 4294901760
        %862 = vmatpush.msra.mxu0 %v861
        %v863 = vand.u32 %v437, 4294901760
        %v864 = vsub.f32 %v437, %v863
        %v865 = vand.u32 %v864, 4294901760
        %v866 = vsub.f32 %v864, %v865
        %v867 = vand.u32 %v866, 4294901760
        %868 = vmatpush.msra.mxu0 %v867
        %v869 = vand.u32 %v436, 4294901760
        %v870 = vsub.f32 %v436, %v869
        %v871 = vand.u32 %v870, 4294901760
        %v872 = vsub.f32 %v870, %v871
        %v873 = vand.u32 %v872, 4294901760
        %874 = vmatpush.msra.mxu0 %v873
        %v875 = vand.u32 %v435, 4294901760
        %v876 = vsub.f32 %v435, %v875
        %v877 = vand.u32 %v876, 4294901760
        %v878 = vsub.f32 %v876, %v877
        %v879 = vand.u32 %v878, 4294901760
        %880 = vmatpush.msra.mxu0 %v879
        %v881 = vand.u32 %v449, 4294901760
        %882 = vmatmul.f32.gmra.mxu0 %v881
        %v883 = vpop.f32.mrf.mxu0
        %v884 = vadd.f32 %v823, %v883
        %885 = vdwg.mxu0
        %886 = vmatpush.msra.mxu0 0.0
        %887 = vmatpush.msra.mxu0 0.0
        %888 = vmatpush.msra.mxu0 0.0
        %889 = vmatpush.msra.mxu0 0.0
        %890 = vmatpush.msra.mxu0 0.0
        %891 = vmatpush.msra.mxu0 0.0
        %892 = vmatpush.msra.mxu0 0.0
        %893 = vmatpush.msra.mxu0 0.0
        %v894 = vand.u32 %v442, 4294901760
        %v895 = vsub.f32 %v442, %v894
        %896 = vmatpush.msra.mxu0 %v895
        %v897 = vand.u32 %v441, 4294901760
        %v898 = vsub.f32 %v441, %v897
        %899 = vmatpush.msra.mxu0 %v898
        %v900 = vand.u32 %v440, 4294901760
        %v901 = vsub.f32 %v440, %v900
        %902 = vmatpush.msra.mxu0 %v901
        %v903 = vand.u32 %v439, 4294901760
        %v904 = vsub.f32 %v439, %v903
        %905 = vmatpush.msra.mxu0 %v904
        %v906 = vand.u32 %v438, 4294901760
        %v907 = vsub.f32 %v438, %v906
        %908 = vmatpush.msra.mxu0 %v907
        %v909 = vand.u32 %v437, 4294901760
        %v910 = vsub.f32 %v437, %v909
        %911 = vmatpush.msra.mxu0 %v910
        %v912 = vand.u32 %v436, 4294901760
        %v913 = vsub.f32 %v436, %v912
        %914 = vmatpush.msra.mxu0 %v913
        %v915 = vand.u32 %v435, 4294901760
        %v916 = vsub.f32 %v435, %v915
        %917 = vmatpush.msra.mxu0 %v916
        %v918 = vand.u32 %v449, 4294901760
        %v919 = vsub.f32 %v449, %v918
        %920 = vmatmul.f32.gmra.mxu0 %v919
        %v921 = vpop.f32.mrf.mxu0
        %v922 = vadd.f32 %v884, %v921
        %923 = vdwg.mxu0
        %924 = vmatpush.msra.mxu0 0.0
        %925 = vmatpush.msra.mxu0 0.0
        %926 = vmatpush.msra.mxu0 0.0
        %927 = vmatpush.msra.mxu0 0.0
        %928 = vmatpush.msra.mxu0 0.0
        %929 = vmatpush.msra.mxu0 0.0
        %930 = vmatpush.msra.mxu0 0.0
        %931 = vmatpush.msra.mxu0 0.0
        %v932 = vand.u32 %v442, 4294901760
        %933 = vmatpush.msra.mxu0 %v932
        %v934 = vand.u32 %v441, 4294901760
        %935 = vmatpush.msra.mxu0 %v934
        %v936 = vand.u32 %v440, 4294901760
        %937 = vmatpush.msra.mxu0 %v936
        %v938 = vand.u32 %v439, 4294901760
        %939 = vmatpush.msra.mxu0 %v938
        %v940 = vand.u32 %v438, 4294901760
        %941 = vmatpush.msra.mxu0 %v940
        %v942 = vand.u32 %v437, 4294901760
        %943 = vmatpush.msra.mxu0 %v942
        %v944 = vand.u32 %v436, 4294901760
        %945 = vmatpush.msra.mxu0 %v944
        %v946 = vand.u32 %v435, 4294901760
        %947 = vmatpush.msra.mxu0 %v946
        %v948 = vand.u32 %v449, 4294901760
        %v949 = vsub.f32 %v449, %v948
        %v950 = vand.u32 %v949, 4294901760
        %951 = vmatmul.f32.gmra.mxu0 %v950
        %v952 = vpop.f32.mrf.mxu0
        %v953 = vadd.f32 %v922, %v952
        %954 = vdwg.mxu0
        %955 = vmatpush.msra.mxu0 0.0
        %956 = vmatpush.msra.mxu0 0.0
        %957 = vmatpush.msra.mxu0 0.0
        %958 = vmatpush.msra.mxu0 0.0
        %959 = vmatpush.msra.mxu0 0.0
        %960 = vmatpush.msra.mxu0 0.0
        %961 = vmatpush.msra.mxu0 0.0
        %962 = vmatpush.msra.mxu0 0.0
        %v963 = vand.u32 %v442, 4294901760
        %v964 = vsub.f32 %v442, %v963
        %v965 = vand.u32 %v964, 4294901760
        %966 = vmatpush.msra.mxu0 %v965
        %v967 = vand.u32 %v441, 4294901760
        %v968 = vsub.f32 %v441, %v967
        %v969 = vand.u32 %v968, 4294901760
        %970 = vmatpush.msra.mxu0 %v969
        %v971 = vand.u32 %v440, 4294901760
        %v972 = vsub.f32 %v440, %v971
        %v973 = vand.u32 %v972, 4294901760
        %974 = vmatpush.msra.mxu0 %v973
        %v975 = vand.u32 %v439, 4294901760
        %v976 = vsub.f32 %v439, %v975
        %v977 = vand.u32 %v976, 4294901760
        %978 = vmatpush.msra.mxu0 %v977
        %v979 = vand.u32 %v438, 4294901760
        %v980 = vsub.f32 %v438, %v979
        %v981 = vand.u32 %v980, 4294901760
        %982 = vmatpush.msra.mxu0 %v981
        %v983 = vand.u32 %v437, 4294901760
        %v984 = vsub.f32 %v437, %v983
        %v985 = vand.u32 %v984, 4294901760
        %986 = vmatpush.msra.mxu0 %v985
        %v987 = vand.u32 %v436, 4294901760
        %v988 = vsub.f32 %v436, %v987
        %v989 = vand.u32 %v988, 4294901760
        %990 = vmatpush.msra.mxu0 %v989
        %v991 = vand.u32 %v435, 4294901760
        %v992 = vsub.f32 %v435, %v991
        %v993 = vand.u32 %v992, 4294901760
        %994 = vmatpush.msra.mxu0 %v993
        %v995 = vand.u32 %v449, 4294901760
        %996 = vmatmul.f32.gmra.mxu0 %v995
        %v997 = vpop.f32.mrf.mxu0
        %v998 = vadd.f32 %v953, %v997
        %999 = vdwg.mxu0
        %1000 = vmatpush.msra.mxu0 0.0
        %1001 = vmatpush.msra.mxu0 0.0
        %1002 = vmatpush.msra.mxu0 0.0
        %1003 = vmatpush.msra.mxu0 0.0
        %1004 = vmatpush.msra.mxu0 0.0
        %1005 = vmatpush.msra.mxu0 0.0
        %1006 = vmatpush.msra.mxu0 0.0
        %1007 = vmatpush.msra.mxu0 0.0
        %v1008 = vand.u32 %v442, 4294901760
        %1009 = vmatpush.msra.mxu0 %v1008
        %v1010 = vand.u32 %v441, 4294901760
        %1011 = vmatpush.msra.mxu0 %v1010
        %v1012 = vand.u32 %v440, 4294901760
        %1013 = vmatpush.msra.mxu0 %v1012
        %v1014 = vand.u32 %v439, 4294901760
        %1015 = vmatpush.msra.mxu0 %v1014
        %v1016 = vand.u32 %v438, 4294901760
        %1017 = vmatpush.msra.mxu0 %v1016
        %v1018 = vand.u32 %v437, 4294901760
        %1019 = vmatpush.msra.mxu0 %v1018
        %v1020 = vand.u32 %v436, 4294901760
        %1021 = vmatpush.msra.mxu0 %v1020
        %v1022 = vand.u32 %v435, 4294901760
        %1023 = vmatpush.msra.mxu0 %v1022
        %v1024 = vand.u32 %v449, 4294901760
        %1025 = vmatmul.f32.gmra.mxu0 %v1024
        %v1026 = vpop.f32.mrf.mxu0
        %v1027 = vadd.f32 %v998, %v1026
        %1028 = vdwg.mxu0
        %v1029 = vmax.f32 %v1027, 0.0
        %v1030 = vld [vmem:[#allocation7] sm:$0xff]
        %v1031 = vld [vmem:[#allocation7 + $0x8] sm:$0xff]
        %v1032 = vld [vmem:[#allocation7 + $0x10] sm:$0xff]
        %v1033 = vld [vmem:[#allocation7 + $0x18] sm:$0xff]
        %v1034 = vld [vmem:[#allocation7 + $0x20] sm:$0xff]
        %v1035 = vld [vmem:[#allocation7 + $0x28] sm:$0xff]
        %v1036 = vld [vmem:[#allocation7 + $0x30] sm:$0xff]
        %v1037 = vld [vmem:[#allocation7 + $0x38] sm:$0xff]
        %v1038 = vld [vmem:[#allocation7 + $0x40] sm:$0xff]
        %v1039 = vld [vmem:[#allocation7 + $0x48] sm:$0xff]
        %v1040 = vld [vmem:[#allocation7 + $0x50] sm:$0xff]
        %v1041 = vld [vmem:[#allocation7 + $0x58] sm:$0xff]
        %v1042 = vld [vmem:[#allocation7 + $0x60] sm:$0xff]
        %v1043 = vld [vmem:[#allocation7 + $0x68] sm:$0xff]
        %v1044 = vld [vmem:[#allocation7 + $0x70] sm:$0xff]
        %v1045 = vld [vmem:[#allocation7 + $0x78] sm:$0xff]
        %v1046 = vld [vmem:[%s4] sm:$0x1]
        %v1048 = vperm.slane %v1046, 0
        %v1050 = vand.u32 %v1045, 4294901760
        %1051 = vmatpush.msra.mxu0 %v1050
        %v1052 = vand.u32 %v1044, 4294901760
        %1053 = vmatpush.msra.mxu0 %v1052
        %v1054 = vand.u32 %v1043, 4294901760
        %1055 = vmatpush.msra.mxu0 %v1054
        %v1056 = vand.u32 %v1042, 4294901760
        %1057 = vmatpush.msra.mxu0 %v1056
        %v1058 = vand.u32 %v1041, 4294901760
        %1059 = vmatpush.msra.mxu0 %v1058
        %v1060 = vand.u32 %v1040, 4294901760
        %1061 = vmatpush.msra.mxu0 %v1060
        %v1062 = vand.u32 %v1039, 4294901760
        %1063 = vmatpush.msra.mxu0 %v1062
        %v1064 = vand.u32 %v1038, 4294901760
        %1065 = vmatpush.msra.mxu0 %v1064
        %v1066 = vand.u32 %v1037, 4294901760
        %1067 = vmatpush.msra.mxu0 %v1066
        %v1068 = vand.u32 %v1036, 4294901760
        %1069 = vmatpush.msra.mxu0 %v1068
        %v1070 = vand.u32 %v1035, 4294901760
        %1071 = vmatpush.msra.mxu0 %v1070
        %v1072 = vand.u32 %v1034, 4294901760
        %1073 = vmatpush.msra.mxu0 %v1072
        %v1074 = vand.u32 %v1033, 4294901760
        %1075 = vmatpush.msra.mxu0 %v1074
        %v1076 = vand.u32 %v1032, 4294901760
        %1077 = vmatpush.msra.mxu0 %v1076
        %v1078 = vand.u32 %v1031, 4294901760
        %1079 = vmatpush.msra.mxu0 %v1078
        %v1080 = vand.u32 %v1030, 4294901760
        %1081 = vmatpush.msra.mxu0 %v1080
        %v1082 = vand.u32 %v1029, 4294901760
        %v1083 = vsub.f32 %v1029, %v1082
        %v1084 = vand.u32 %v1083, 4294901760
        %v1085 = vsub.f32 %v1083, %v1084
        %v1086 = vand.u32 %v1085, 4294901760
        %1087 = vmatmul.f32.gmra.mxu0 %v1086
        %v1088 = vpop.f32.mrf.mxu0
        %v1089 = vadd.f32 %v1048, %v1088
        %1090 = vdwg.mxu0
        %v1091 = vand.u32 %v1045, 4294901760
        %v1092 = vsub.f32 %v1045, %v1091
        %v1093 = vand.u32 %v1092, 4294901760
        %v1094 = vsub.f32 %v1092, %v1093
        %v1095 = vand.u32 %v1094, 4294901760
        %1096 = vmatpush.msra.mxu0 %v1095
        %v1097 = vand.u32 %v1044, 4294901760
        %v1098 = vsub.f32 %v1044, %v1097
        %v1099 = vand.u32 %v1098, 4294901760
        %v1100 = vsub.f32 %v1098, %v1099
        %v1101 = vand.u32 %v1100, 4294901760
        %1102 = vmatpush.msra.mxu0 %v1101
        %v1103 = vand.u32 %v1043, 4294901760
        %v1104 = vsub.f32 %v1043, %v1103
        %v1105 = vand.u32 %v1104, 4294901760
        %v1106 = vsub.f32 %v1104, %v1105
        %v1107 = vand.u32 %v1106, 4294901760
        %1108 = vmatpush.msra.mxu0 %v1107
        %v1109 = vand.u32 %v1042, 4294901760
        %v1110 = vsub.f32 %v1042, %v1109
        %v1111 = vand.u32 %v1110, 4294901760
        %v1112 = vsub.f32 %v1110, %v1111
        %v1113 = vand.u32 %v1112, 4294901760
        %1114 = vmatpush.msra.mxu0 %v1113
        %v1115 = vand.u32 %v1041, 4294901760
        %v1116 = vsub.f32 %v1041, %v1115
        %v1117 = vand.u32 %v1116, 4294901760
        %v1118 = vsub.f32 %v1116, %v1117
        %v1119 = vand.u32 %v1118, 4294901760
        %1120 = vmatpush.msra.mxu0 %v1119
        %v1121 = vand.u32 %v1040, 4294901760
        %v1122 = vsub.f32 %v1040, %v1121
        %v1123 = vand.u32 %v1122, 4294901760
        %v1124 = vsub.f32 %v1122, %v1123
        %v1125 = vand.u32 %v1124, 4294901760
        %1126 = vmatpush.msra.mxu0 %v1125
        %v1127 = vand.u32 %v1039, 4294901760
        %v1128 = vsub.f32 %v1039, %v1127
        %v1129 = vand.u32 %v1128, 4294901760
        %v1130 = vsub.f32 %v1128, %v1129
        %v1131 = vand.u32 %v1130, 4294901760
        %1132 = vmatpush.msra.mxu0 %v1131
        %v1133 = vand.u32 %v1038, 4294901760
        %v1134 = vsub.f32 %v1038, %v1133
        %v1135 = vand.u32 %v1134, 4294901760
        %v1136 = vsub.f32 %v1134, %v1135
        %v1137 = vand.u32 %v1136, 4294901760
        %1138 = vmatpush.msra.mxu0 %v1137
        %v1139 = vand.u32 %v1037, 4294901760
        %v1140 = vsub.f32 %v1037, %v1139
        %v1141 = vand.u32 %v1140, 4294901760
        %v1142 = vsub.f32 %v1140, %v1141
        %v1143 = vand.u32 %v1142, 4294901760
        %1144 = vmatpush.msra.mxu0 %v1143
        %v1145 = vand.u32 %v1036, 4294901760
        %v1146 = vsub.f32 %v1036, %v1145
        %v1147 = vand.u32 %v1146, 4294901760
        %v1148 = vsub.f32 %v1146, %v1147
        %v1149 = vand.u32 %v1148, 4294901760
        %1150 = vmatpush.msra.mxu0 %v1149
        %v1151 = vand.u32 %v1035, 4294901760
        %v1152 = vsub.f32 %v1035, %v1151
        %v1153 = vand.u32 %v1152, 4294901760
        %v1154 = vsub.f32 %v1152, %v1153
        %v1155 = vand.u32 %v1154, 4294901760
        %1156 = vmatpush.msra.mxu0 %v1155
        %v1157 = vand.u32 %v1034, 4294901760
        %v1158 = vsub.f32 %v1034, %v1157
        %v1159 = vand.u32 %v1158, 4294901760
        %v1160 = vsub.f32 %v1158, %v1159
        %v1161 = vand.u32 %v1160, 4294901760
        %1162 = vmatpush.msra.mxu0 %v1161
        %v1163 = vand.u32 %v1033, 4294901760
        %v1164 = vsub.f32 %v1033, %v1163
        %v1165 = vand.u32 %v1164, 4294901760
        %v1166 = vsub.f32 %v1164, %v1165
        %v1167 = vand.u32 %v1166, 4294901760
        %1168 = vmatpush.msra.mxu0 %v1167
        %v1169 = vand.u32 %v1032, 4294901760
        %v1170 = vsub.f32 %v1032, %v1169
        %v1171 = vand.u32 %v1170, 4294901760
        %v1172 = vsub.f32 %v1170, %v1171
        %v1173 = vand.u32 %v1172, 4294901760
        %1174 = vmatpush.msra.mxu0 %v1173
        %v1175 = vand.u32 %v1031, 4294901760
        %v1176 = vsub.f32 %v1031, %v1175
        %v1177 = vand.u32 %v1176, 4294901760
        %v1178 = vsub.f32 %v1176, %v1177
        %v1179 = vand.u32 %v1178, 4294901760
        %1180 = vmatpush.msra.mxu0 %v1179
        %v1181 = vand.u32 %v1030, 4294901760
        %v1182 = vsub.f32 %v1030, %v1181
        %v1183 = vand.u32 %v1182, 4294901760
        %v1184 = vsub.f32 %v1182, %v1183
        %v1185 = vand.u32 %v1184, 4294901760
        %1186 = vmatpush.msra.mxu0 %v1185
        %v1187 = vand.u32 %v1029, 4294901760
        %1188 = vmatmul.f32.gmra.mxu0 %v1187
        %v1189 = vpop.f32.mrf.mxu0
        %v1190 = vadd.f32 %v1089, %v1189
        %1191 = vdwg.mxu0
        %v1192 = vand.u32 %v1045, 4294901760
        %v1193 = vsub.f32 %v1045, %v1192
        %1194 = vmatpush.msra.mxu0 %v1193
        %v1195 = vand.u32 %v1044, 4294901760
        %v1196 = vsub.f32 %v1044, %v1195
        %1197 = vmatpush.msra.mxu0 %v1196
        %v1198 = vand.u32 %v1043, 4294901760
        %v1199 = vsub.f32 %v1043, %v1198
        %1200 = vmatpush.msra.mxu0 %v1199
        %v1201 = vand.u32 %v1042, 4294901760
        %v1202 = vsub.f32 %v1042, %v1201
        %1203 = vmatpush.msra.mxu0 %v1202
        %v1204 = vand.u32 %v1041, 4294901760
        %v1205 = vsub.f32 %v1041, %v1204
        %1206 = vmatpush.msra.mxu0 %v1205
        %v1207 = vand.u32 %v1040, 4294901760
        %v1208 = vsub.f32 %v1040, %v1207
        %1209 = vmatpush.msra.mxu0 %v1208
        %v1210 = vand.u32 %v1039, 4294901760
        %v1211 = vsub.f32 %v1039, %v1210
        %1212 = vmatpush.msra.mxu0 %v1211
        %v1213 = vand.u32 %v1038, 4294901760
        %v1214 = vsub.f32 %v1038, %v1213
        %1215 = vmatpush.msra.mxu0 %v1214
        %v1216 = vand.u32 %v1037, 4294901760
        %v1217 = vsub.f32 %v1037, %v1216
        %1218 = vmatpush.msra.mxu0 %v1217
        %v1219 = vand.u32 %v1036, 4294901760
        %v1220 = vsub.f32 %v1036, %v1219
        %1221 = vmatpush.msra.mxu0 %v1220
        %v1222 = vand.u32 %v1035, 4294901760
        %v1223 = vsub.f32 %v1035, %v1222
        %1224 = vmatpush.msra.mxu0 %v1223
        %v1225 = vand.u32 %v1034, 4294901760
        %v1226 = vsub.f32 %v1034, %v1225
        %1227 = vmatpush.msra.mxu0 %v1226
        %v1228 = vand.u32 %v1033, 4294901760
        %v1229 = vsub.f32 %v1033, %v1228
        %1230 = vmatpush.msra.mxu0 %v1229
        %v1231 = vand.u32 %v1032, 4294901760
        %v1232 = vsub.f32 %v1032, %v1231
        %1233 = vmatpush.msra.mxu0 %v1232
        %v1234 = vand.u32 %v1031, 4294901760
        %v1235 = vsub.f32 %v1031, %v1234
        %1236 = vmatpush.msra.mxu0 %v1235
        %v1237 = vand.u32 %v1030, 4294901760
        %v1238 = vsub.f32 %v1030, %v1237
        %1239 = vmatpush.msra.mxu0 %v1238
        %v1240 = vand.u32 %v1029, 4294901760
        %v1241 = vsub.f32 %v1029, %v1240
        %1242 = vmatmul.f32.gmra.mxu0 %v1241
        %v1243 = vpop.f32.mrf.mxu0
        %v1244 = vadd.f32 %v1190, %v1243
        %1245 = vdwg.mxu0
        %v1246 = vand.u32 %v1045, 4294901760
        %1247 = vmatpush.msra.mxu0 %v1246
        %v1248 = vand.u32 %v1044, 4294901760
        %1249 = vmatpush.msra.mxu0 %v1248
        %v1250 = vand.u32 %v1043, 4294901760
        %1251 = vmatpush.msra.mxu0 %v1250
        %v1252 = vand.u32 %v1042, 4294901760
        %1253 = vmatpush.msra.mxu0 %v1252
        %v1254 = vand.u32 %v1041, 4294901760
        %1255 = vmatpush.msra.mxu0 %v1254
        %v1256 = vand.u32 %v1040, 4294901760
        %1257 = vmatpush.msra.mxu0 %v1256
        %v1258 = vand.u32 %v1039, 4294901760
        %1259 = vmatpush.msra.mxu0 %v1258
        %v1260 = vand.u32 %v1038, 4294901760
        %1261 = vmatpush.msra.mxu0 %v1260
        %v1262 = vand.u32 %v1037, 4294901760
        %1263 = vmatpush.msra.mxu0 %v1262
        %v1264 = vand.u32 %v1036, 4294901760
        %1265 = vmatpush.msra.mxu0 %v1264
        %v1266 = vand.u32 %v1035, 4294901760
        %1267 = vmatpush.msra.mxu0 %v1266
        %v1268 = vand.u32 %v1034, 4294901760
        %1269 = vmatpush.msra.mxu0 %v1268
        %v1270 = vand.u32 %v1033, 4294901760
        %1271 = vmatpush.msra.mxu0 %v1270
        %v1272 = vand.u32 %v1032, 4294901760
        %1273 = vmatpush.msra.mxu0 %v1272
        %v1274 = vand.u32 %v1031, 4294901760
        %1275 = vmatpush.msra.mxu0 %v1274
        %v1276 = vand.u32 %v1030, 4294901760
        %1277 = vmatpush.msra.mxu0 %v1276
        %v1278 = vand.u32 %v1029, 4294901760
        %v1279 = vsub.f32 %v1029, %v1278
        %v1280 = vand.u32 %v1279, 4294901760
        %1281 = vmatmul.f32.gmra.mxu0 %v1280
        %v1282 = vpop.f32.mrf.mxu0
        %v1283 = vadd.f32 %v1244, %v1282
        %1284 = vdwg.mxu0
        %v1285 = vand.u32 %v1045, 4294901760
        %v1286 = vsub.f32 %v1045, %v1285
        %v1287 = vand.u32 %v1286, 4294901760
        %1288 = vmatpush.msra.mxu0 %v1287
        %v1289 = vand.u32 %v1044, 4294901760
        %v1290 = vsub.f32 %v1044, %v1289
        %v1291 = vand.u32 %v1290, 4294901760
        %1292 = vmatpush.msra.mxu0 %v1291
        %v1293 = vand.u32 %v1043, 4294901760
        %v1294 = vsub.f32 %v1043, %v1293
        %v1295 = vand.u32 %v1294, 4294901760
        %1296 = vmatpush.msra.mxu0 %v1295
        %v1297 = vand.u32 %v1042, 4294901760
        %v1298 = vsub.f32 %v1042, %v1297
        %v1299 = vand.u32 %v1298, 4294901760
        %1300 = vmatpush.msra.mxu0 %v1299
        %v1301 = vand.u32 %v1041, 4294901760
        %v1302 = vsub.f32 %v1041, %v1301
        %v1303 = vand.u32 %v1302, 4294901760
        %1304 = vmatpush.msra.mxu0 %v1303
        %v1305 = vand.u32 %v1040, 4294901760
        %v1306 = vsub.f32 %v1040, %v1305
        %v1307 = vand.u32 %v1306, 4294901760
        %1308 = vmatpush.msra.mxu0 %v1307
        %v1309 = vand.u32 %v1039, 4294901760
        %v1310 = vsub.f32 %v1039, %v1309
        %v1311 = vand.u32 %v1310, 4294901760
        %1312 = vmatpush.msra.mxu0 %v1311
        %v1313 = vand.u32 %v1038, 4294901760
        %v1314 = vsub.f32 %v1038, %v1313
        %v1315 = vand.u32 %v1314, 4294901760
        %1316 = vmatpush.msra.mxu0 %v1315
        %v1317 = vand.u32 %v1037, 4294901760
        %v1318 = vsub.f32 %v1037, %v1317
        %v1319 = vand.u32 %v1318, 4294901760
        %1320 = vmatpush.msra.mxu0 %v1319
        %v1321 = vand.u32 %v1036, 4294901760
        %v1322 = vsub.f32 %v1036, %v1321
        %v1323 = vand.u32 %v1322, 4294901760
        %1324 = vmatpush.msra.mxu0 %v1323
        %v1325 = vand.u32 %v1035, 4294901760
        %v1326 = vsub.f32 %v1035, %v1325
        %v1327 = vand.u32 %v1326, 4294901760
        %1328 = vmatpush.msra.mxu0 %v1327
        %v1329 = vand.u32 %v1034, 4294901760
        %v1330 = vsub.f32 %v1034, %v1329
        %v1331 = vand.u32 %v1330, 4294901760
        %1332 = vmatpush.msra.mxu0 %v1331
        %v1333 = vand.u32 %v1033, 4294901760
        %v1334 = vsub.f32 %v1033, %v1333
        %v1335 = vand.u32 %v1334, 4294901760
        %1336 = vmatpush.msra.mxu0 %v1335
        %v1337 = vand.u32 %v1032, 4294901760
        %v1338 = vsub.f32 %v1032, %v1337
        %v1339 = vand.u32 %v1338, 4294901760
        %1340 = vmatpush.msra.mxu0 %v1339
        %v1341 = vand.u32 %v1031, 4294901760
        %v1342 = vsub.f32 %v1031, %v1341
        %v1343 = vand.u32 %v1342, 4294901760
        %1344 = vmatpush.msra.mxu0 %v1343
        %v1345 = vand.u32 %v1030, 4294901760
        %v1346 = vsub.f32 %v1030, %v1345
        %v1347 = vand.u32 %v1346, 4294901760
        %1348 = vmatpush.msra.mxu0 %v1347
        %v1349 = vand.u32 %v1029, 4294901760
        %1350 = vmatmul.f32.gmra.mxu0 %v1349
        %v1351 = vpop.f32.mrf.mxu0
        %v1352 = vadd.f32 %v1283, %v1351
        %1353 = vdwg.mxu0
        %v1354 = vand.u32 %v1045, 4294901760
        %1355 = vmatpush.msra.mxu0 %v1354
        %v1356 = vand.u32 %v1044, 4294901760
        %1357 = vmatpush.msra.mxu0 %v1356
        %v1358 = vand.u32 %v1043, 4294901760
        %1359 = vmatpush.msra.mxu0 %v1358
        %v1360 = vand.u32 %v1042, 4294901760
        %1361 = vmatpush.msra.mxu0 %v1360
        %v1362 = vand.u32 %v1041, 4294901760
        %1363 = vmatpush.msra.mxu0 %v1362
        %v1364 = vand.u32 %v1040, 4294901760
        %1365 = vmatpush.msra.mxu0 %v1364
        %v1366 = vand.u32 %v1039, 4294901760
        %1367 = vmatpush.msra.mxu0 %v1366
        %v1368 = vand.u32 %v1038, 4294901760
        %1369 = vmatpush.msra.mxu0 %v1368
        %v1370 = vand.u32 %v1037, 4294901760
        %1371 = vmatpush.msra.mxu0 %v1370
        %v1372 = vand.u32 %v1036, 4294901760
        %1373 = vmatpush.msra.mxu0 %v1372
        %v1374 = vand.u32 %v1035, 4294901760
        %1375 = vmatpush.msra.mxu0 %v1374
        %v1376 = vand.u32 %v1034, 4294901760
        %1377 = vmatpush.msra.mxu0 %v1376
        %v1378 = vand.u32 %v1033, 4294901760
        %1379 = vmatpush.msra.mxu0 %v1378
        %v1380 = vand.u32 %v1032, 4294901760
        %1381 = vmatpush.msra.mxu0 %v1380
        %v1382 = vand.u32 %v1031, 4294901760
        %1383 = vmatpush.msra.mxu0 %v1382
        %v1384 = vand.u32 %v1030, 4294901760
        %1385 = vmatpush.msra.mxu0 %v1384
        %v1386 = vand.u32 %v1029, 4294901760
        %1387 = vmatmul.f32.gmra.mxu0 %v1386
        %v1388 = vpop.f32.mrf.mxu0
        %v1389 = vadd.f32 %v1352, %v1388
        %1390 = vdwg.mxu0
        %v1391 = vmax.f32 %v1389, 0.0
        %v1392 = vld [vmem:[#allocation8] sm:$0xff]
        %v1393 = vld [vmem:[#allocation8 + $0x8] sm:$0xff]
        %v1394 = vld [vmem:[#allocation8 + $0x10] sm:$0xff]
        %v1395 = vld [vmem:[#allocation8 + $0x18] sm:$0xff]
        %v1396 = vld [vmem:[#allocation8 + $0x20] sm:$0xff]
        %v1397 = vld [vmem:[#allocation8 + $0x28] sm:$0xff]
        %v1398 = vld [vmem:[#allocation8 + $0x30] sm:$0xff]
        %v1399 = vld [vmem:[#allocation8 + $0x38] sm:$0xff]
        %v1400 = vld [vmem:[#allocation8 + $0x40] sm:$0xff]
        %v1401 = vld [vmem:[#allocation8 + $0x48] sm:$0xff]
        %v1402 = vld [vmem:[#allocation8 + $0x50] sm:$0xff]
        %v1403 = vld [vmem:[#allocation8 + $0x58] sm:$0xff]
        %v1404 = vld [vmem:[#allocation8 + $0x60] sm:$0xff]
        %v1405 = vld [vmem:[#allocation8 + $0x68] sm:$0xff]
        %v1406 = vld [vmem:[#allocation8 + $0x70] sm:$0xff]
        %v1407 = vld [vmem:[#allocation8 + $0x78] sm:$0xff]
        %v1408 = vld [vmem:[%s6] sm:$0x1]
        %v1410 = vperm.slane %v1408, 0
        %v1412 = vand.u32 %v1407, 4294901760
        %1413 = vmatpush.msra.mxu0 %v1412
        %v1414 = vand.u32 %v1406, 4294901760
        %1415 = vmatpush.msra.mxu0 %v1414
        %v1416 = vand.u32 %v1405, 4294901760
        %1417 = vmatpush.msra.mxu0 %v1416
        %v1418 = vand.u32 %v1404, 4294901760
        %1419 = vmatpush.msra.mxu0 %v1418
        %v1420 = vand.u32 %v1403, 4294901760
        %1421 = vmatpush.msra.mxu0 %v1420
        %v1422 = vand.u32 %v1402, 4294901760
        %1423 = vmatpush.msra.mxu0 %v1422
        %v1424 = vand.u32 %v1401, 4294901760
        %1425 = vmatpush.msra.mxu0 %v1424
        %v1426 = vand.u32 %v1400, 4294901760
        %1427 = vmatpush.msra.mxu0 %v1426
        %v1428 = vand.u32 %v1399, 4294901760
        %1429 = vmatpush.msra.mxu0 %v1428
        %v1430 = vand.u32 %v1398, 4294901760
        %1431 = vmatpush.msra.mxu0 %v1430
        %v1432 = vand.u32 %v1397, 4294901760
        %1433 = vmatpush.msra.mxu0 %v1432
        %v1434 = vand.u32 %v1396, 4294901760
        %1435 = vmatpush.msra.mxu0 %v1434
        %v1436 = vand.u32 %v1395, 4294901760
        %1437 = vmatpush.msra.mxu0 %v1436
        %v1438 = vand.u32 %v1394, 4294901760
        %1439 = vmatpush.msra.mxu0 %v1438
        %v1440 = vand.u32 %v1393, 4294901760
        %1441 = vmatpush.msra.mxu0 %v1440
        %v1442 = vand.u32 %v1392, 4294901760
        %1443 = vmatpush.msra.mxu0 %v1442
        %v1444 = vand.u32 %v1391, 4294901760
        %v1445 = vsub.f32 %v1391, %v1444
        %v1446 = vand.u32 %v1445, 4294901760
        %v1447 = vsub.f32 %v1445, %v1446
        %v1448 = vand.u32 %v1447, 4294901760
        %1449 = vmatmul.f32.gmra.mxu0 %v1448
        %v1450 = vpop.f32.mrf.mxu0
        %v1451 = vadd.f32 %v1410, %v1450
        %1452 = vdwg.mxu0
        %v1453 = vand.u32 %v1407, 4294901760
        %v1454 = vsub.f32 %v1407, %v1453
        %v1455 = vand.u32 %v1454, 4294901760
        %v1456 = vsub.f32 %v1454, %v1455
        %v1457 = vand.u32 %v1456, 4294901760
        %1458 = vmatpush.msra.mxu0 %v1457
        %v1459 = vand.u32 %v1406, 4294901760
        %v1460 = vsub.f32 %v1406, %v1459
        %v1461 = vand.u32 %v1460, 4294901760
        %v1462 = vsub.f32 %v1460, %v1461
        %v1463 = vand.u32 %v1462, 4294901760
        %1464 = vmatpush.msra.mxu0 %v1463
        %v1465 = vand.u32 %v1405, 4294901760
        %v1466 = vsub.f32 %v1405, %v1465
        %v1467 = vand.u32 %v1466, 4294901760
        %v1468 = vsub.f32 %v1466, %v1467
        %v1469 = vand.u32 %v1468, 4294901760
        %1470 = vmatpush.msra.mxu0 %v1469
        %v1471 = vand.u32 %v1404, 4294901760
        %v1472 = vsub.f32 %v1404, %v1471
        %v1473 = vand.u32 %v1472, 4294901760
        %v1474 = vsub.f32 %v1472, %v1473
        %v1475 = vand.u32 %v1474, 4294901760
        %1476 = vmatpush.msra.mxu0 %v1475
        %v1477 = vand.u32 %v1403, 4294901760
        %v1478 = vsub.f32 %v1403, %v1477
        %v1479 = vand.u32 %v1478, 4294901760
        %v1480 = vsub.f32 %v1478, %v1479
        %v1481 = vand.u32 %v1480, 4294901760
        %1482 = vmatpush.msra.mxu0 %v1481
        %v1483 = vand.u32 %v1402, 4294901760
        %v1484 = vsub.f32 %v1402, %v1483
        %v1485 = vand.u32 %v1484, 4294901760
        %v1486 = vsub.f32 %v1484, %v1485
        %v1487 = vand.u32 %v1486, 4294901760
        %1488 = vmatpush.msra.mxu0 %v1487
        %v1489 = vand.u32 %v1401, 4294901760
        %v1490 = vsub.f32 %v1401, %v1489
        %v1491 = vand.u32 %v1490, 4294901760
        %v1492 = vsub.f32 %v1490, %v1491
        %v1493 = vand.u32 %v1492, 4294901760
        %1494 = vmatpush.msra.mxu0 %v1493
        %v1495 = vand.u32 %v1400, 4294901760
        %v1496 = vsub.f32 %v1400, %v1495
        %v1497 = vand.u32 %v1496, 4294901760
        %v1498 = vsub.f32 %v1496, %v1497
        %v1499 = vand.u32 %v1498, 4294901760
        %1500 = vmatpush.msra.mxu0 %v1499
        %v1501 = vand.u32 %v1399, 4294901760
        %v1502 = vsub.f32 %v1399, %v1501
        %v1503 = vand.u32 %v1502, 4294901760
        %v1504 = vsub.f32 %v1502, %v1503
        %v1505 = vand.u32 %v1504, 4294901760
        %1506 = vmatpush.msra.mxu0 %v1505
        %v1507 = vand.u32 %v1398, 4294901760
        %v1508 = vsub.f32 %v1398, %v1507
        %v1509 = vand.u32 %v1508, 4294901760
        %v1510 = vsub.f32 %v1508, %v1509
        %v1511 = vand.u32 %v1510, 4294901760
        %1512 = vmatpush.msra.mxu0 %v1511
        %v1513 = vand.u32 %v1397, 4294901760
        %v1514 = vsub.f32 %v1397, %v1513
        %v1515 = vand.u32 %v1514, 4294901760
        %v1516 = vsub.f32 %v1514, %v1515
        %v1517 = vand.u32 %v1516, 4294901760
        %1518 = vmatpush.msra.mxu0 %v1517
        %v1519 = vand.u32 %v1396, 4294901760
        %v1520 = vsub.f32 %v1396, %v1519
        %v1521 = vand.u32 %v1520, 4294901760
        %v1522 = vsub.f32 %v1520, %v1521
        %v1523 = vand.u32 %v1522, 4294901760
        %1524 = vmatpush.msra.mxu0 %v1523
        %v1525 = vand.u32 %v1395, 4294901760
        %v1526 = vsub.f32 %v1395, %v1525
        %v1527 = vand.u32 %v1526, 4294901760
        %v1528 = vsub.f32 %v1526, %v1527
        %v1529 = vand.u32 %v1528, 4294901760
        %1530 = vmatpush.msra.mxu0 %v1529
        %v1531 = vand.u32 %v1394, 4294901760
        %v1532 = vsub.f32 %v1394, %v1531
        %v1533 = vand.u32 %v1532, 4294901760
        %v1534 = vsub.f32 %v1532, %v1533
        %v1535 = vand.u32 %v1534, 4294901760
        %1536 = vmatpush.msra.mxu0 %v1535
        %v1537 = vand.u32 %v1393, 4294901760
        %v1538 = vsub.f32 %v1393, %v1537
        %v1539 = vand.u32 %v1538, 4294901760
        %v1540 = vsub.f32 %v1538, %v1539
        %v1541 = vand.u32 %v1540, 4294901760
        %1542 = vmatpush.msra.mxu0 %v1541
        %v1543 = vand.u32 %v1392, 4294901760
        %v1544 = vsub.f32 %v1392, %v1543
        %v1545 = vand.u32 %v1544, 4294901760
        %v1546 = vsub.f32 %v1544, %v1545
        %v1547 = vand.u32 %v1546, 4294901760
        %1548 = vmatpush.msra.mxu0 %v1547
        %v1549 = vand.u32 %v1391, 4294901760
        %1550 = vmatmul.f32.gmra.mxu0 %v1549
        %v1551 = vpop.f32.mrf.mxu0
        %v1552 = vadd.f32 %v1451, %v1551
        %1553 = vdwg.mxu0
        %v1554 = vand.u32 %v1407, 4294901760
        %v1555 = vsub.f32 %v1407, %v1554
        %1556 = vmatpush.msra.mxu0 %v1555
        %v1557 = vand.u32 %v1406, 4294901760
        %v1558 = vsub.f32 %v1406, %v1557
        %1559 = vmatpush.msra.mxu0 %v1558
        %v1560 = vand.u32 %v1405, 4294901760
        %v1561 = vsub.f32 %v1405, %v1560
        %1562 = vmatpush.msra.mxu0 %v1561
        %v1563 = vand.u32 %v1404, 4294901760
        %v1564 = vsub.f32 %v1404, %v1563
        %1565 = vmatpush.msra.mxu0 %v1564
        %v1566 = vand.u32 %v1403, 4294901760
        %v1567 = vsub.f32 %v1403, %v1566
        %1568 = vmatpush.msra.mxu0 %v1567
        %v1569 = vand.u32 %v1402, 4294901760
        %v1570 = vsub.f32 %v1402, %v1569
        %1571 = vmatpush.msra.mxu0 %v1570
        %v1572 = vand.u32 %v1401, 4294901760
        %v1573 = vsub.f32 %v1401, %v1572
        %1574 = vmatpush.msra.mxu0 %v1573
        %v1575 = vand.u32 %v1400, 4294901760
        %v1576 = vsub.f32 %v1400, %v1575
        %1577 = vmatpush.msra.mxu0 %v1576
        %v1578 = vand.u32 %v1399, 4294901760
        %v1579 = vsub.f32 %v1399, %v1578
        %1580 = vmatpush.msra.mxu0 %v1579
        %v1581 = vand.u32 %v1398, 4294901760
        %v1582 = vsub.f32 %v1398, %v1581
        %1583 = vmatpush.msra.mxu0 %v1582
        %v1584 = vand.u32 %v1397, 4294901760
        %v1585 = vsub.f32 %v1397, %v1584
        %1586 = vmatpush.msra.mxu0 %v1585
        %v1587 = vand.u32 %v1396, 4294901760
        %v1588 = vsub.f32 %v1396, %v1587
        %1589 = vmatpush.msra.mxu0 %v1588
        %v1590 = vand.u32 %v1395, 4294901760
        %v1591 = vsub.f32 %v1395, %v1590
        %1592 = vmatpush.msra.mxu0 %v1591
        %v1593 = vand.u32 %v1394, 4294901760
        %v1594 = vsub.f32 %v1394, %v1593
        %1595 = vmatpush.msra.mxu0 %v1594
        %v1596 = vand.u32 %v1393, 4294901760
        %v1597 = vsub.f32 %v1393, %v1596
        %1598 = vmatpush.msra.mxu0 %v1597
        %v1599 = vand.u32 %v1392, 4294901760
        %v1600 = vsub.f32 %v1392, %v1599
        %1601 = vmatpush.msra.mxu0 %v1600
        %v1602 = vand.u32 %v1391, 4294901760
        %v1603 = vsub.f32 %v1391, %v1602
        %1604 = vmatmul.f32.gmra.mxu0 %v1603
        %v1605 = vpop.f32.mrf.mxu0
        %v1606 = vadd.f32 %v1552, %v1605
        %1607 = vdwg.mxu0
        %v1608 = vand.u32 %v1407, 4294901760
        %1609 = vmatpush.msra.mxu0 %v1608
        %v1610 = vand.u32 %v1406, 4294901760
        %1611 = vmatpush.msra.mxu0 %v1610
        %v1612 = vand.u32 %v1405, 4294901760
        %1613 = vmatpush.msra.mxu0 %v1612
        %v1614 = vand.u32 %v1404, 4294901760
        %1615 = vmatpush.msra.mxu0 %v1614
        %v1616 = vand.u32 %v1403, 4294901760
        %1617 = vmatpush.msra.mxu0 %v1616
        %v1618 = vand.u32 %v1402, 4294901760
        %1619 = vmatpush.msra.mxu0 %v1618
        %v1620 = vand.u32 %v1401, 4294901760
        %1621 = vmatpush.msra.mxu0 %v1620
        %v1622 = vand.u32 %v1400, 4294901760
        %1623 = vmatpush.msra.mxu0 %v1622
        %v1624 = vand.u32 %v1399, 4294901760
        %1625 = vmatpush.msra.mxu0 %v1624
        %v1626 = vand.u32 %v1398, 4294901760
        %1627 = vmatpush.msra.mxu0 %v1626
        %v1628 = vand.u32 %v1397, 4294901760
        %1629 = vmatpush.msra.mxu0 %v1628
        %v1630 = vand.u32 %v1396, 4294901760
        %1631 = vmatpush.msra.mxu0 %v1630
        %v1632 = vand.u32 %v1395, 4294901760
        %1633 = vmatpush.msra.mxu0 %v1632
        %v1634 = vand.u32 %v1394, 4294901760
        %1635 = vmatpush.msra.mxu0 %v1634
        %v1636 = vand.u32 %v1393, 4294901760
        %1637 = vmatpush.msra.mxu0 %v1636
        %v1638 = vand.u32 %v1392, 4294901760
        %1639 = vmatpush.msra.mxu0 %v1638
        %v1640 = vand.u32 %v1391, 4294901760
        %v1641 = vsub.f32 %v1391, %v1640
        %v1642 = vand.u32 %v1641, 4294901760
        %1643 = vmatmul.f32.gmra.mxu0 %v1642
        %v1644 = vpop.f32.mrf.mxu0
        %v1645 = vadd.f32 %v1606, %v1644
        %1646 = vdwg.mxu0
        %v1647 = vand.u32 %v1407, 4294901760
        %v1648 = vsub.f32 %v1407, %v1647
        %v1649 = vand.u32 %v1648, 4294901760
        %1650 = vmatpush.msra.mxu0 %v1649
        %v1651 = vand.u32 %v1406, 4294901760
        %v1652 = vsub.f32 %v1406, %v1651
        %v1653 = vand.u32 %v1652, 4294901760
        %1654 = vmatpush.msra.mxu0 %v1653
        %v1655 = vand.u32 %v1405, 4294901760
        %v1656 = vsub.f32 %v1405, %v1655
        %v1657 = vand.u32 %v1656, 4294901760
        %1658 = vmatpush.msra.mxu0 %v1657
        %v1659 = vand.u32 %v1404, 4294901760
        %v1660 = vsub.f32 %v1404, %v1659
        %v1661 = vand.u32 %v1660, 4294901760
        %1662 = vmatpush.msra.mxu0 %v1661
        %v1663 = vand.u32 %v1403, 4294901760
        %v1664 = vsub.f32 %v1403, %v1663
        %v1665 = vand.u32 %v1664, 4294901760
        %1666 = vmatpush.msra.mxu0 %v1665
        %v1667 = vand.u32 %v1402, 4294901760
        %v1668 = vsub.f32 %v1402, %v1667
        %v1669 = vand.u32 %v1668, 4294901760
        %1670 = vmatpush.msra.mxu0 %v1669
        %v1671 = vand.u32 %v1401, 4294901760
        %v1672 = vsub.f32 %v1401, %v1671
        %v1673 = vand.u32 %v1672, 4294901760
        %1674 = vmatpush.msra.mxu0 %v1673
        %v1675 = vand.u32 %v1400, 4294901760
        %v1676 = vsub.f32 %v1400, %v1675
        %v1677 = vand.u32 %v1676, 4294901760
        %1678 = vmatpush.msra.mxu0 %v1677
        %v1679 = vand.u32 %v1399, 4294901760
        %v1680 = vsub.f32 %v1399, %v1679
        %v1681 = vand.u32 %v1680, 4294901760
        %1682 = vmatpush.msra.mxu0 %v1681
        %v1683 = vand.u32 %v1398, 4294901760
        %v1684 = vsub.f32 %v1398, %v1683
        %v1685 = vand.u32 %v1684, 4294901760
        %1686 = vmatpush.msra.mxu0 %v1685
        %v1687 = vand.u32 %v1397, 4294901760
        %v1688 = vsub.f32 %v1397, %v1687
        %v1689 = vand.u32 %v1688, 4294901760
        %1690 = vmatpush.msra.mxu0 %v1689
        %v1691 = vand.u32 %v1396, 4294901760
        %v1692 = vsub.f32 %v1396, %v1691
        %v1693 = vand.u32 %v1692, 4294901760
        %1694 = vmatpush.msra.mxu0 %v1693
        %v1695 = vand.u32 %v1395, 4294901760
        %v1696 = vsub.f32 %v1395, %v1695
        %v1697 = vand.u32 %v1696, 4294901760
        %1698 = vmatpush.msra.mxu0 %v1697
        %v1699 = vand.u32 %v1394, 4294901760
        %v1700 = vsub.f32 %v1394, %v1699
        %v1701 = vand.u32 %v1700, 4294901760
        %1702 = vmatpush.msra.mxu0 %v1701
        %v1703 = vand.u32 %v1393, 4294901760
        %v1704 = vsub.f32 %v1393, %v1703
        %v1705 = vand.u32 %v1704, 4294901760
        %1706 = vmatpush.msra.mxu0 %v1705
        %v1707 = vand.u32 %v1392, 4294901760
        %v1708 = vsub.f32 %v1392, %v1707
        %v1709 = vand.u32 %v1708, 4294901760
        %1710 = vmatpush.msra.mxu0 %v1709
        %v1711 = vand.u32 %v1391, 4294901760
        %1712 = vmatmul.f32.gmra.mxu0 %v1711
        %v1713 = vpop.f32.mrf.mxu0
        %v1714 = vadd.f32 %v1645, %v1713
        %1715 = vdwg.mxu0
        %v1716 = vand.u32 %v1407, 4294901760
        %1717 = vmatpush.msra.mxu0 %v1716
        %v1718 = vand.u32 %v1406, 4294901760
        %1719 = vmatpush.msra.mxu0 %v1718
        %v1720 = vand.u32 %v1405, 4294901760
        %1721 = vmatpush.msra.mxu0 %v1720
        %v1722 = vand.u32 %v1404, 4294901760
        %1723 = vmatpush.msra.mxu0 %v1722
        %v1724 = vand.u32 %v1403, 4294901760
        %1725 = vmatpush.msra.mxu0 %v1724
        %v1726 = vand.u32 %v1402, 4294901760
        %1727 = vmatpush.msra.mxu0 %v1726
        %v1728 = vand.u32 %v1401, 4294901760
        %1729 = vmatpush.msra.mxu0 %v1728
        %v1730 = vand.u32 %v1400, 4294901760
        %1731 = vmatpush.msra.mxu0 %v1730
        %v1732 = vand.u32 %v1399, 4294901760
        %1733 = vmatpush.msra.mxu0 %v1732
        %v1734 = vand.u32 %v1398, 4294901760
        %1735 = vmatpush.msra.mxu0 %v1734
        %v1736 = vand.u32 %v1397, 4294901760
        %1737 = vmatpush.msra.mxu0 %v1736
        %v1738 = vand.u32 %v1396, 4294901760
        %1739 = vmatpush.msra.mxu0 %v1738
        %v1740 = vand.u32 %v1395, 4294901760
        %1741 = vmatpush.msra.mxu0 %v1740
        %v1742 = vand.u32 %v1394, 4294901760
        %1743 = vmatpush.msra.mxu0 %v1742
        %v1744 = vand.u32 %v1393, 4294901760
        %1745 = vmatpush.msra.mxu0 %v1744
        %v1746 = vand.u32 %v1392, 4294901760
        %1747 = vmatpush.msra.mxu0 %v1746
        %v1748 = vand.u32 %v1391, 4294901760
        %1749 = vmatmul.f32.gmra.mxu0 %v1748
        %v1750 = vpop.f32.mrf.mxu0
        %v1751 = vadd.f32 %v1714, %v1750
        %1752 = vdwg.mxu0
        %v1753 = vmax.f32 %v1751, 0.0
        %v1754 = vld [vmem:[#allocation10] sm:$0xff]
        %v1755 = vld [vmem:[#allocation10 + $0x8] sm:$0xff]
        %v1756 = vld [vmem:[#allocation10 + $0x10] sm:$0xff]
        %v1757 = vld [vmem:[#allocation10 + $0x18] sm:$0xff]
        %v1758 = vld [vmem:[#allocation10 + $0x20] sm:$0xff]
        %v1759 = vld [vmem:[#allocation10 + $0x28] sm:$0xff]
        %v1760 = vld [vmem:[#allocation10 + $0x30] sm:$0xff]
        %v1761 = vld [vmem:[#allocation10 + $0x38] sm:$0xff]
        %v1762 = vld [vmem:[#allocation10 + $0x40] sm:$0xff]
        %v1763 = vld [vmem:[#allocation10 + $0x48] sm:$0xff]
        %v1764 = vld [vmem:[#allocation10 + $0x50] sm:$0xff]
        %v1765 = vld [vmem:[#allocation10 + $0x58] sm:$0xff]
        %v1766 = vld [vmem:[#allocation10 + $0x60] sm:$0xff]
        %v1767 = vld [vmem:[#allocation10 + $0x68] sm:$0xff]
        %v1768 = vld [vmem:[#allocation10 + $0x70] sm:$0xff]
        %v1769 = vld [vmem:[#allocation10 + $0x78] sm:$0xff]
        %v1770 = vld [vmem:[%s8] sm:$0x1]
        %v1772 = vperm.slane %v1770, 0
        %v1774 = vand.u32 %v1769, 4294901760
        %1775 = vmatpush.msra.mxu0 %v1774
        %v1776 = vand.u32 %v1768, 4294901760
        %1777 = vmatpush.msra.mxu0 %v1776
        %v1778 = vand.u32 %v1767, 4294901760
        %1779 = vmatpush.msra.mxu0 %v1778
        %v1780 = vand.u32 %v1766, 4294901760
        %1781 = vmatpush.msra.mxu0 %v1780
        %v1782 = vand.u32 %v1765, 4294901760
        %1783 = vmatpush.msra.mxu0 %v1782
        %v1784 = vand.u32 %v1764, 4294901760
        %1785 = vmatpush.msra.mxu0 %v1784
        %v1786 = vand.u32 %v1763, 4294901760
        %1787 = vmatpush.msra.mxu0 %v1786
        %v1788 = vand.u32 %v1762, 4294901760
        %1789 = vmatpush.msra.mxu0 %v1788
        %v1790 = vand.u32 %v1761, 4294901760
        %1791 = vmatpush.msra.mxu0 %v1790
        %v1792 = vand.u32 %v1760, 4294901760
        %1793 = vmatpush.msra.mxu0 %v1792
        %v1794 = vand.u32 %v1759, 4294901760
        %1795 = vmatpush.msra.mxu0 %v1794
        %v1796 = vand.u32 %v1758, 4294901760
        %1797 = vmatpush.msra.mxu0 %v1796
        %v1798 = vand.u32 %v1757, 4294901760
        %1799 = vmatpush.msra.mxu0 %v1798
        %v1800 = vand.u32 %v1756, 4294901760
        %1801 = vmatpush.msra.mxu0 %v1800
        %v1802 = vand.u32 %v1755, 4294901760
        %1803 = vmatpush.msra.mxu0 %v1802
        %v1804 = vand.u32 %v1754, 4294901760
        %1805 = vmatpush.msra.mxu0 %v1804
        %v1806 = vand.u32 %v1753, 4294901760
        %v1807 = vsub.f32 %v1753, %v1806
        %v1808 = vand.u32 %v1807, 4294901760
        %v1809 = vsub.f32 %v1807, %v1808
        %v1810 = vand.u32 %v1809, 4294901760
        %1811 = vmatmul.f32.gmra.mxu0 %v1810
        %v1812 = vpop.f32.mrf.mxu0
        %v1813 = vadd.f32 %v1772, %v1812
        %1814 = vdwg.mxu0
        %v1815 = vand.u32 %v1769, 4294901760
        %v1816 = vsub.f32 %v1769, %v1815
        %v1817 = vand.u32 %v1816, 4294901760
        %v1818 = vsub.f32 %v1816, %v1817
        %v1819 = vand.u32 %v1818, 4294901760
        %1820 = vmatpush.msra.mxu0 %v1819
        %v1821 = vand.u32 %v1768, 4294901760
        %v1822 = vsub.f32 %v1768, %v1821
        %v1823 = vand.u32 %v1822, 4294901760
        %v1824 = vsub.f32 %v1822, %v1823
        %v1825 = vand.u32 %v1824, 4294901760
        %1826 = vmatpush.msra.mxu0 %v1825
        %v1827 = vand.u32 %v1767, 4294901760
        %v1828 = vsub.f32 %v1767, %v1827
        %v1829 = vand.u32 %v1828, 4294901760
        %v1830 = vsub.f32 %v1828, %v1829
        %v1831 = vand.u32 %v1830, 4294901760
        %1832 = vmatpush.msra.mxu0 %v1831
        %v1833 = vand.u32 %v1766, 4294901760
        %v1834 = vsub.f32 %v1766, %v1833
        %v1835 = vand.u32 %v1834, 4294901760
        %v1836 = vsub.f32 %v1834, %v1835
        %v1837 = vand.u32 %v1836, 4294901760
        %1838 = vmatpush.msra.mxu0 %v1837
        %v1839 = vand.u32 %v1765, 4294901760
        %v1840 = vsub.f32 %v1765, %v1839
        %v1841 = vand.u32 %v1840, 4294901760
        %v1842 = vsub.f32 %v1840, %v1841
        %v1843 = vand.u32 %v1842, 4294901760
        %1844 = vmatpush.msra.mxu0 %v1843
        %v1845 = vand.u32 %v1764, 4294901760
        %v1846 = vsub.f32 %v1764, %v1845
        %v1847 = vand.u32 %v1846, 4294901760
        %v1848 = vsub.f32 %v1846, %v1847
        %v1849 = vand.u32 %v1848, 4294901760
        %1850 = vmatpush.msra.mxu0 %v1849
        %v1851 = vand.u32 %v1763, 4294901760
        %v1852 = vsub.f32 %v1763, %v1851
        %v1853 = vand.u32 %v1852, 4294901760
        %v1854 = vsub.f32 %v1852, %v1853
        %v1855 = vand.u32 %v1854, 4294901760
        %1856 = vmatpush.msra.mxu0 %v1855
        %v1857 = vand.u32 %v1762, 4294901760
        %v1858 = vsub.f32 %v1762, %v1857
        %v1859 = vand.u32 %v1858, 4294901760
        %v1860 = vsub.f32 %v1858, %v1859
        %v1861 = vand.u32 %v1860, 4294901760
        %1862 = vmatpush.msra.mxu0 %v1861
        %v1863 = vand.u32 %v1761, 4294901760
        %v1864 = vsub.f32 %v1761, %v1863
        %v1865 = vand.u32 %v1864, 4294901760
        %v1866 = vsub.f32 %v1864, %v1865
        %v1867 = vand.u32 %v1866, 4294901760
        %1868 = vmatpush.msra.mxu0 %v1867
        %v1869 = vand.u32 %v1760, 4294901760
        %v1870 = vsub.f32 %v1760, %v1869
        %v1871 = vand.u32 %v1870, 4294901760
        %v1872 = vsub.f32 %v1870, %v1871
        %v1873 = vand.u32 %v1872, 4294901760
        %1874 = vmatpush.msra.mxu0 %v1873
        %v1875 = vand.u32 %v1759, 4294901760
        %v1876 = vsub.f32 %v1759, %v1875
        %v1877 = vand.u32 %v1876, 4294901760
        %v1878 = vsub.f32 %v1876, %v1877
        %v1879 = vand.u32 %v1878, 4294901760
        %1880 = vmatpush.msra.mxu0 %v1879
        %v1881 = vand.u32 %v1758, 4294901760
        %v1882 = vsub.f32 %v1758, %v1881
        %v1883 = vand.u32 %v1882, 4294901760
        %v1884 = vsub.f32 %v1882, %v1883
        %v1885 = vand.u32 %v1884, 4294901760
        %1886 = vmatpush.msra.mxu0 %v1885
        %v1887 = vand.u32 %v1757, 4294901760
        %v1888 = vsub.f32 %v1757, %v1887
        %v1889 = vand.u32 %v1888, 4294901760
        %v1890 = vsub.f32 %v1888, %v1889
        %v1891 = vand.u32 %v1890, 4294901760
        %1892 = vmatpush.msra.mxu0 %v1891
        %v1893 = vand.u32 %v1756, 4294901760
        %v1894 = vsub.f32 %v1756, %v1893
        %v1895 = vand.u32 %v1894, 4294901760
        %v1896 = vsub.f32 %v1894, %v1895
        %v1897 = vand.u32 %v1896, 4294901760
        %1898 = vmatpush.msra.mxu0 %v1897
        %v1899 = vand.u32 %v1755, 4294901760
        %v1900 = vsub.f32 %v1755, %v1899
        %v1901 = vand.u32 %v1900, 4294901760
        %v1902 = vsub.f32 %v1900, %v1901
        %v1903 = vand.u32 %v1902, 4294901760
        %1904 = vmatpush.msra.mxu0 %v1903
        %v1905 = vand.u32 %v1754, 4294901760
        %v1906 = vsub.f32 %v1754, %v1905
        %v1907 = vand.u32 %v1906, 4294901760
        %v1908 = vsub.f32 %v1906, %v1907
        %v1909 = vand.u32 %v1908, 4294901760
        %1910 = vmatpush.msra.mxu0 %v1909
        %v1911 = vand.u32 %v1753, 4294901760
        %1912 = vmatmul.f32.gmra.mxu0 %v1911
        %v1913 = vpop.f32.mrf.mxu0
        %v1914 = vadd.f32 %v1813, %v1913
        %1915 = vdwg.mxu0
        %v1916 = vand.u32 %v1769, 4294901760
        %v1917 = vsub.f32 %v1769, %v1916
        %1918 = vmatpush.msra.mxu0 %v1917
        %v1919 = vand.u32 %v1768, 4294901760
        %v1920 = vsub.f32 %v1768, %v1919
        %1921 = vmatpush.msra.mxu0 %v1920
        %v1922 = vand.u32 %v1767, 4294901760
        %v1923 = vsub.f32 %v1767, %v1922
        %1924 = vmatpush.msra.mxu0 %v1923
        %v1925 = vand.u32 %v1766, 4294901760
        %v1926 = vsub.f32 %v1766, %v1925
        %1927 = vmatpush.msra.mxu0 %v1926
        %v1928 = vand.u32 %v1765, 4294901760
        %v1929 = vsub.f32 %v1765, %v1928
        %1930 = vmatpush.msra.mxu0 %v1929
        %v1931 = vand.u32 %v1764, 4294901760
        %v1932 = vsub.f32 %v1764, %v1931
        %1933 = vmatpush.msra.mxu0 %v1932
        %v1934 = vand.u32 %v1763, 4294901760
        %v1935 = vsub.f32 %v1763, %v1934
        %1936 = vmatpush.msra.mxu0 %v1935
        %v1937 = vand.u32 %v1762, 4294901760
        %v1938 = vsub.f32 %v1762, %v1937
        %1939 = vmatpush.msra.mxu0 %v1938
        %v1940 = vand.u32 %v1761, 4294901760
        %v1941 = vsub.f32 %v1761, %v1940
        %1942 = vmatpush.msra.mxu0 %v1941
        %v1943 = vand.u32 %v1760, 4294901760
        %v1944 = vsub.f32 %v1760, %v1943
        %1945 = vmatpush.msra.mxu0 %v1944
        %v1946 = vand.u32 %v1759, 4294901760
        %v1947 = vsub.f32 %v1759, %v1946
        %1948 = vmatpush.msra.mxu0 %v1947
        %v1949 = vand.u32 %v1758, 4294901760
        %v1950 = vsub.f32 %v1758, %v1949
        %1951 = vmatpush.msra.mxu0 %v1950
        %v1952 = vand.u32 %v1757, 4294901760
        %v1953 = vsub.f32 %v1757, %v1952
        %1954 = vmatpush.msra.mxu0 %v1953
        %v1955 = vand.u32 %v1756, 4294901760
        %v1956 = vsub.f32 %v1756, %v1955
        %1957 = vmatpush.msra.mxu0 %v1956
        %v1958 = vand.u32 %v1755, 4294901760
        %v1959 = vsub.f32 %v1755, %v1958
        %1960 = vmatpush.msra.mxu0 %v1959
        %v1961 = vand.u32 %v1754, 4294901760
        %v1962 = vsub.f32 %v1754, %v1961
        %1963 = vmatpush.msra.mxu0 %v1962
        %v1964 = vand.u32 %v1753, 4294901760
        %v1965 = vsub.f32 %v1753, %v1964
        %1966 = vmatmul.f32.gmra.mxu0 %v1965
        %v1967 = vpop.f32.mrf.mxu0
        %v1968 = vadd.f32 %v1914, %v1967
        %1969 = vdwg.mxu0
        %v1970 = vand.u32 %v1769, 4294901760
        %1971 = vmatpush.msra.mxu0 %v1970
        %v1972 = vand.u32 %v1768, 4294901760
        %1973 = vmatpush.msra.mxu0 %v1972
        %v1974 = vand.u32 %v1767, 4294901760
        %1975 = vmatpush.msra.mxu0 %v1974
        %v1976 = vand.u32 %v1766, 4294901760
        %1977 = vmatpush.msra.mxu0 %v1976
        %v1978 = vand.u32 %v1765, 4294901760
        %1979 = vmatpush.msra.mxu0 %v1978
        %v1980 = vand.u32 %v1764, 4294901760
        %1981 = vmatpush.msra.mxu0 %v1980
        %v1982 = vand.u32 %v1763, 4294901760
        %1983 = vmatpush.msra.mxu0 %v1982
        %v1984 = vand.u32 %v1762, 4294901760
        %1985 = vmatpush.msra.mxu0 %v1984
        %v1986 = vand.u32 %v1761, 4294901760
        %1987 = vmatpush.msra.mxu0 %v1986
        %v1988 = vand.u32 %v1760, 4294901760
        %1989 = vmatpush.msra.mxu0 %v1988
        %v1990 = vand.u32 %v1759, 4294901760
        %1991 = vmatpush.msra.mxu0 %v1990
        %v1992 = vand.u32 %v1758, 4294901760
        %1993 = vmatpush.msra.mxu0 %v1992
        %v1994 = vand.u32 %v1757, 4294901760
        %1995 = vmatpush.msra.mxu0 %v1994
        %v1996 = vand.u32 %v1756, 4294901760
        %1997 = vmatpush.msra.mxu0 %v1996
        %v1998 = vand.u32 %v1755, 4294901760
        %1999 = vmatpush.msra.mxu0 %v1998
        %v2000 = vand.u32 %v1754, 4294901760
        %2001 = vmatpush.msra.mxu0 %v2000
        %v2002 = vand.u32 %v1753, 4294901760
        %v2003 = vsub.f32 %v1753, %v2002
        %v2004 = vand.u32 %v2003, 4294901760
        %2005 = vmatmul.f32.gmra.mxu0 %v2004
        %v2006 = vpop.f32.mrf.mxu0
        %v2007 = vadd.f32 %v1968, %v2006
        %2008 = vdwg.mxu0
        %v2009 = vand.u32 %v1769, 4294901760
        %v2010 = vsub.f32 %v1769, %v2009
        %v2011 = vand.u32 %v2010, 4294901760
        %2012 = vmatpush.msra.mxu0 %v2011
        %v2013 = vand.u32 %v1768, 4294901760
        %v2014 = vsub.f32 %v1768, %v2013
        %v2015 = vand.u32 %v2014, 4294901760
        %2016 = vmatpush.msra.mxu0 %v2015
        %v2017 = vand.u32 %v1767, 4294901760
        %v2018 = vsub.f32 %v1767, %v2017
        %v2019 = vand.u32 %v2018, 4294901760
        %2020 = vmatpush.msra.mxu0 %v2019
        %v2021 = vand.u32 %v1766, 4294901760
        %v2022 = vsub.f32 %v1766, %v2021
        %v2023 = vand.u32 %v2022, 4294901760
        %2024 = vmatpush.msra.mxu0 %v2023
        %v2025 = vand.u32 %v1765, 4294901760
        %v2026 = vsub.f32 %v1765, %v2025
        %v2027 = vand.u32 %v2026, 4294901760
        %2028 = vmatpush.msra.mxu0 %v2027
        %v2029 = vand.u32 %v1764, 4294901760
        %v2030 = vsub.f32 %v1764, %v2029
        %v2031 = vand.u32 %v2030, 4294901760
        %2032 = vmatpush.msra.mxu0 %v2031
        %v2033 = vand.u32 %v1763, 4294901760
        %v2034 = vsub.f32 %v1763, %v2033
        %v2035 = vand.u32 %v2034, 4294901760
        %2036 = vmatpush.msra.mxu0 %v2035
        %v2037 = vand.u32 %v1762, 4294901760
        %v2038 = vsub.f32 %v1762, %v2037
        %v2039 = vand.u32 %v2038, 4294901760
        %2040 = vmatpush.msra.mxu0 %v2039
        %v2041 = vand.u32 %v1761, 4294901760
        %v2042 = vsub.f32 %v1761, %v2041
        %v2043 = vand.u32 %v2042, 4294901760
        %2044 = vmatpush.msra.mxu0 %v2043
        %v2045 = vand.u32 %v1760, 4294901760
        %v2046 = vsub.f32 %v1760, %v2045
        %v2047 = vand.u32 %v2046, 4294901760
        %2048 = vmatpush.msra.mxu0 %v2047
        %v2049 = vand.u32 %v1759, 4294901760
        %v2050 = vsub.f32 %v1759, %v2049
        %v2051 = vand.u32 %v2050, 4294901760
        %2052 = vmatpush.msra.mxu0 %v2051
        %v2053 = vand.u32 %v1758, 4294901760
        %v2054 = vsub.f32 %v1758, %v2053
        %v2055 = vand.u32 %v2054, 4294901760
        %2056 = vmatpush.msra.mxu0 %v2055
        %v2057 = vand.u32 %v1757, 4294901760
        %v2058 = vsub.f32 %v1757, %v2057
        %v2059 = vand.u32 %v2058, 4294901760
        %2060 = vmatpush.msra.mxu0 %v2059
        %v2061 = vand.u32 %v1756, 4294901760
        %v2062 = vsub.f32 %v1756, %v2061
        %v2063 = vand.u32 %v2062, 4294901760
        %2064 = vmatpush.msra.mxu0 %v2063
        %v2065 = vand.u32 %v1755, 4294901760
        %v2066 = vsub.f32 %v1755, %v2065
        %v2067 = vand.u32 %v2066, 4294901760
        %2068 = vmatpush.msra.mxu0 %v2067
        %v2069 = vand.u32 %v1754, 4294901760
        %v2070 = vsub.f32 %v1754, %v2069
        %v2071 = vand.u32 %v2070, 4294901760
        %2072 = vmatpush.msra.mxu0 %v2071
        %v2073 = vand.u32 %v1753, 4294901760
        %2074 = vmatmul.f32.gmra.mxu0 %v2073
        %v2075 = vpop.f32.mrf.mxu0
        %v2076 = vadd.f32 %v2007, %v2075
        %2077 = vdwg.mxu0
        %v2078 = vand.u32 %v1769, 4294901760
        %2079 = vmatpush.msra.mxu0 %v2078
        %v2080 = vand.u32 %v1768, 4294901760
        %2081 = vmatpush.msra.mxu0 %v2080
        %v2082 = vand.u32 %v1767, 4294901760
        %2083 = vmatpush.msra.mxu0 %v2082
        %v2084 = vand.u32 %v1766, 4294901760
        %2085 = vmatpush.msra.mxu0 %v2084
        %v2086 = vand.u32 %v1765, 4294901760
        %2087 = vmatpush.msra.mxu0 %v2086
        %v2088 = vand.u32 %v1764, 4294901760
        %2089 = vmatpush.msra.mxu0 %v2088
        %v2090 = vand.u32 %v1763, 4294901760
        %2091 = vmatpush.msra.mxu0 %v2090
        %v2092 = vand.u32 %v1762, 4294901760
        %2093 = vmatpush.msra.mxu0 %v2092
        %v2094 = vand.u32 %v1761, 4294901760
        %2095 = vmatpush.msra.mxu0 %v2094
        %v2096 = vand.u32 %v1760, 4294901760
        %2097 = vmatpush.msra.mxu0 %v2096
        %v2098 = vand.u32 %v1759, 4294901760
        %2099 = vmatpush.msra.mxu0 %v2098
        %v2100 = vand.u32 %v1758, 4294901760
        %2101 = vmatpush.msra.mxu0 %v2100
        %v2102 = vand.u32 %v1757, 4294901760
        %2103 = vmatpush.msra.mxu0 %v2102
        %v2104 = vand.u32 %v1756, 4294901760
        %2105 = vmatpush.msra.mxu0 %v2104
        %v2106 = vand.u32 %v1755, 4294901760
        %2107 = vmatpush.msra.mxu0 %v2106
        %v2108 = vand.u32 %v1754, 4294901760
        %2109 = vmatpush.msra.mxu0 %v2108
        %v2110 = vand.u32 %v1753, 4294901760
        %2111 = vmatmul.f32.gmra.mxu0 %v2110
        %v2112 = vpop.f32.mrf.mxu0
        %v2113 = vadd.f32 %v2076, %v2112
        %2114 = vdwg.mxu0
        %v2115 = vmax.f32 %v2113, 0.0
        %2116 = vst [vmem:[%s416] sm:$0xff] %v2115
        %s2117 = sand.u32 %s230, 1
        %s2118 = scalar_lea.sflag [#allocation4], %s2117
        %s2119 = sand.u32 %s230, 1
        %s2120 = smul.addr %s2119, 8
        %s2121 = scalar_lea.vmem [#allocation11], %s2120
        // Predicated region
        $region77: #{tpu_custom_call.1} parent=55 // pred_check
          %p2122 = pneg %p240
        $region78: #{tpu_custom_call.1} parent=55 // pred_check_branch
          %2124 = sbr.rel (%p2122) target = $region80
        $region79: #{tpu_custom_call.1} parent=55 // pred_region
          %2126 = vsyncadd %s2118, 0
          %s2127 = smul.addr %s28, 8
          %s2128 = scalar_lea.hbm %s9, %s2127
          %s2130 = sshll.u32 %s2121, 4
          %s2131 = int_to_ptr.vmem [resolvable:$true] %s2130
          %s2132 = sshll.u32 %s2128, 4
          %s2133 = int_to_ptr.hbm [resolvable:$true] %s2132
          %2135 = dma.vmem_to_hbm [thread:$0]  %s2131, 128, %s2133, %s2118
        $region80: #{tpu_custom_call.1} parent=55 // pred_fallthru
          _
      $region56: #{tpu_custom_call.1} parent=5 // pred_fallthru
        _
      %p2136 = scmp.le.s32.totalorder 2, %s23
      // Predicated region
      $region81: #{tpu_custom_call.1} parent=5 // pred_check
        %p2137 = pneg %p2136
      $region82: #{tpu_custom_call.1} parent=5 // pred_check_branch
        %2139 = sbr.rel (%p2137) target = $region84
      $region83: #{tpu_custom_call.1} parent=5 // pred_region
        %s2140 = ssub.s32 %s23, 2
        // Predicated region
        $region85: #{tpu_custom_call.1} parent=83 // pred_check
          %p2141 = pneg %p246
        $region86: #{tpu_custom_call.1} parent=83 // pred_check_branch
          %2143 = sbr.rel (%p2141) target = $region88
        $region87: #{tpu_custom_call.1} parent=83 // pred_region
          %s2144 = sand.u32 %s231, 1
          %s2145 = scalar_lea.sflag [#allocation4], %s2144
          %s2146 = sand.u32 %s231, 1
          %s2147 = smul.addr %s2146, 8
          %s2148 = scalar_lea.vmem [#allocation11], %s2147
          %2150 = dma.done %s2145, 128
        $region88: #{tpu_custom_call.1} parent=83 // pred_fallthru
          _
      $region84: #{tpu_custom_call.1} parent=5 // pred_fallthru
        _
    $region6: #{tpu_custom_call.1} parent=1 // loop_footer
      %s27 = sadd.s32 1, %s23
    $region7: #{tpu_custom_call.1} parent=1 // loop_footer_branch
      %22 = sbr.rel target = $region3
    $region8: #{tpu_custom_call.1} parent=1 // loop_exit
      _
    %2151 = vsyncpa [#allocation3], 1
    %s2152 = scalar_lea.sflag [#allocation3], 1
    %2153 = vsyncpa %s2152, 1
    %2154 = vsyncpa [#allocation6], 1
    %2155 = vsyncpa [#allocation9], 1
    %2156 = vsyncpa [#allocation4], 1
    %s2157 = scalar_lea.sflag [#allocation4], 1
    %2158 = vsyncpa %s2157, 1

</llo_original>
